<compile_context>
chip_gen: v7x
topology: tpu7x:2x2x1
jax: 0.10.0
libtpu: 0.0.40
codegen_flags: <defaults>
</compile_context>

<pallas_src>
import jax
import jax.numpy as jnp
from jax import lax
from jax.experimental import pallas as pl
from jax.experimental.pallas import tpu as pltpu

NEG_SLOPE = 0.01   # PyTorch LeakyReLU default
BN_EPS = 1e-5      # PyTorch BatchNorm2d default


def _ru(x, m):
    return ((x + m - 1) // m) * m


# ---------------------------------------------------------------------------
# helpers copied from the reference module
# ---------------------------------------------------------------------------
def getflt_dim(inputshape, depth, booling):
    a, c = inputshape
    for b in booling:
        if b:
            a //= 2
            c //= 2
    return int(a * c * depth[-1])


def getkerneltuple(k):
    if isinstance(k, int):
        return (k, k)
    return tuple(k)


# ---------------------------------------------------------------------------
# parameter preparation (all algebra done ONCE, outside the kernel)
# ---------------------------------------------------------------------------
def _band_matrices(w_oihw, W):
    """Banded matrices M[dh] s.t. conv rows = sum_dh x_pad[dh:dh+H, :] @ M[dh].

    Activation slab layout: sublanes = padded rows, lanes = w*C + c.
    w_oihw: (Cout, Cin, kh, kw).  M[dh]: (Wp*Cin, W*Cout), Wp = W + 2*(kw//2).
    """
    Cout, Cin, kh, kw = w_oihw.shape
    pad = kw // 2
    Wp = W + 2 * pad
    mats = []
    for dh in range(kh):
        M = jnp.zeros((Wp * Cin, W * Cout), jnp.float32)
        for dw in range(kw):
            S = jnp.zeros((Wp, W), jnp.float32)
            S = S.at[jnp.arange(W) + dw, jnp.arange(W)].set(1.0)
            M = M + jnp.kron(S, w_oihw[:, :, dh, dw].T.astype(jnp.float32))
        mats.append(M)
    return jnp.stack(mats, axis=0)                      # (kh, Wp*Cin, W*Cout)


def _pool_pieces(H, W, C, pool, pad_r, pad_c):
    """Stacked 0/1 selection matrices: 2x2 max-pool (or identity) + zero repad.

    Row  op: yr2 = Gr_stk @ y        (Gr_stk: (reps*Hn8, H)); max over halves.
    Col  op: xc2 = yr @ GcT_stk^T    (GcT_stk: (reps*WnCp, W*C)); max halves.
    """
    Ho, Wo = (H // 2, W // 2) if pool else (H, W)
    Hn, Wn = Ho + 2 * pad_r, Wo + 2 * pad_c
    Hn8 = _ru(max(Hn, 1), 8)
    WnC = Wn * C
    WnCp = _ru(WnC, 128)
    idx_i = jnp.arange(Ho)
    idx_j = jnp.arange(Wo)
    eye_c = jnp.eye(C, dtype=jnp.float32)
    grs, gcs = [], []
    reps = 2 if pool else 1
    for t in range(reps):
        r_src = 2 * idx_i + t if pool else idx_i
        c_src = 2 * idx_j + t if pool else idx_j
        Gr = jnp.zeros((Hn8, H), jnp.float32).at[pad_r + idx_i, r_src].set(1.0)
        Sc = jnp.zeros((W, Wn), jnp.float32).at[c_src, pad_c + idx_j].set(1.0)
        Gc = jnp.kron(Sc, eye_c)                        # (W*C, Wn*C)
        Gc = jnp.pad(Gc, ((0, 0), (0, WnCp - WnC)))     # lane-pad to 128
        grs.append(Gr)
        gcs.append(Gc)
    Gr_stk = jnp.concatenate(grs, axis=0)               # (reps*Hn8, H)
    GcT_stk = jnp.concatenate(gcs, axis=1).T            # (reps*WnCp, W*C)
    return Gr_stk, GcT_stk, Ho, Wo, Hn8, WnCp


def _pack(pieces, dtype):
    """Pack 2-D pieces into one slab: 8-aligned row offsets, common 128-padded
    lane width.  Returns slab, per-piece (offset, rows, cols)."""
    width = _ru(max(int(p.shape[1]) for p in pieces), 128)
    blocks, offs, shapes = [], [], []
    rows = 0
    for p in pieces:
        r, c = int(p.shape[0]), int(p.shape[1])
        rpad = _ru(r, 8)
        offs.append(rows)
        shapes.append((r, c))
        blocks.append(jnp.pad(p.astype(jnp.float32),
                              ((0, rpad - r), (0, width - c))))
        rows += rpad
    slab = jnp.concatenate(blocks, axis=0).astype(dtype)
    return slab, offs, shapes


def prepare_kernel_params(params, inshape, booling):
    """Fold bn0 / per-layer BN / conv bias into banded weights + shift maps and
    pack everything into one bf16 weight slab + one f32 bias slab."""
    H, W = inshape
    convs = params["convs"]
    n_conv = len(convs)

    bn0 = params["bn0"]
    s0 = (bn0["gamma"] / jnp.sqrt(bn0["var"] + BN_EPS)).astype(jnp.float32)
    t0 = (bn0["beta"] - bn0["mean"] * s0).astype(jnp.float32)

    w_pieces, b_pieces, meta = [], [], []

    def add_w(a):
        w_pieces.append(a)
        return len(w_pieces) - 1

    def add_b(a):
        b_pieces.append(a)
        return len(b_pieces) - 1

    Cin0 = convs[0]["w"].shape[1]
    kh0, kw0 = convs[0]["w"].shape[2], convs[0]["w"].shape[3]
    ph, pw = kh0 // 2, kw0 // 2
    Hp0 = inshape[0] + 2 * ph
    Wpad0 = _ru((inshape[1] + 2 * pw) * Cin0, 128)

    for li, cp in enumerate(convs):
        w = cp["w"].astype(jnp.float32)                  # (Cout, Cin, kh, kw)
        Cout, Cin, kh, kw = w.shape
        pad_r, pad_c = kh // 2, kw // 2
        Wp = W + 2 * pad_c
        Kp = Wp * Cin
        N = W * Cout

        scale = (cp["gamma"] / jnp.sqrt(cp["var"] + BN_EPS)).astype(jnp.float32)
        shift = (cp["beta"] - cp["mean"] * scale).astype(jnp.float32)

        # fold BN scale (and bn0 input scale for the first layer) into weights
        w_eff = w * scale[:, None, None, None]
        if li == 0:
            w_eff = w_eff * s0[None, :, None, None]
        band = _band_matrices(w_eff, W)                  # (kh, Kp, N)

        row = jnp.tile(cp["b"].astype(jnp.float32) * scale + shift, W)
        if li == 0:
            # exact bn0 offset response through the raw conv (zero padding =>
            # border-aware), folded into a full (H, N) shift map.
            band_raw = _band_matrices(w, W)
            t0_slab = jnp.zeros((H + 2 * pad_r, Kp), jnp.float32)
            t0_slab = t0_slab.at[pad_r:pad_r + H,
                                 pad_c * Cin:(pad_c + W) * Cin].set(
                jnp.tile(t0, W)[None, :])
            const = jnp.zeros((H, N), jnp.float32)
            for dh in range(kh):
                const = const + t0_slab[dh:dh + H, :] @ band_raw[dh]
            shift_arr = const * jnp.tile(scale, W)[None, :] + row[None, :]
        else:
            shift_arr = row[None, :]                     # (1, N)

        # pooling selection matrices (re-padding sized for the NEXT conv)
        if li + 1 < n_conv:
            kh_n, kw_n = convs[li + 1]["w"].shape[2], convs[li + 1]["w"].shape[3]
        else:
            kh_n, kw_n = 1, 1
        pool = bool(booling[li])
        Gr, GcT, Ho, Wo, Hn8, WnCp = _pool_pieces(H, W, Cout, pool,
                                                  kh_n // 2, kw_n // 2)

        meta.append(dict(
            H=H, Kp=Kp, kh=kh, pool=pool, Hn8=Hn8, WnCp=WnCp,
            band=[add_w(band[dh]) for dh in range(kh)],
            gr=add_w(Gr), gct=add_w(GcT), shift=add_b(shift_arr)))
        H, W = Ho, Wo

    # dense head ------------------------------------------------------------
    C_last = convs[-1]["w"].shape[0]
    flt = H * W * C_last
    assert flt == getflt_dim(inshape, [c["w"].shape[0] for c in convs], booling)
    last_WnCp = meta[-1]["WnCp"]

    d = params["dense"]
    w1 = d[0]["w"].astype(jnp.float32).reshape(-1, C_last, H, W)   # (64,C,H,W)
    w1_ids = []
    for h in range(H):                     # flatten via per-row dots (H==1 here)
        blk = w1[:, :, h, :].transpose(2, 1, 0).reshape(W * C_last, -1)
        blk = jnp.pad(blk, ((0, last_WnCp - W * C_last), (0, 0)))
        w1_ids.append(add_w(blk))
    dense = dict(
        final_H=H,
        w1=w1_ids,
        w2=add_w(d[1]["w"].T.astype(jnp.float32)),
        w3=add_w(d[2]["w"].T.astype(jnp.float32)),
        b1=add_b(d[0]["b"].reshape(1, -1).astype(jnp.float32)),
        b2=add_b(d[1]["b"].reshape(1, -1).astype(jnp.float32)),
        b3=add_b(d[2]["b"].reshape(1, -1).astype(jnp.float32)))

    w_slab, w_offs, w_shapes = _pack(w_pieces, jnp.bfloat16)
    b_slab, b_offs, b_shapes = _pack(b_pieces, jnp.float32)

    layout = dict(meta=meta, dense=dense,
                  w_offs=w_offs, w_shapes=w_shapes,
                  b_offs=b_offs, b_shapes=b_shapes,
                  w_slab_shape=tuple(w_slab.shape),
                  b_slab_shape=tuple(b_slab.shape),
                  Hp0=Hp0, Wpad0=Wpad0, ph=ph, pw=pw)
    return (w_slab, b_slab), layout


# ---------------------------------------------------------------------------
# the single fused whole-network Pallas kernel
# ---------------------------------------------------------------------------
_NT = (((1,), (1,)), ((), ()))      # contract last dim of both operands


def _build_kernel(layout):
    meta, dm = layout["meta"], layout["dense"]
    w_offs, w_shapes = layout["w_offs"], layout["w_shapes"]
    b_offs, b_shapes = layout["b_offs"], layout["b_shapes"]

    def wp(ref, pid):
        off = w_offs[pid]
        r, c = w_shapes[pid]
        return ref[off:off + r, :c]

    def bp(ref, pid):
        off = b_offs[pid]
        r, c = b_shapes[pid]
        return ref[off:off + r, :c]

    def kernel(x_ref, w_ref, b_ref, o_ref):
        x = x_ref[...]                                   # (Hp0, Wpad0) f32

        for lm in meta:
            H, Kp, kh = lm["H"], lm["Kp"], lm["kh"]
            # conv + folded BN/bias: kh row-shifted banded matmuls on the MXU,
            # accumulator initialized with the f32 shift map.
            y = bp(b_ref, lm["shift"])
            for dh in range(kh):
                a = x[dh:dh + H, :Kp].astype(jnp.bfloat16)
                y = y + jnp.dot(a, wp(w_ref, lm["band"][dh]),
                                preferred_element_type=jnp.float32)
            # LeakyReLU (f32, VPU)
            y = jnp.where(y >= 0, y, NEG_SLOPE * y)

            # row pooling + zero re-pad: ONE stacked selection dot + VPU max
            yr2 = jnp.dot(wp(w_ref, lm["gr"]), y.astype(jnp.bfloat16),
                          preferred_element_type=jnp.float32)
            Hn8 = lm["Hn8"]
            yr = jnp.maximum(yr2[:Hn8, :], yr2[Hn8:, :]) if lm["pool"] else yr2

            # column pooling + zero re-pad: ONE stacked NT dot + VPU max
            xc2 = lax.dot_general(yr.astype(jnp.bfloat16), wp(w_ref, lm["gct"]),
                                  _NT, preferred_element_type=jnp.float32)
            WnCp = lm["WnCp"]
            x = jnp.maximum(xc2[:, :WnCp], xc2[:, WnCp:]) if lm["pool"] else xc2

        # dense head; flatten via per-row dots (final_H == 1 for this config).
        state = bp(b_ref, dm["b1"])
        for h, wid in enumerate(dm["w1"]):
            state = state + jnp.dot(x[h:h + 1, :].astype(jnp.bfloat16),
                                    wp(w_ref, wid),
                                    preferred_element_type=jnp.float32)
        state = jnp.where(state >= 0, state, NEG_SLOPE * state)
        state = jnp.dot(state.astype(jnp.bfloat16), wp(w_ref, dm["w2"]),
                        preferred_element_type=jnp.float32) + bp(b_ref, dm["b2"])
        state = jnp.where(state >= 0, state, NEG_SLOPE * state)
        state = jnp.dot(state.astype(jnp.bfloat16), wp(w_ref, dm["w3"]),
                        preferred_element_type=jnp.float32) + bp(b_ref, dm["b3"])
        o_ref[...] = state.astype(o_ref.dtype)

    return kernel


def make_forward(layout, batch, num_clss):
    Hp0, Wpad0 = layout["Hp0"], layout["Wpad0"]
    ph, pw = layout["ph"], layout["pw"]
    kernel = _build_kernel(layout)
    w_shape = layout["w_slab_shape"]
    b_shape = layout["b_slab_shape"]

    call = pl.pallas_call(
        kernel,
        out_shape=jax.ShapeDtypeStruct((batch, 1, num_clss), jnp.float32),
        grid_spec=pltpu.PrefetchScalarGridSpec(
            num_scalar_prefetch=0,
            grid=(batch,),
            in_specs=[
                pl.BlockSpec((None, Hp0, Wpad0), lambda n: (n, 0, 0)),
                pl.BlockSpec(w_shape, lambda n: (0, 0)),   # constant block
                pl.BlockSpec(b_shape, lambda n: (0, 0)),   # constant block
            ],
            out_specs=pl.BlockSpec((None, 1, num_clss), lambda n: (n, 0, 0)),
        ),
        compiler_params=pltpu.CompilerParams(
            dimension_semantics=("parallel",)),
    )

    def forward(x_nchw, w_slab, b_slab):
        # NCHW -> padded NHWC -> (N, Hp, Wp*Cin) slab, lane-padded to 128
        x = jnp.transpose(x_nchw, (0, 2, 3, 1)).astype(jnp.float32)
        x = jnp.pad(x, ((0, 0), (ph, ph), (pw, pw), (0, 0)))
        n, hp, wpd, c = x.shape
        x = x.reshape(n, hp, wpd * c)
        x = jnp.pad(x, ((0, 0), (0, 0), (0, Wpad0 - wpd * c)))
        out = call(x, w_slab, b_slab)
        return out.reshape(n, num_clss)

    return jax.jit(forward)


# ---------------------------------------------------------------------------
# raw (PyTorch-layout) parameter init + pure-JAX reference for validation
# ---------------------------------------------------------------------------
def init_params(key, inshape, in_chunnel, num_clss, depth, kernel_sizes, booling):
    keys = iter(jax.random.split(key, 16 + 8 * len(depth)))

    def nk():
        return next(keys)

    params = {}
    params["bn0"] = dict(
        gamma=jax.random.uniform(nk(), (in_chunnel,), minval=0.5, maxval=1.5),
        beta=jax.random.normal(nk(), (in_chunnel,)) * 0.1,
        mean=jax.random.normal(nk(), (in_chunnel,)) * 0.1,
        var=jax.random.uniform(nk(), (in_chunnel,), minval=0.5, maxval=1.5),
    )

    convs = []
    cin = in_chunnel
    for cout, ksz in zip(depth, kernel_sizes):
        kh, kw = getkerneltuple(ksz)
        fan_in = cin * kh * kw
        convs.append(dict(
            w=jax.random.normal(nk(), (cout, cin, kh, kw)) * (1.0 / fan_in ** 0.5),
            b=jax.random.normal(nk(), (cout,)) * 0.05,
            gamma=jax.random.uniform(nk(), (cout,), minval=0.5, maxval=1.5),
            beta=jax.random.normal(nk(), (cout,)) * 0.1,
            mean=jax.random.normal(nk(), (cout,)) * 0.1,
            var=jax.random.uniform(nk(), (cout,), minval=0.5, maxval=1.5),
        ))
        cin = cout
    params["convs"] = convs

    flttin = getflt_dim(inshape, depth, booling)
    dims = [flttin, 64, 64, num_clss]
    dense = []
    for i in range(3):
        dense.append(dict(
            w=jax.random.normal(nk(), (dims[i + 1], dims[i])) * (1.0 / dims[i] ** 0.5),
            b=jax.random.normal(nk(), (dims[i + 1],)) * 0.05,
        ))
    params["dense"] = dense
    return params


def reference_forward(params, x_nchw, kernel_sizes, booling):
    """Pure-JAX (XLA) reference of the assumed PyTorch forward (eval mode)."""
    x = x_nchw.astype(jnp.float32)
    bn0 = params["bn0"]
    s0 = bn0["gamma"] / jnp.sqrt(bn0["var"] + BN_EPS)
    t0 = bn0["beta"] - bn0["mean"] * s0
    x = x * s0[None, :, None, None] + t0[None, :, None, None]
    for cp, ksz, pool in zip(params["convs"], kernel_sizes, booling):
        kh, kw = getkerneltuple(ksz)
        x = lax.conv_general_dilated(
            x, cp["w"].astype(jnp.float32), window_strides=(1, 1),
            padding=((kh // 2, kh // 2), (kw // 2, kw // 2)),
            dimension_numbers=("NCHW", "OIHW", "NCHW"))
        x = x + cp["b"][None, :, None, None]
        scale = cp["gamma"] / jnp.sqrt(cp["var"] + BN_EPS)
        shift = cp["beta"] - cp["mean"] * scale
        x = x * scale[None, :, None, None] + shift[None, :, None, None]
        x = jnp.where(x >= 0, x, NEG_SLOPE * x)
        if pool:
            n, c, h, w = x.shape
            x = x.reshape(n, c, h // 2, 2, w // 2, 2).max(axis=(3, 5))
    state = x.reshape(x.shape[0], -1)
    for i, dp in enumerate(params["dense"]):
        state = state @ dp["w"].T.astype(jnp.float32) + dp["b"]
        if i < 2:
            state = jnp.where(state >= 0, state, NEG_SLOPE * state)
    return state


# ---------------------------------------------------------------------------
if __name__ == "__main__":
    inshape = (32, 32)
    in_chunnel = 1
    num_clss = 2
    depth = [8, 16, 16, 16, 8]
    kernel_sizes = [3, 3, 3, 3, 3]
    booling = [1, 1, 1, 1, 1]
    batch = 2

    key = jax.random.PRNGKey(0)
    pkey, xkey = jax.random.split(key)
    params = init_params(pkey, inshape, in_chunnel, num_clss, depth,
                         kernel_sizes, booling)
    x = jax.random.normal(xkey, (batch, in_chunnel, inshape[0], inshape[1]),
                          dtype=jnp.float32)

    (w_slab, b_slab), layout = prepare_kernel_params(params, inshape, booling)
    forward = make_forward(layout, batch, num_clss)

    out = jax.block_until_ready(forward(x, w_slab, b_slab))
    assert out.shape == (batch, num_clss), out.shape
    assert bool(jnp.all(jnp.isfinite(out)))

    # Semantic check against a pure-JAX/XLA reference.  Loose tolerance: both
    # paths use bf16-input MXU matmuls with f32 accumulation, so structural
    # (not bit-exact) agreement is expected.
    ref = jax.block_until_ready(
        reference_forward(params, x, kernel_sizes, booling))
    assert jnp.allclose(out, ref, rtol=0.15, atol=0.15), (out, ref)

    print("KERNEL_OK")
</pallas_src>

<mosaic_0001>
module attributes {stable_mosaic.version = 11 : i64} {
  func.func @kernel(%arg0: i32, %arg1: memref<1x34x128xf32, #tpu.memory_space<vmem>>, %arg2: memref<3688x256xbf16, #tpu.memory_space<vmem>>, %arg3: memref<88x256xf32, #tpu.memory_space<vmem>>, %arg4: memref<1x1x2xf32, #tpu.memory_space<vmem>>) attributes {dimension_semantics = [#tpu.dimension_semantics<parallel>], iteration_bounds = array<i64: 2>, scalar_prefetch = 0 : i64, scratch_operands = 0 : i64, tpu.core_type = #tpu.core_type<tc>, window_params = [{transform_indices = @transform_0, window_bounds = array<i64: 1, 34, 128>}, {pipeline_mode = #tpu.pipeline_mode<synchronous>, transform_indices = @transform_1, window_bounds = array<i64: 3688, 256>}, {pipeline_mode = #tpu.pipeline_mode<synchronous>, transform_indices = @transform_2, window_bounds = array<i64: 88, 256>}, {transform_indices = @transform_3, window_bounds = array<i64: 1, 1, 2>}]} {
    %c0 = arith.constant 0 : index
    %c0_0 = arith.constant 0 : index
    %c0_1 = arith.constant 0 : index
    %0 = vector.load %arg1[%c0, %c0_0, %c0_1] : memref<1x34x128xf32, #tpu.memory_space<vmem>>, vector<1x34x128xf32>
    %1 = vector.shape_cast %0 : vector<1x34x128xf32> to vector<34x128xf32>
    %c0_2 = arith.constant 0 : index
    %c0_3 = arith.constant 0 : index
    %2 = vector.load %arg3[%c0_2, %c0_3] : memref<88x256xf32, #tpu.memory_space<vmem>>, vector<32x256xf32>
    %3 = vector.extract_strided_slice %1 {offsets = [0, 0], sizes = [32, 34], strides = [1, 1]} : vector<34x128xf32> to vector<32x34xf32>
    %4 = arith.truncf %3 : vector<32x34xf32> to vector<32x34xbf16>
    %c0_4 = arith.constant 0 : index
    %c0_5 = arith.constant 0 : index
    %5 = vector.load %arg2[%c0_4, %c0_5] : memref<3688x256xbf16, #tpu.memory_space<vmem>>, vector<34x256xbf16>
    %cst = arith.constant dense<0.000000e+00> : vector<32x256xf32>
    %6 = tpu.matmul %4, %5, %cst {dimension_numbers = #tpu.dot_dimension_numbers<[1], [0], [0], [1], [0, 0, 1, 1], [], []>} : vector<32x34xbf16>, vector<34x256xbf16>, vector<32x256xf32> -> vector<32x256xf32>
    %7 = arith.addf %2, %6 : vector<32x256xf32>
    %8 = vector.extract_strided_slice %1 {offsets = [1, 0], sizes = [32, 34], strides = [1, 1]} : vector<34x128xf32> to vector<32x34xf32>
    %9 = arith.truncf %8 : vector<32x34xf32> to vector<32x34xbf16>
    %c40 = arith.constant 40 : index
    %c0_6 = arith.constant 0 : index
    %10 = vector.load %arg2[%c40, %c0_6] : memref<3688x256xbf16, #tpu.memory_space<vmem>>, vector<34x256xbf16>
    %cst_7 = arith.constant dense<0.000000e+00> : vector<32x256xf32>
    %11 = tpu.matmul %9, %10, %cst_7 {dimension_numbers = #tpu.dot_dimension_numbers<[1], [0], [0], [1], [0, 0, 1, 1], [], []>} : vector<32x34xbf16>, vector<34x256xbf16>, vector<32x256xf32> -> vector<32x256xf32>
    %12 = arith.addf %7, %11 : vector<32x256xf32>
    %13 = vector.extract_strided_slice %1 {offsets = [2, 0], sizes = [32, 34], strides = [1, 1]} : vector<34x128xf32> to vector<32x34xf32>
    %14 = arith.truncf %13 : vector<32x34xf32> to vector<32x34xbf16>
    %c80 = arith.constant 80 : index
    %c0_8 = arith.constant 0 : index
    %15 = vector.load %arg2[%c80, %c0_8] : memref<3688x256xbf16, #tpu.memory_space<vmem>>, vector<34x256xbf16>
    %cst_9 = arith.constant dense<0.000000e+00> : vector<32x256xf32>
    %16 = tpu.matmul %14, %15, %cst_9 {dimension_numbers = #tpu.dot_dimension_numbers<[1], [0], [0], [1], [0, 0, 1, 1], [], []>} : vector<32x34xbf16>, vector<34x256xbf16>, vector<32x256xf32> -> vector<32x256xf32>
    %17 = arith.addf %12, %16 : vector<32x256xf32>
    %cst_10 = arith.constant 0.000000e+00 : f32
    %18 = vector.broadcast %cst_10 : f32 to vector<32x256xf32>
    %19 = arith.cmpf oge, %17, %18 : vector<32x256xf32>
    %cst_11 = arith.constant 0.00999999977 : f32
    %20 = vector.broadcast %cst_11 : f32 to vector<32x256xf32>
    %21 = arith.mulf %20, %17 : vector<32x256xf32>
    %22 = arith.select %19, %17, %21 : vector<32x256xi1>, vector<32x256xf32>
    %c120 = arith.constant 120 : index
    %c0_12 = arith.constant 0 : index
    %23 = vector.load %arg2[%c120, %c0_12] : memref<3688x256xbf16, #tpu.memory_space<vmem>>, vector<48x32xbf16>
    %24 = arith.truncf %22 : vector<32x256xf32> to vector<32x256xbf16>
    %cst_13 = arith.constant dense<0.000000e+00> : vector<48x256xf32>
    %25 = tpu.matmul %23, %24, %cst_13 {dimension_numbers = #tpu.dot_dimension_numbers<[1], [0], [0], [1], [0, 0, 1, 1], [], []>} : vector<48x32xbf16>, vector<32x256xbf16>, vector<48x256xf32> -> vector<48x256xf32>
    %26 = vector.extract_strided_slice %25 {offsets = [0, 0], sizes = [24, 256], strides = [1, 1]} : vector<48x256xf32> to vector<24x256xf32>
    %27 = vector.extract_strided_slice %25 {offsets = [24, 0], sizes = [24, 256], strides = [1, 1]} : vector<48x256xf32> to vector<24x256xf32>
    %28 = arith.maximumf %26, %27 : vector<24x256xf32>
    %29 = arith.truncf %28 : vector<24x256xf32> to vector<24x256xbf16>
    %c168 = arith.constant 168 : index
    %c0_14 = arith.constant 0 : index
    %30 = vector.load %arg2[%c168, %c0_14] : memref<3688x256xbf16, #tpu.memory_space<vmem>>, vector<512x256xbf16>
    %cst_15 = arith.constant dense<0.000000e+00> : vector<24x512xf32>
    %31 = tpu.matmul %29, %30, %cst_15 {dimension_numbers = #tpu.dot_dimension_numbers<[1], [1], [0], [0], [0, 0, 1, 0], [], []>} : vector<24x256xbf16>, vector<512x256xbf16>, vector<24x512xf32> -> vector<24x512xf32>
    %32 = vector.extract_strided_slice %31 {offsets = [0, 0], sizes = [24, 256], strides = [1, 1]} : vector<24x512xf32> to vector<24x256xf32>
    %33 = vector.extract_strided_slice %31 {offsets = [0, 256], sizes = [24, 256], strides = [1, 1]} : vector<24x512xf32> to vector<24x256xf32>
    %34 = arith.maximumf %32, %33 : vector<24x256xf32>
    %c32 = arith.constant 32 : index
    %c0_16 = arith.constant 0 : index
    %35 = vector.load %arg3[%c32, %c0_16] : memref<88x256xf32, #tpu.memory_space<vmem>>, vector<1x256xf32>
    %36 = vector.extract_strided_slice %34 {offsets = [0, 0], sizes = [16, 144], strides = [1, 1]} : vector<24x256xf32> to vector<16x144xf32>
    %37 = arith.truncf %36 : vector<16x144xf32> to vector<16x144xbf16>
    %c680 = arith.constant 680 : index
    %c0_17 = arith.constant 0 : index
    %38 = vector.load %arg2[%c680, %c0_17] : memref<3688x256xbf16, #tpu.memory_space<vmem>>, vector<144x256xbf16>
    %cst_18 = arith.constant dense<0.000000e+00> : vector<16x256xf32>
    %39 = tpu.matmul %37, %38, %cst_18 {dimension_numbers = #tpu.dot_dimension_numbers<[1], [0], [0], [1], [0, 0, 1, 1], [], []>} : vector<16x144xbf16>, vector<144x256xbf16>, vector<16x256xf32> -> vector<16x256xf32>
    %40 = vector.broadcast %35 : vector<1x256xf32> to vector<16x256xf32>
    %41 = arith.addf %40, %39 : vector<16x256xf32>
    %42 = vector.extract_strided_slice %34 {offsets = [1, 0], sizes = [16, 144], strides = [1, 1]} : vector<24x256xf32> to vector<16x144xf32>
    %43 = arith.truncf %42 : vector<16x144xf32> to vector<16x144xbf16>
    %c824 = arith.constant 824 : index
    %c0_19 = arith.constant 0 : index
    %44 = vector.load %arg2[%c824, %c0_19] : memref<3688x256xbf16, #tpu.memory_space<vmem>>, vector<144x256xbf16>
    %cst_20 = arith.constant dense<0.000000e+00> : vector<16x256xf32>
    %45 = tpu.matmul %43, %44, %cst_20 {dimension_numbers = #tpu.dot_dimension_numbers<[1], [0], [0], [1], [0, 0, 1, 1], [], []>} : vector<16x144xbf16>, vector<144x256xbf16>, vector<16x256xf32> -> vector<16x256xf32>
    %46 = arith.addf %41, %45 : vector<16x256xf32>
    %47 = vector.extract_strided_slice %34 {offsets = [2, 0], sizes = [16, 144], strides = [1, 1]} : vector<24x256xf32> to vector<16x144xf32>
    %48 = arith.truncf %47 : vector<16x144xf32> to vector<16x144xbf16>
    %c968 = arith.constant 968 : index
    %c0_21 = arith.constant 0 : index
    %49 = vector.load %arg2[%c968, %c0_21] : memref<3688x256xbf16, #tpu.memory_space<vmem>>, vector<144x256xbf16>
    %cst_22 = arith.constant dense<0.000000e+00> : vector<16x256xf32>
    %50 = tpu.matmul %48, %49, %cst_22 {dimension_numbers = #tpu.dot_dimension_numbers<[1], [0], [0], [1], [0, 0, 1, 1], [], []>} : vector<16x144xbf16>, vector<144x256xbf16>, vector<16x256xf32> -> vector<16x256xf32>
    %51 = arith.addf %46, %50 : vector<16x256xf32>
    %cst_23 = arith.constant 0.000000e+00 : f32
    %52 = vector.broadcast %cst_23 : f32 to vector<16x256xf32>
    %53 = arith.cmpf oge, %51, %52 : vector<16x256xf32>
    %cst_24 = arith.constant 0.00999999977 : f32
    %54 = vector.broadcast %cst_24 : f32 to vector<16x256xf32>
    %55 = arith.mulf %54, %51 : vector<16x256xf32>
    %56 = arith.select %53, %51, %55 : vector<16x256xi1>, vector<16x256xf32>
    %c1112 = arith.constant 1112 : index
    %c0_25 = arith.constant 0 : index
    %57 = vector.load %arg2[%c1112, %c0_25] : memref<3688x256xbf16, #tpu.memory_space<vmem>>, vector<32x16xbf16>
    %58 = arith.truncf %56 : vector<16x256xf32> to vector<16x256xbf16>
    %cst_26 = arith.constant dense<0.000000e+00> : vector<32x256xf32>
    %59 = tpu.matmul %57, %58, %cst_26 {dimension_numbers = #tpu.dot_dimension_numbers<[1], [0], [0], [1], [0, 0, 1, 1], [], []>} : vector<32x16xbf16>, vector<16x256xbf16>, vector<32x256xf32> -> vector<32x256xf32>
    %60 = vector.extract_strided_slice %59 {offsets = [0, 0], sizes = [16, 256], strides = [1, 1]} : vector<32x256xf32> to vector<16x256xf32>
    %61 = vector.extract_strided_slice %59 {offsets = [16, 0], sizes = [16, 256], strides = [1, 1]} : vector<32x256xf32> to vector<16x256xf32>
    %62 = arith.maximumf %60, %61 : vector<16x256xf32>
    %63 = arith.truncf %62 : vector<16x256xf32> to vector<16x256xbf16>
    %c1144 = arith.constant 1144 : index
    %c0_27 = arith.constant 0 : index
    %64 = vector.load %arg2[%c1144, %c0_27] : memref<3688x256xbf16, #tpu.memory_space<vmem>>, vector<512x256xbf16>
    %cst_28 = arith.constant dense<0.000000e+00> : vector<16x512xf32>
    %65 = tpu.matmul %63, %64, %cst_28 {dimension_numbers = #tpu.dot_dimension_numbers<[1], [1], [0], [0], [0, 0, 1, 0], [], []>} : vector<16x256xbf16>, vector<512x256xbf16>, vector<16x512xf32> -> vector<16x512xf32>
    %66 = vector.extract_strided_slice %65 {offsets = [0, 0], sizes = [16, 256], strides = [1, 1]} : vector<16x512xf32> to vector<16x256xf32>
    %67 = vector.extract_strided_slice %65 {offsets = [0, 256], sizes = [16, 256], strides = [1, 1]} : vector<16x512xf32> to vector<16x256xf32>
    %68 = arith.maximumf %66, %67 : vector<16x256xf32>
    %c40_29 = arith.constant 40 : index
    %c0_30 = arith.constant 0 : index
    %69 = vector.load %arg3[%c40_29, %c0_30] : memref<88x256xf32, #tpu.memory_space<vmem>>, vector<1x128xf32>
    %70 = vector.extract_strided_slice %68 {offsets = [0, 0], sizes = [8, 160], strides = [1, 1]} : vector<16x256xf32> to vector<8x160xf32>
    %71 = arith.truncf %70 : vector<8x160xf32> to vector<8x160xbf16>
    %c1656 = arith.constant 1656 : index
    %c0_31 = arith.constant 0 : index
    %72 = vector.load %arg2[%c1656, %c0_31] : memref<3688x256xbf16, #tpu.memory_space<vmem>>, vector<160x128xbf16>
    %cst_32 = arith.constant dense<0.000000e+00> : vector<8x128xf32>
    %73 = tpu.matmul %71, %72, %cst_32 {dimension_numbers = #tpu.dot_dimension_numbers<[1], [0], [0], [1], [0, 0, 1, 1], [], []>} : vector<8x160xbf16>, vector<160x128xbf16>, vector<8x128xf32> -> vector<8x128xf32>
    %74 = vector.broadcast %69 : vector<1x128xf32> to vector<8x128xf32>
    %75 = arith.addf %74, %73 : vector<8x128xf32>
    %76 = vector.extract_strided_slice %68 {offsets = [1, 0], sizes = [8, 160], strides = [1, 1]} : vector<16x256xf32> to vector<8x160xf32>
    %77 = arith.truncf %76 : vector<8x160xf32> to vector<8x160xbf16>
    %c1816 = arith.constant 1816 : index
    %c0_33 = arith.constant 0 : index
    %78 = vector.load %arg2[%c1816, %c0_33] : memref<3688x256xbf16, #tpu.memory_space<vmem>>, vector<160x128xbf16>
    %cst_34 = arith.constant dense<0.000000e+00> : vector<8x128xf32>
    %79 = tpu.matmul %77, %78, %cst_34 {dimension_numbers = #tpu.dot_dimension_numbers<[1], [0], [0], [1], [0, 0, 1, 1], [], []>} : vector<8x160xbf16>, vector<160x128xbf16>, vector<8x128xf32> -> vector<8x128xf32>
    %80 = arith.addf %75, %79 : vector<8x128xf32>
    %81 = vector.extract_strided_slice %68 {offsets = [2, 0], sizes = [8, 160], strides = [1, 1]} : vector<16x256xf32> to vector<8x160xf32>
    %82 = arith.truncf %81 : vector<8x160xf32> to vector<8x160xbf16>
    %c1976 = arith.constant 1976 : index
    %c0_35 = arith.constant 0 : index
    %83 = vector.load %arg2[%c1976, %c0_35] : memref<3688x256xbf16, #tpu.memory_space<vmem>>, vector<160x128xbf16>
    %cst_36 = arith.constant dense<0.000000e+00> : vector<8x128xf32>
    %84 = tpu.matmul %82, %83, %cst_36 {dimension_numbers = #tpu.dot_dimension_numbers<[1], [0], [0], [1], [0, 0, 1, 1], [], []>} : vector<8x160xbf16>, vector<160x128xbf16>, vector<8x128xf32> -> vector<8x128xf32>
    %85 = arith.addf %80, %84 : vector<8x128xf32>
    %cst_37 = arith.constant 0.000000e+00 : f32
    %86 = vector.broadcast %cst_37 : f32 to vector<8x128xf32>
    %87 = arith.cmpf oge, %85, %86 : vector<8x128xf32>
    %cst_38 = arith.constant 0.00999999977 : f32
    %88 = vector.broadcast %cst_38 : f32 to vector<8x128xf32>
    %89 = arith.mulf %88, %85 : vector<8x128xf32>
    %90 = arith.select %87, %85, %89 : vector<8x128xi1>, vector<8x128xf32>
    %c2136 = arith.constant 2136 : index
    %c0_39 = arith.constant 0 : index
    %91 = vector.load %arg2[%c2136, %c0_39] : memref<3688x256xbf16, #tpu.memory_space<vmem>>, vector<16x8xbf16>
    %92 = arith.truncf %90 : vector<8x128xf32> to vector<8x128xbf16>
    %cst_40 = arith.constant dense<0.000000e+00> : vector<16x128xf32>
    %93 = tpu.matmul %91, %92, %cst_40 {dimension_numbers = #tpu.dot_dimension_numbers<[1], [0], [0], [1], [0, 0, 1, 1], [], []>} : vector<16x8xbf16>, vector<8x128xbf16>, vector<16x128xf32> -> vector<16x128xf32>
    %94 = vector.extract_strided_slice %93 {offsets = [0, 0], sizes = [8, 128], strides = [1, 1]} : vector<16x128xf32> to vector<8x128xf32>
    %95 = vector.extract_strided_slice %93 {offsets = [8, 0], sizes = [8, 128], strides = [1, 1]} : vector<16x128xf32> to vector<8x128xf32>
    %96 = arith.maximumf %94, %95 : vector<8x128xf32>
    %97 = arith.truncf %96 : vector<8x128xf32> to vector<8x128xbf16>
    %c2152 = arith.constant 2152 : index
    %c0_41 = arith.constant 0 : index
    %98 = vector.load %arg2[%c2152, %c0_41] : memref<3688x256xbf16, #tpu.memory_space<vmem>>, vector<256x128xbf16>
    %cst_42 = arith.constant dense<0.000000e+00> : vector<8x256xf32>
    %99 = tpu.matmul %97, %98, %cst_42 {dimension_numbers = #tpu.dot_dimension_numbers<[1], [1], [0], [0], [0, 0, 1, 0], [], []>} : vector<8x128xbf16>, vector<256x128xbf16>, vector<8x256xf32> -> vector<8x256xf32>
    %100 = vector.extract_strided_slice %99 {offsets = [0, 0], sizes = [8, 128], strides = [1, 1]} : vector<8x256xf32> to vector<8x128xf32>
    %101 = vector.extract_strided_slice %99 {offsets = [0, 128], sizes = [8, 128], strides = [1, 1]} : vector<8x256xf32> to vector<8x128xf32>
    %102 = arith.maximumf %100, %101 : vector<8x128xf32>
    %c48 = arith.constant 48 : index
    %c0_43 = arith.constant 0 : index
    %103 = vector.load %arg3[%c48, %c0_43] : memref<88x256xf32, #tpu.memory_space<vmem>>, vector<1x64xf32>
    %104 = vector.extract_strided_slice %102 {offsets = [0, 0], sizes = [4, 96], strides = [1, 1]} : vector<8x128xf32> to vector<4x96xf32>
    %105 = arith.truncf %104 : vector<4x96xf32> to vector<4x96xbf16>
    %c2408 = arith.constant 2408 : index
    %c0_44 = arith.constant 0 : index
    %106 = vector.load %arg2[%c2408, %c0_44] : memref<3688x256xbf16, #tpu.memory_space<vmem>>, vector<96x64xbf16>
    %cst_45 = arith.constant dense<0.000000e+00> : vector<4x64xf32>
    %107 = tpu.matmul %105, %106, %cst_45 {dimension_numbers = #tpu.dot_dimension_numbers<[1], [0], [0], [1], [0, 0, 1, 1], [], []>} : vector<4x96xbf16>, vector<96x64xbf16>, vector<4x64xf32> -> vector<4x64xf32>
    %108 = vector.broadcast %103 : vector<1x64xf32> to vector<4x64xf32>
    %109 = arith.addf %108, %107 : vector<4x64xf32>
    %110 = vector.extract_strided_slice %102 {offsets = [1, 0], sizes = [4, 96], strides = [1, 1]} : vector<8x128xf32> to vector<4x96xf32>
    %111 = arith.truncf %110 : vector<4x96xf32> to vector<4x96xbf16>
    %c2504 = arith.constant 2504 : index
    %c0_46 = arith.constant 0 : index
    %112 = vector.load %arg2[%c2504, %c0_46] : memref<3688x256xbf16, #tpu.memory_space<vmem>>, vector<96x64xbf16>
    %cst_47 = arith.constant dense<0.000000e+00> : vector<4x64xf32>
    %113 = tpu.matmul %111, %112, %cst_47 {dimension_numbers = #tpu.dot_dimension_numbers<[1], [0], [0], [1], [0, 0, 1, 1], [], []>} : vector<4x96xbf16>, vector<96x64xbf16>, vector<4x64xf32> -> vector<4x64xf32>
    %114 = arith.addf %109, %113 : vector<4x64xf32>
    %115 = vector.extract_strided_slice %102 {offsets = [2, 0], sizes = [4, 96], strides = [1, 1]} : vector<8x128xf32> to vector<4x96xf32>
    %116 = arith.truncf %115 : vector<4x96xf32> to vector<4x96xbf16>
    %c2600 = arith.constant 2600 : index
    %c0_48 = arith.constant 0 : index
    %117 = vector.load %arg2[%c2600, %c0_48] : memref<3688x256xbf16, #tpu.memory_space<vmem>>, vector<96x64xbf16>
    %cst_49 = arith.constant dense<0.000000e+00> : vector<4x64xf32>
    %118 = tpu.matmul %116, %117, %cst_49 {dimension_numbers = #tpu.dot_dimension_numbers<[1], [0], [0], [1], [0, 0, 1, 1], [], []>} : vector<4x96xbf16>, vector<96x64xbf16>, vector<4x64xf32> -> vector<4x64xf32>
    %119 = arith.addf %114, %118 : vector<4x64xf32>
    %cst_50 = arith.constant 0.000000e+00 : f32
    %120 = vector.broadcast %cst_50 : f32 to vector<4x64xf32>
    %121 = arith.cmpf oge, %119, %120 : vector<4x64xf32>
    %cst_51 = arith.constant 0.00999999977 : f32
    %122 = vector.broadcast %cst_51 : f32 to vector<4x64xf32>
    %123 = arith.mulf %122, %119 : vector<4x64xf32>
    %124 = arith.select %121, %119, %123 : vector<4x64xi1>, vector<4x64xf32>
    %c2696 = arith.constant 2696 : index
    %c0_52 = arith.constant 0 : index
    %125 = vector.load %arg2[%c2696, %c0_52] : memref<3688x256xbf16, #tpu.memory_space<vmem>>, vector<16x4xbf16>
    %126 = arith.truncf %124 : vector<4x64xf32> to vector<4x64xbf16>
    %cst_53 = arith.constant dense<0.000000e+00> : vector<16x64xf32>
    %127 = tpu.matmul %125, %126, %cst_53 {dimension_numbers = #tpu.dot_dimension_numbers<[1], [0], [0], [1], [0, 0, 1, 1], [], []>} : vector<16x4xbf16>, vector<4x64xbf16>, vector<16x64xf32> -> vector<16x64xf32>
    %128 = vector.extract_strided_slice %127 {offsets = [0, 0], sizes = [8, 64], strides = [1, 1]} : vector<16x64xf32> to vector<8x64xf32>
    %129 = vector.extract_strided_slice %127 {offsets = [8, 0], sizes = [8, 64], strides = [1, 1]} : vector<16x64xf32> to vector<8x64xf32>
    %130 = arith.maximumf %128, %129 : vector<8x64xf32>
    %131 = arith.truncf %130 : vector<8x64xf32> to vector<8x64xbf16>
    %c2712 = arith.constant 2712 : index
    %c0_54 = arith.constant 0 : index
    %132 = vector.load %arg2[%c2712, %c0_54] : memref<3688x256xbf16, #tpu.memory_space<vmem>>, vector<256x64xbf16>
    %cst_55 = arith.constant dense<0.000000e+00> : vector<8x256xf32>
    %133 = tpu.matmul %131, %132, %cst_55 {dimension_numbers = #tpu.dot_dimension_numbers<[1], [1], [0], [0], [0, 0, 1, 0], [], []>} : vector<8x64xbf16>, vector<256x64xbf16>, vector<8x256xf32> -> vector<8x256xf32>
    %134 = vector.extract_strided_slice %133 {offsets = [0, 0], sizes = [8, 128], strides = [1, 1]} : vector<8x256xf32> to vector<8x128xf32>
    %135 = vector.extract_strided_slice %133 {offsets = [0, 128], sizes = [8, 128], strides = [1, 1]} : vector<8x256xf32> to vector<8x128xf32>
    %136 = arith.maximumf %134, %135 : vector<8x128xf32>
    %c56 = arith.constant 56 : index
    %c0_56 = arith.constant 0 : index
    %137 = vector.load %arg3[%c56, %c0_56] : memref<88x256xf32, #tpu.memory_space<vmem>>, vector<1x16xf32>
    %138 = vector.extract_strided_slice %136 {offsets = [0, 0], sizes = [2, 64], strides = [1, 1]} : vector<8x128xf32> to vector<2x64xf32>
    %139 = arith.truncf %138 : vector<2x64xf32> to vector<2x64xbf16>
    %c2968 = arith.constant 2968 : index
    %c0_57 = arith.constant 0 : index
    %140 = vector.load %arg2[%c2968, %c0_57] : memref<3688x256xbf16, #tpu.memory_space<vmem>>, vector<64x16xbf16>
    %cst_58 = arith.constant dense<0.000000e+00> : vector<2x16xf32>
    %141 = tpu.matmul %139, %140, %cst_58 {dimension_numbers = #tpu.dot_dimension_numbers<[1], [0], [0], [1], [0, 0, 1, 1], [], []>} : vector<2x64xbf16>, vector<64x16xbf16>, vector<2x16xf32> -> vector<2x16xf32>
    %142 = vector.broadcast %137 : vector<1x16xf32> to vector<2x16xf32>
    %143 = arith.addf %142, %141 : vector<2x16xf32>
    %144 = vector.extract_strided_slice %136 {offsets = [1, 0], sizes = [2, 64], strides = [1, 1]} : vector<8x128xf32> to vector<2x64xf32>
    %145 = arith.truncf %144 : vector<2x64xf32> to vector<2x64xbf16>
    %c3032 = arith.constant 3032 : index
    %c0_59 = arith.constant 0 : index
    %146 = vector.load %arg2[%c3032, %c0_59] : memref<3688x256xbf16, #tpu.memory_space<vmem>>, vector<64x16xbf16>
    %cst_60 = arith.constant dense<0.000000e+00> : vector<2x16xf32>
    %147 = tpu.matmul %145, %146, %cst_60 {dimension_numbers = #tpu.dot_dimension_numbers<[1], [0], [0], [1], [0, 0, 1, 1], [], []>} : vector<2x64xbf16>, vector<64x16xbf16>, vector<2x16xf32> -> vector<2x16xf32>
    %148 = arith.addf %143, %147 : vector<2x16xf32>
    %149 = vector.extract_strided_slice %136 {offsets = [2, 0], sizes = [2, 64], strides = [1, 1]} : vector<8x128xf32> to vector<2x64xf32>
    %150 = arith.truncf %149 : vector<2x64xf32> to vector<2x64xbf16>
    %c3096 = arith.constant 3096 : index
    %c0_61 = arith.constant 0 : index
    %151 = vector.load %arg2[%c3096, %c0_61] : memref<3688x256xbf16, #tpu.memory_space<vmem>>, vector<64x16xbf16>
    %cst_62 = arith.constant dense<0.000000e+00> : vector<2x16xf32>
    %152 = tpu.matmul %150, %151, %cst_62 {dimension_numbers = #tpu.dot_dimension_numbers<[1], [0], [0], [1], [0, 0, 1, 1], [], []>} : vector<2x64xbf16>, vector<64x16xbf16>, vector<2x16xf32> -> vector<2x16xf32>
    %153 = arith.addf %148, %152 : vector<2x16xf32>
    %cst_63 = arith.constant 0.000000e+00 : f32
    %154 = vector.broadcast %cst_63 : f32 to vector<2x16xf32>
    %155 = arith.cmpf oge, %153, %154 : vector<2x16xf32>
    %cst_64 = arith.constant 0.00999999977 : f32
    %156 = vector.broadcast %cst_64 : f32 to vector<2x16xf32>
    %157 = arith.mulf %156, %153 : vector<2x16xf32>
    %158 = arith.select %155, %153, %157 : vector<2x16xi1>, vector<2x16xf32>
    %c3160 = arith.constant 3160 : index
    %c0_65 = arith.constant 0 : index
    %159 = vector.load %arg2[%c3160, %c0_65] : memref<3688x256xbf16, #tpu.memory_space<vmem>>, vector<16x2xbf16>
    %160 = arith.truncf %158 : vector<2x16xf32> to vector<2x16xbf16>
    %cst_66 = arith.constant dense<0.000000e+00> : vector<16x16xf32>
    %161 = tpu.matmul %159, %160, %cst_66 {dimension_numbers = #tpu.dot_dimension_numbers<[1], [0], [0], [1], [0, 0, 1, 1], [], []>} : vector<16x2xbf16>, vector<2x16xbf16>, vector<16x16xf32> -> vector<16x16xf32>
    %162 = vector.extract_strided_slice %161 {offsets = [0, 0], sizes = [8, 16], strides = [1, 1]} : vector<16x16xf32> to vector<8x16xf32>
    %163 = vector.extract_strided_slice %161 {offsets = [8, 0], sizes = [8, 16], strides = [1, 1]} : vector<16x16xf32> to vector<8x16xf32>
    %164 = arith.maximumf %162, %163 : vector<8x16xf32>
    %165 = arith.truncf %164 : vector<8x16xf32> to vector<8x16xbf16>
    %c3176 = arith.constant 3176 : index
    %c0_67 = arith.constant 0 : index
    %166 = vector.load %arg2[%c3176, %c0_67] : memref<3688x256xbf16, #tpu.memory_space<vmem>>, vector<256x16xbf16>
    %cst_68 = arith.constant dense<0.000000e+00> : vector<8x256xf32>
    %167 = tpu.matmul %165, %166, %cst_68 {dimension_numbers = #tpu.dot_dimension_numbers<[1], [1], [0], [0], [0, 0, 1, 0], [], []>} : vector<8x16xbf16>, vector<256x16xbf16>, vector<8x256xf32> -> vector<8x256xf32>
    %168 = vector.extract_strided_slice %167 {offsets = [0, 0], sizes = [8, 128], strides = [1, 1]} : vector<8x256xf32> to vector<8x128xf32>
    %169 = vector.extract_strided_slice %167 {offsets = [0, 128], sizes = [8, 128], strides = [1, 1]} : vector<8x256xf32> to vector<8x128xf32>
    %170 = arith.maximumf %168, %169 : vector<8x128xf32>
    %c64 = arith.constant 64 : index
    %c0_69 = arith.constant 0 : index
    %171 = vector.load %arg3[%c64, %c0_69] : memref<88x256xf32, #tpu.memory_space<vmem>>, vector<1x64xf32>
    %172 = vector.extract_strided_slice %170 {offsets = [0, 0], sizes = [1, 128], strides = [1, 1]} : vector<8x128xf32> to vector<1x128xf32>
    %173 = arith.truncf %172 : vector<1x128xf32> to vector<1x128xbf16>
    %c3432 = arith.constant 3432 : index
    %c0_70 = arith.constant 0 : index
    %174 = vector.load %arg2[%c3432, %c0_70] : memref<3688x256xbf16, #tpu.memory_space<vmem>>, vector<128x64xbf16>
    %cst_71 = arith.constant dense<0.000000e+00> : vector<1x64xf32>
    %175 = tpu.matmul %173, %174, %cst_71 {dimension_numbers = #tpu.dot_dimension_numbers<[1], [0], [0], [1], [0, 0, 1, 1], [], []>} : vector<1x128xbf16>, vector<128x64xbf16>, vector<1x64xf32> -> vector<1x64xf32>
    %176 = arith.addf %171, %175 : vector<1x64xf32>
    %cst_72 = arith.constant 0.000000e+00 : f32
    %177 = vector.broadcast %cst_72 : f32 to vector<1x64xf32>
    %178 = arith.cmpf oge, %176, %177 : vector<1x64xf32>
    %cst_73 = arith.constant 0.00999999977 : f32
    %179 = vector.broadcast %cst_73 : f32 to vector<1x64xf32>
    %180 = arith.mulf %179, %176 : vector<1x64xf32>
    %181 = arith.select %178, %176, %180 : vector<1x64xi1>, vector<1x64xf32>
    %182 = arith.truncf %181 : vector<1x64xf32> to vector<1x64xbf16>
    %c3560 = arith.constant 3560 : index
    %c0_74 = arith.constant 0 : index
    %183 = vector.load %arg2[%c3560, %c0_74] : memref<3688x256xbf16, #tpu.memory_space<vmem>>, vector<64x64xbf16>
    %cst_75 = arith.constant dense<0.000000e+00> : vector<1x64xf32>
    %184 = tpu.matmul %182, %183, %cst_75 {dimension_numbers = #tpu.dot_dimension_numbers<[1], [0], [0], [1], [0, 0, 1, 1], [], []>} : vector<1x64xbf16>, vector<64x64xbf16>, vector<1x64xf32> -> vector<1x64xf32>
    %c72 = arith.constant 72 : index
    %c0_76 = arith.constant 0 : index
    %185 = vector.load %arg3[%c72, %c0_76] : memref<88x256xf32, #tpu.memory_space<vmem>>, vector<1x64xf32>
    %186 = arith.addf %184, %185 : vector<1x64xf32>
    %cst_77 = arith.constant 0.000000e+00 : f32
    %187 = vector.broadcast %cst_77 : f32 to vector<1x64xf32>
    %188 = arith.cmpf oge, %186, %187 : vector<1x64xf32>
    %cst_78 = arith.constant 0.00999999977 : f32
    %189 = vector.broadcast %cst_78 : f32 to vector<1x64xf32>
    %190 = arith.mulf %189, %186 : vector<1x64xf32>
    %191 = arith.select %188, %186, %190 : vector<1x64xi1>, vector<1x64xf32>
    %192 = arith.truncf %191 : vector<1x64xf32> to vector<1x64xbf16>
    %c3624 = arith.constant 3624 : index
    %c0_79 = arith.constant 0 : index
    %193 = vector.load %arg2[%c3624, %c0_79] : memref<3688x256xbf16, #tpu.memory_space<vmem>>, vector<64x2xbf16>
    %cst_80 = arith.constant dense<0.000000e+00> : vector<1x2xf32>
    %194 = tpu.matmul %192, %193, %cst_80 {dimension_numbers = #tpu.dot_dimension_numbers<[1], [0], [0], [1], [0, 0, 1, 1], [], []>} : vector<1x64xbf16>, vector<64x2xbf16>, vector<1x2xf32> -> vector<1x2xf32>
    %c80_81 = arith.constant 80 : index
    %c0_82 = arith.constant 0 : index
    %195 = vector.load %arg3[%c80_81, %c0_82] : memref<88x256xf32, #tpu.memory_space<vmem>>, vector<1x2xf32>
    %196 = arith.addf %194, %195 : vector<1x2xf32>
    %c0_83 = arith.constant 0 : index
    %c0_84 = arith.constant 0 : index
    %c0_85 = arith.constant 0 : index
    %197 = vector.load %arg4[%c0_83, %c0_84, %c0_85] : memref<1x1x2xf32, #tpu.memory_space<vmem>>, vector<1x1x2xf32>
    %198 = vector.shape_cast %197 : vector<1x1x2xf32> to vector<1x2xf32>
    %199 = vector.shape_cast %196 : vector<1x2xf32> to vector<1x1x2xf32>
    tpu.vector_store %arg4[%c0_83, %c0_84, %c0_85], %199 {strides = array<i32>} : memref<1x1x2xf32, #tpu.memory_space<vmem>>, vector<1x1x2xf32>,
    return
  }
  func.func @transform_0(%arg0: i32) -> (i32, i32, i32) {
    %c0_i32 = arith.constant 0 : i32
    %c0_i32_0 = arith.constant 0 : i32
    %c0_i32_1 = arith.constant 0 : i32
    return %arg0, %c0_i32, %c0_i32_0 : i32, i32, i32
  }
  func.func @transform_1(%arg0: i32) -> (i32, i32) {
    %c0_i32 = arith.constant 0 : i32
    %c0_i32_0 = arith.constant 0 : i32
    %c0_i32_1 = arith.constant 0 : i32
    return %c0_i32, %c0_i32_0 : i32, i32
  }
  func.func @transform_2(%arg0: i32) -> (i32, i32) {
    %c0_i32 = arith.constant 0 : i32
    %c0_i32_0 = arith.constant 0 : i32
    %c0_i32_1 = arith.constant 0 : i32
    return %c0_i32, %c0_i32_0 : i32, i32
  }
  func.func @transform_3(%arg0: i32) -> (i32, i32, i32) {
    %c0_i32 = arith.constant 0 : i32
    %c0_i32_0 = arith.constant 0 : i32
    %c0_i32_1 = arith.constant 0 : i32
    return %arg0, %c0_i32, %c0_i32_0 : i32, i32, i32
  }
}

</mosaic_0001>

<llo_original>
// kernel: forward.1
$region0: #{forward.1}
  #allocation0 [shape = 'u32[]', space=smem, size = 0x4, offset = 0x4, fixed_abs, tag = 'smem constant byte address 0x4 - core index']
  #allocation1 [shape = 'u32[144,128]{1,0:T(1,128)}', space=vmem, size = 0x12000, scoped, tag = 'internal scratch']
  %s0 = inlined_call_operand.vmem [shape: f32[2,34,128], index: 0, kind: input, shape index: {}]
  %s1 = inlined_call_operand.hbm [shape: bf16[3688,256], index: 1, kind: input, shape index: {}]
  %s2 = inlined_call_operand.hbm [shape: f32[88,256], index: 2, kind: input, shape index: {}]
  %s3 = inlined_call_operand.hbm [shape: f32[2,1,2], index: 3, kind: output, shape index: {}]
  %s4 = sld [smem:[#allocation0]]
  $region53: #{forward.1} parent=0
    _
  %s6 = ssub.s32 1, %s4
  %s7 = scalar_select 0, %s6, %s4
  $region1: #{forward.1} parent=0
    #allocation2 [shape = 'u8[1888256]{0}', space=vmem, size = 0x1cd000, scoped, tag = 'input window, operand 1, single buffered']
    #allocation3 [shape = 's32[2]{0}', space=sflag, size = 0x8, scoped, tag = 'scoped memory for forward.1']
    #allocation4 [shape = 's32[2]{0}', space=sflag, size = 0x8, scoped, tag = 'scoped memory for forward.1']
    #allocation5 [shape = 'u8[90112]{0}', space=vmem, size = 0x16000, scoped, tag = 'input window, operand 2, single buffered']
    #allocation6 [shape = 's32[1]{0}', space=sflag, size = 0x4, scoped, tag = 'scoped memory for forward.1']
    #allocation7 [shape = 'u8[1024]{0}', space=vmem, size = 0x400, scoped, tag = 'output window, operand 0']
    %8 = vsyncpa [#allocation3], 0
    %9 = vsyncpa [#allocation6], 0
    %10 = vsyncpa [#allocation4], 0
    %s11 = scalar_lea.sflag [#allocation4], 1
    %12 = vsyncpa %s11, 0
    loop: start=0, step=1, limit=4
    $region2: #{forward.1} parent=1 // loop_pre_header
      _
    $region3: #{forward.1} parent=1 // loop_header
      %s14 = sphi 0, %s18
      %p15 = scmp.ge.s32.totalorder %s14, 4
      %s24 = sphi 0, %s26
      %s27 = sphi 0, %s24
      %s28 = sphi 0, %s27
      %s44 = sphi 0, %s28
      %s48 = sphi 0, %s48
      %s50 = sphi 0, %s48
      %s51 = sphi 0, %s50
      %s65 = sphi 0, %s51
      %s69 = sphi 0, %s69
      %s71 = sphi 0, %s69
      %s72 = sphi 0, %s71
      %s86 = sphi 0, %s72
      %s92 = sphi 0, %s94
      %s95 = sphi 0, %s92
      %s96 = sphi 0, %s95
      %s112 = sphi 0, %s96
    $region4: #{forward.1} parent=1 // loop_header_branch
      %17 = sbr.rel (%p15) target = $region8
    $region5: #{forward.1} parent=1 // loop_body
      %s19 = ssub.s32 %s14, 1
      %s20 = ssub.s32 %s14, 2
      %s21 = sadd.s32 %s14, 1
      %s22 = ssub.s32 %s14, %s21
      %p23 = scmp.eq.s32.totalorder %s22, 0
      %s25 = sadd.s32 %s24, 1
      %s26 = scalar_select %p23, %s24, %s25
      %p29 = pneg %p23
      %p30 = scmp.eq.s32.totalorder %s14, 1
      %p31 = por %p29, %p30
      %p32 = scmp.ne.s32.totalorder %s24, %s27
      %p33 = scmp.eq.s32.totalorder %s14, 0
      %p34 = por %p32, %p33
      %p35 = scmp.ne.s32.totalorder %s24, %s27
      %p36 = scmp.eq.s32.totalorder %s19, 1
      %p37 = por %p35, %p36
      %p38 = scmp.ne.s32.totalorder %s27, %s28
      %p39 = scmp.eq.s32.totalorder %s19, 0
      %p40 = por %p38, %p39
      %p41 = scmp.ne.s32.totalorder %s27, %s28
      %p42 = scmp.eq.s32.totalorder %s20, 1
      %p43 = por %p41, %p42
      %p45 = scmp.ne.s32.totalorder %s28, %s44
      %p46 = scmp.eq.s32.totalorder %s20, 0
      %p47 = por %p45, %p46
      %s49 = sadd.s32 %s48, 1
      %p52 = scmp.eq.s32.totalorder %s14, 1
      %p53 = scmp.ne.s32.totalorder %s48, %s50
      %p54 = scmp.eq.s32.totalorder %s14, 0
      %p55 = por %p53, %p54
      %p56 = scmp.ne.s32.totalorder %s48, %s50
      %p57 = scmp.eq.s32.totalorder %s19, 1
      %p58 = por %p56, %p57
      %p59 = scmp.ne.s32.totalorder %s50, %s51
      %p60 = scmp.eq.s32.totalorder %s19, 0
      %p61 = por %p59, %p60
      %p62 = scmp.ne.s32.totalorder %s50, %s51
      %p63 = scmp.eq.s32.totalorder %s20, 1
      %p64 = por %p62, %p63
      %p66 = scmp.ne.s32.totalorder %s51, %s65
      %p67 = scmp.eq.s32.totalorder %s20, 0
      %p68 = por %p66, %p67
      %s70 = sadd.s32 %s69, 1
      %p73 = scmp.eq.s32.totalorder %s14, 1
      %p74 = scmp.ne.s32.totalorder %s69, %s71
      %p75 = scmp.eq.s32.totalorder %s14, 0
      %p76 = por %p74, %p75
      %p77 = scmp.ne.s32.totalorder %s69, %s71
      %p78 = scmp.eq.s32.totalorder %s19, 1
      %p79 = por %p77, %p78
      %p80 = scmp.ne.s32.totalorder %s71, %s72
      %p81 = scmp.eq.s32.totalorder %s19, 0
      %p82 = por %p80, %p81
      %p83 = scmp.ne.s32.totalorder %s71, %s72
      %p84 = scmp.eq.s32.totalorder %s20, 1
      %p85 = por %p83, %p84
      %p87 = scmp.ne.s32.totalorder %s72, %s86
      %p88 = scmp.eq.s32.totalorder %s20, 0
      %p89 = por %p87, %p88
      %s90 = ssub.s32 %s14, %s21
      %p91 = scmp.eq.s32.totalorder %s90, 0
      %s93 = sadd.s32 %s92, 1
      %s94 = scalar_select %p91, %s92, %s93
      %p97 = pneg %p91
      %p98 = scmp.eq.s32.totalorder %s14, 1
      %p99 = por %p97, %p98
      %p100 = scmp.ne.s32.totalorder %s92, %s95
      %p101 = scmp.eq.s32.totalorder %s14, 0
      %p102 = por %p100, %p101
      %p103 = scmp.ne.s32.totalorder %s92, %s95
      %p104 = scmp.eq.s32.totalorder %s19, 1
      %p105 = por %p103, %p104
      %p106 = scmp.ne.s32.totalorder %s95, %s96
      %p107 = scmp.eq.s32.totalorder %s19, 0
      %p108 = por %p106, %p107
      %p109 = scmp.ne.s32.totalorder %s95, %s96
      %p110 = scmp.eq.s32.totalorder %s20, 1
      %p111 = por %p109, %p110
      %p113 = scmp.ne.s32.totalorder %s96, %s112
      %p114 = scmp.eq.s32.totalorder %s20, 0
      %p115 = por %p113, %p114
      %p116 = scmp.le.s32.totalorder 1, %s14
      %p117 = scmp.lt.s32.totalorder %s14, 3
      %p118 = pnand %p116, %p117
      %p119 = pneg %p118
      // Predicated region
      $region9: #{forward.1} parent=5 // pred_check
        _
      $region10: #{forward.1} parent=5 // pred_check_branch
        %121 = sbr.rel (%p118) target = $region12
      $region11: #{forward.1} parent=5 // pred_region
        %s122 = ssub.s32 %s14, 1
        // Predicated region
        $region13: #{forward.1} parent=11 // pred_check
          %p123 = pneg %p61
        $region14: #{forward.1} parent=11 // pred_check_branch
          %125 = sbr.rel (%p123) target = $region16
        $region15: #{forward.1} parent=11 // pred_region
          %s127 = ssub.s32 59008, 59008
          %128 = vsyncadd [#allocation3], %s127
          %s129 = sshll.u32 [#allocation2], 4
          %s130 = int_to_ptr.vmem [resolvable:$true] %s129
          %135 = dma.hbm_to_vmem [thread:$0]  %s1, 59008, %s130, [#allocation3], 128, 128, 8
        $region16: #{forward.1} parent=11 // pred_fallthru
          _
        // Predicated region
        $region17: #{forward.1} parent=11 // pred_check
          %p136 = pneg %p82
        $region18: #{forward.1} parent=11 // pred_check_branch
          %138 = sbr.rel (%p136) target = $region20
        $region19: #{forward.1} parent=11 // pred_region
          %s140 = ssub.s32 2816, 2816
          %141 = vsyncadd [#allocation6], %s140
          %s142 = sshll.u32 [#allocation5], 4
          %s143 = int_to_ptr.vmem [resolvable:$true] %s142
          %148 = dma.hbm_to_vmem [thread:$0]  %s2, 2816, %s143, [#allocation6], 256, 256, 16
        $region20: #{forward.1} parent=11 // pred_fallthru
          _
      $region12: #{forward.1} parent=5 // pred_fallthru
        _
      %p149 = scmp.lt.s32.totalorder %s14, 2
      // Predicated region
      $region21: #{forward.1} parent=5 // pred_check
        %p150 = pneg %p149
      $region22: #{forward.1} parent=5 // pred_check_branch
        %152 = sbr.rel (%p150) target = $region24
      $region23: #{forward.1} parent=5 // pred_region
        // Predicated region
        $region25: #{forward.1} parent=23 // pred_check
          %p153 = pneg %p34
        $region26: #{forward.1} parent=23 // pred_check_branch
          %155 = sbr.rel (%p153) target = $region28
        $region27: #{forward.1} parent=23 // pred_region
          %p156 = scmp.lt.s32.totalorder %s14, 1
          %s157 = scalar_select %p156, %s14, 1
          %s158 = smul.addr %s157, 5
          %s159 = smul.addr %s158, 8
          %s160 = scalar_lea.vmem %s0, %s159
        $region28: #{forward.1} parent=23 // pred_fallthru
          _
      $region24: #{forward.1} parent=5 // pred_fallthru
        _
      %p161 = scmp.le.s32.totalorder 1, %s14
      %p162 = scmp.lt.s32.totalorder %s14, 3
      %p163 = pnand %p161, %p162
      %p164 = pneg %p163
      // Predicated region
      $region29: #{forward.1} parent=5 // pred_check
        _
      $region30: #{forward.1} parent=5 // pred_check_branch
        %166 = sbr.rel (%p163) target = $region32
      $region31: #{forward.1} parent=5 // pred_region
        %s167 = ssub.s32 %s14, 1
        // Predicated region
        $region33: #{forward.1} parent=31 // pred_check
          %p168 = pneg %p61
        $region34: #{forward.1} parent=31 // pred_check_branch
          %170 = sbr.rel (%p168) target = $region36
        $region35: #{forward.1} parent=31 // pred_region
          %171 = dma.done [#allocation3], 59008
        $region36: #{forward.1} parent=31 // pred_fallthru
          _
        // Predicated region
        $region37: #{forward.1} parent=31 // pred_check
          %p172 = pneg %p82
        $region38: #{forward.1} parent=31 // pred_check_branch
          %174 = sbr.rel (%p172) target = $region40
        $region39: #{forward.1} parent=31 // pred_region
          %175 = dma.done [#allocation6], 2816
        $region40: #{forward.1} parent=31 // pred_fallthru
          _
        %p176 = scmp.lt.s32.totalorder %s19, 1
        %s177 = scalar_select %p176, %s19, 1
        %s178 = smul.addr %s177, 5
        %s179 = smul.addr %s178, 8
        %s180 = scalar_lea.vmem %s0, %s179
        %p181 = pneg %p40
        %p182 = pneg %p37
        %p183 = pneg %p61
        %p184 = pneg %p58
        %p185 = pneg %p82
        %p186 = pneg %p79
        %p187 = pneg %p108
        %p188 = pneg %p105
        %s189 = sand.u32 %s95, 1
        %s190 = scalar_lea.sflag [#allocation4], %s189
        %s191 = sand.u32 %s95, 1
        %s192 = scalar_lea.vmem [#allocation7], %s191
        %p193 = scmp.lt.s32.totalorder %s19, 1
        %s194 = scalar_select %p193, %s19, 1
        %s195 = smul.addr %s194, 5
        %s196 = smul.addr %s195, 8
        %s197 = scalar_lea.vmem %s0, %s196
        %v199 = vld [vmem:[%s197] sm:$0xff]
        %v200 = vld [vmem:[%s197 + $0x8] sm:$0xff]
        %v201 = vld [vmem:[%s197 + $0x10] sm:$0xff]
        %v202 = vld [vmem:[%s197 + $0x18] sm:$0xff]
        %v203 = vld [vmem:[%s197 + $0x20] sm:$0x3]
        %v204 = vld [vmem:[#allocation5] sm:$0xff]
        %v205 = vld [vmem:[#allocation5 + $0x8] sm:$0xff]
        %v206 = vld [vmem:[#allocation5 + $0x10] sm:$0xff]
        %v207 = vld [vmem:[#allocation5 + $0x18] sm:$0xff]
        %v208 = vld [vmem:[#allocation5 + $0x20] sm:$0xff]
        %v209 = vld [vmem:[#allocation5 + $0x28] sm:$0xff]
        %v210 = vld [vmem:[#allocation5 + $0x30] sm:$0xff]
        %v211 = vld [vmem:[#allocation5 + $0x38] sm:$0xff]
        %v212 = vpack.c.bf16 %v200, %v199
        %v213 = vpack.c.bf16 %v202, %v201
        %v214 = vld [vmem:[#allocation2] sm:$0xff]
        %v215 = vld [vmem:[#allocation2 + $0x8] sm:$0xff]
        %v216 = vld [vmem:[#allocation2 + $0x10] sm:$0xff]
        %v217 = vld [vmem:[#allocation2 + $0x18] sm:$0xff]
        %v218 = vld [vmem:[#allocation2 + $0x20] sm:$0x11]
        %v224 = vunpack.c.l.b16 %v214
        %v225 = vunpack.c.h.b16 %v214
        %v226 = vunpack.c.l.b16 %v215
        %v227 = vunpack.c.h.b16 %v215
        %v228 = vunpack.c.l.b16 %v216
        %v229 = vunpack.c.h.b16 %v216
        %v230 = vunpack.c.l.b16 %v217
        %v231 = vunpack.c.h.b16 %v217
        %v232 = vunpack.c.l.b16 %v218
        %v233 = vunpack.c.h.b16 %v218
        %v234 = vpack.c.b16 %v226, %v224
        %v235 = vpack.c.b16 %v227, %v225
        %v236 = vpack.c.b16 %v230, %v228
        %v237 = vpack.c.b16 %v231, %v229
        %v238 = vpack.c.b16 %v232, %v232
        %v239 = vpack.c.b16 %v233, %v233
        %vm244 = vcmask 277504
        %v246 = vsel %vm244, %v212, 0
        %v249 = vsel %vm244, %v213, 0
        %vm251 = vcmask 1040384
        %v253 = vsel %vm251, %v238, 0
        %v256 = vsel %vm251, %v239, 0
        %258 = vmatprep.subr.bf16.mxu0 %v235
        %259 = vmatpush1.bf16.msra.mxu0 %v234
        %260 = vmatprep.subr.bf16.mxu0 %v237
        %261 = vmatpush1.bf16.msra.mxu0 %v236
        %262 = vmatprep.subr.bf16.mxu0 %v256
        %263 = vmatpush1.bf16.msra.mxu0 %v253
        %264 = vmatprep.subr.bf16.mxu0 0
        %265 = vmatpush1.bf16.msra.mxu0 0
        %266 = vmatprep.subr.bf16.mxu0 0
        %267 = vmatpush1.bf16.msra.mxu0 0
        %268 = vmatprep.subr.bf16.mxu0 0
        %269 = vmatpush1.bf16.msra.mxu0 0
        %270 = vmatprep.subr.bf16.mxu0 0
        %271 = vmatpush1.bf16.msra.mxu0 0
        %272 = vmatprep.subr.bf16.mxu0 0
        %273 = vmatpush1.bf16.msra.mxu0 0
        %274 = vmatprep.subr.bf16.mxu0 0
        %275 = vmatpush1.bf16.msra.mxu0 0
        %276 = vmatprep.subr.bf16.mxu0 0
        %277 = vmatpush1.bf16.msra.mxu0 0
        %278 = vmatprep.subr.bf16.mxu0 0
        %279 = vmatpush1.bf16.msra.mxu0 0
        %280 = vmatprep.subr.bf16.mxu0 0
        %281 = vmatpush1.bf16.msra.mxu0 0
        %282 = vmatprep.subr.bf16.mxu0 0
        %283 = vmatpush1.bf16.msra.mxu0 0
        %284 = vmatprep.subr.bf16.mxu0 0
        %285 = vmatpush1.bf16.msra.mxu0 0
        %286 = vmatprep.subr.bf16.mxu0 0
        %287 = vmatpush1.bf16.msra.mxu0 0
        %288 = vmatprep.subr.bf16.mxu0 0
        %289 = vmatpush1.bf16.msra.mxu0 0
        %290 = vmatprep.mubr.bf16.mxu0 0
        %291 = vmatmul.mubr.bf16.gmra.mrb[0].mxu0 %v246
        %v292 = vpop.f32.mrb[0].mxu0
        %v293 = vadd.f32 0.0, %v292
        %v294 = vpop.f32.mrb[0].mxu0
        %v295 = vadd.f32 0.0, %v294
        %v296 = vpop.f32.mrb[0].mxu0
        %v297 = vadd.f32 0.0, %v296
        %v298 = vpop.f32.mrb[0].mxu0
        %v299 = vadd.f32 0.0, %v298
        %300 = vmatprep.mubr.bf16.mxu0 0
        %301 = vmatmul.mubr.bf16.gmra.mrb[0].mxu0 %v249
        %v302 = vpop.f32.mrb[0].mxu0
        %v303 = vadd.f32 0.0, %v302
        %v304 = vpop.f32.mrb[0].mxu0
        %v305 = vadd.f32 0.0, %v304
        %v306 = vpop.f32.mrb[0].mxu0
        %v307 = vadd.f32 0.0, %v306
        %v308 = vpop.f32.mrb[0].mxu0
        %v309 = vadd.f32 0.0, %v308
        %310 = vdwg.mxu0
        %v311 = vadd.f32 %v204, %v293
        %v312 = vadd.f32 %v205, %v295
        %v313 = vadd.f32 %v206, %v297
        %v314 = vadd.f32 %v207, %v299
        %v315 = vadd.f32 %v208, %v303
        %v316 = vadd.f32 %v209, %v305
        %v317 = vadd.f32 %v210, %v307
        %v318 = vadd.f32 %v211, %v309
        %v319 = vpack.c.bf16 %v203, %v203
        %v320 = vld [vmem:[#allocation2 + $0x28] sm:$0xff]
        %v321 = vld [vmem:[#allocation2 + $0x30] sm:$0xff]
        %v322 = vld [vmem:[#allocation2 + $0x38] sm:$0xff]
        %v323 = vld [vmem:[#allocation2 + $0x40] sm:$0xff]
        %v324 = vld [vmem:[#allocation2 + $0x48] sm:$0x11]
        %vm325 = vsmask.f32 7424
        %v326 = vshrl.u32 %v212, 16
        %v328 = vshll.u32 %v212, 16
        %v330 = vrot.slane %v328, 1
        %v331 = vor.u32 %v326, %v330
        %v332 = vshll.u32 %v213, 16
        %v334 = vrot.slane %v332, 1
        %v335 = vsel %vm325, %v331, %v334
        %v336 = vshrl.u32 %v213, 16
        %v338 = vor.u32 %v336, %v334
        %v340 = vshll.u32 %v319, 16
        %v342 = vrot.slane %v340, 1
        %v343 = vsel %vm325, %v338, %v342
        %v349 = vunpack.c.l.b16 %v320
        %v350 = vunpack.c.h.b16 %v320
        %v351 = vunpack.c.l.b16 %v321
        %v352 = vunpack.c.h.b16 %v321
        %v353 = vunpack.c.l.b16 %v322
        %v354 = vunpack.c.h.b16 %v322
        %v355 = vunpack.c.l.b16 %v323
        %v356 = vunpack.c.h.b16 %v323
        %v357 = vunpack.c.l.b16 %v324
        %v358 = vunpack.c.h.b16 %v324
        %v359 = vpack.c.b16 %v351, %v349
        %v360 = vpack.c.b16 %v352, %v350
        %v361 = vpack.c.b16 %v355, %v353
        %v362 = vpack.c.b16 %v356, %v354
        %v363 = vpack.c.b16 %v357, %v357
        %v364 = vpack.c.b16 %v358, %v358
        %v370 = vsel %vm244, %v335, 0
        %v373 = vsel %vm244, %v343, 0
        %v376 = vsel %vm251, %v363, 0
        %v379 = vsel %vm251, %v364, 0
        %381 = vmatprep.subr.bf16.mxu0 %v360
        %382 = vmatpush1.bf16.msra.mxu0 %v359
        %383 = vmatprep.subr.bf16.mxu0 %v362
        %384 = vmatpush1.bf16.msra.mxu0 %v361
        %385 = vmatprep.subr.bf16.mxu0 %v379
        %386 = vmatpush1.bf16.msra.mxu0 %v376
        %387 = vmatprep.subr.bf16.mxu0 0
        %388 = vmatpush1.bf16.msra.mxu0 0
        %389 = vmatprep.subr.bf16.mxu0 0
        %390 = vmatpush1.bf16.msra.mxu0 0
        %391 = vmatprep.subr.bf16.mxu0 0
        %392 = vmatpush1.bf16.msra.mxu0 0
        %393 = vmatprep.subr.bf16.mxu0 0
        %394 = vmatpush1.bf16.msra.mxu0 0
        %395 = vmatprep.subr.bf16.mxu0 0
        %396 = vmatpush1.bf16.msra.mxu0 0
        %397 = vmatprep.subr.bf16.mxu0 0
        %398 = vmatpush1.bf16.msra.mxu0 0
        %399 = vmatprep.subr.bf16.mxu0 0
        %400 = vmatpush1.bf16.msra.mxu0 0
        %401 = vmatprep.subr.bf16.mxu0 0
        %402 = vmatpush1.bf16.msra.mxu0 0
        %403 = vmatprep.subr.bf16.mxu0 0
        %404 = vmatpush1.bf16.msra.mxu0 0
        %405 = vmatprep.subr.bf16.mxu0 0
        %406 = vmatpush1.bf16.msra.mxu0 0
        %407 = vmatprep.subr.bf16.mxu0 0
        %408 = vmatpush1.bf16.msra.mxu0 0
        %409 = vmatprep.subr.bf16.mxu0 0
        %410 = vmatpush1.bf16.msra.mxu0 0
        %411 = vmatprep.subr.bf16.mxu0 0
        %412 = vmatpush1.bf16.msra.mxu0 0
        %413 = vmatprep.mubr.bf16.mxu0 0
        %414 = vmatmul.mubr.bf16.gmra.mrb[0].mxu0 %v370
        %v415 = vpop.f32.mrb[0].mxu0
        %v416 = vadd.f32 0.0, %v415
        %v417 = vpop.f32.mrb[0].mxu0
        %v418 = vadd.f32 0.0, %v417
        %v419 = vpop.f32.mrb[0].mxu0
        %v420 = vadd.f32 0.0, %v419
        %v421 = vpop.f32.mrb[0].mxu0
        %v422 = vadd.f32 0.0, %v421
        %423 = vmatprep.mubr.bf16.mxu0 0
        %424 = vmatmul.mubr.bf16.gmra.mrb[0].mxu0 %v373
        %v425 = vpop.f32.mrb[0].mxu0
        %v426 = vadd.f32 0.0, %v425
        %v427 = vpop.f32.mrb[0].mxu0
        %v428 = vadd.f32 0.0, %v427
        %v429 = vpop.f32.mrb[0].mxu0
        %v430 = vadd.f32 0.0, %v429
        %v431 = vpop.f32.mrb[0].mxu0
        %v432 = vadd.f32 0.0, %v431
        %433 = vdwg.mxu0
        %v434 = vadd.f32 %v311, %v416
        %v435 = vadd.f32 %v312, %v418
        %v436 = vadd.f32 %v313, %v420
        %v437 = vadd.f32 %v314, %v422
        %v438 = vadd.f32 %v315, %v426
        %v439 = vadd.f32 %v316, %v428
        %v440 = vadd.f32 %v317, %v430
        %v441 = vadd.f32 %v318, %v432
        %v442 = vld [vmem:[#allocation2 + $0x50] sm:$0xff]
        %v443 = vld [vmem:[#allocation2 + $0x58] sm:$0xff]
        %v444 = vld [vmem:[#allocation2 + $0x60] sm:$0xff]
        %v445 = vld [vmem:[#allocation2 + $0x68] sm:$0xff]
        %v446 = vld [vmem:[#allocation2 + $0x70] sm:$0x11]
        %vm450 = vcmask 1046528
        %v451 = vrot.slane %v212, 1
        %v452 = vrot.slane %v213, 1
        %v453 = vsel %vm450, %v451, %v452
        %v454 = vrot.slane %v319, 1
        %v455 = vsel %vm450, %v452, %v454
        %v461 = vunpack.c.l.b16 %v442
        %v462 = vunpack.c.h.b16 %v442
        %v463 = vunpack.c.l.b16 %v443
        %v464 = vunpack.c.h.b16 %v443
        %v465 = vunpack.c.l.b16 %v444
        %v466 = vunpack.c.h.b16 %v444
        %v467 = vunpack.c.l.b16 %v445
        %v468 = vunpack.c.h.b16 %v445
        %v469 = vunpack.c.l.b16 %v446
        %v470 = vunpack.c.h.b16 %v446
        %v471 = vpack.c.b16 %v463, %v461
        %v472 = vpack.c.b16 %v464, %v462
        %v473 = vpack.c.b16 %v467, %v465
        %v474 = vpack.c.b16 %v468, %v466
        %v475 = vpack.c.b16 %v469, %v469
        %v476 = vpack.c.b16 %v470, %v470
        %v482 = vsel %vm244, %v453, 0
        %v485 = vsel %vm244, %v455, 0
        %v488 = vsel %vm251, %v475, 0
        %v491 = vsel %vm251, %v476, 0
        %493 = vmatprep.subr.bf16.mxu0 %v472
        %494 = vmatpush1.bf16.msra.mxu0 %v471
        %495 = vmatprep.subr.bf16.mxu0 %v474
        %496 = vmatpush1.bf16.msra.mxu0 %v473
        %497 = vmatprep.subr.bf16.mxu0 %v491
        %498 = vmatpush1.bf16.msra.mxu0 %v488
        %499 = vmatprep.subr.bf16.mxu0 0
        %500 = vmatpush1.bf16.msra.mxu0 0
        %501 = vmatprep.subr.bf16.mxu0 0
        %502 = vmatpush1.bf16.msra.mxu0 0
        %503 = vmatprep.subr.bf16.mxu0 0
        %504 = vmatpush1.bf16.msra.mxu0 0
        %505 = vmatprep.subr.bf16.mxu0 0
        %506 = vmatpush1.bf16.msra.mxu0 0
        %507 = vmatprep.subr.bf16.mxu0 0
        %508 = vmatpush1.bf16.msra.mxu0 0
        %509 = vmatprep.subr.bf16.mxu0 0
        %510 = vmatpush1.bf16.msra.mxu0 0
        %511 = vmatprep.subr.bf16.mxu0 0
        %512 = vmatpush1.bf16.msra.mxu0 0
        %513 = vmatprep.subr.bf16.mxu0 0
        %514 = vmatpush1.bf16.msra.mxu0 0
        %515 = vmatprep.subr.bf16.mxu0 0
        %516 = vmatpush1.bf16.msra.mxu0 0
        %517 = vmatprep.subr.bf16.mxu0 0
        %518 = vmatpush1.bf16.msra.mxu0 0
        %519 = vmatprep.subr.bf16.mxu0 0
        %520 = vmatpush1.bf16.msra.mxu0 0
        %521 = vmatprep.subr.bf16.mxu0 0
        %522 = vmatpush1.bf16.msra.mxu0 0
        %523 = vmatprep.subr.bf16.mxu0 0
        %524 = vmatpush1.bf16.msra.mxu0 0
        %525 = vmatprep.mubr.bf16.mxu0 0
        %526 = vmatmul.mubr.bf16.gmra.mrb[0].mxu0 %v482
        %v527 = vpop.f32.mrb[0].mxu0
        %v528 = vadd.f32 0.0, %v527
        %v529 = vpop.f32.mrb[0].mxu0
        %v530 = vadd.f32 0.0, %v529
        %v531 = vpop.f32.mrb[0].mxu0
        %v532 = vadd.f32 0.0, %v531
        %v533 = vpop.f32.mrb[0].mxu0
        %v534 = vadd.f32 0.0, %v533
        %535 = vmatprep.mubr.bf16.mxu0 0
        %536 = vmatmul.mubr.bf16.gmra.mrb[0].mxu0 %v485
        %v537 = vpop.f32.mrb[0].mxu0
        %v538 = vadd.f32 0.0, %v537
        %v539 = vpop.f32.mrb[0].mxu0
        %v540 = vadd.f32 0.0, %v539
        %v541 = vpop.f32.mrb[0].mxu0
        %v542 = vadd.f32 0.0, %v541
        %v543 = vpop.f32.mrb[0].mxu0
        %v544 = vadd.f32 0.0, %v543
        %545 = vdwg.mxu0
        %v546 = vadd.f32 %v434, %v528
        %v547 = vadd.f32 %v435, %v530
        %v548 = vadd.f32 %v436, %v532
        %v549 = vadd.f32 %v437, %v534
        %v550 = vadd.f32 %v438, %v538
        %v551 = vadd.f32 %v439, %v540
        %v552 = vadd.f32 %v440, %v542
        %v553 = vadd.f32 %v441, %v544
        %vm554 = vcmp.ge.f32.partialorder %v546, 0.0
        %vm555 = vcmp.ge.f32.partialorder %v547, 0.0
        %vm556 = vcmp.ge.f32.partialorder %v548, 0.0
        %vm557 = vcmp.ge.f32.partialorder %v549, 0.0
        %vm558 = vcmp.ge.f32.partialorder %v550, 0.0
        %vm559 = vcmp.ge.f32.partialorder %v551, 0.0
        %vm560 = vcmp.ge.f32.partialorder %v552, 0.0
        %vm561 = vcmp.ge.f32.partialorder %v553, 0.0
        %v562 = vmul.f32 %v546, 0.01
        %v563 = vmul.f32 %v547, 0.01
        %v564 = vmul.f32 %v548, 0.01
        %v565 = vmul.f32 %v549, 0.01
        %v566 = vmul.f32 %v550, 0.01
        %v567 = vmul.f32 %v551, 0.01
        %v568 = vmul.f32 %v552, 0.01
        %v569 = vmul.f32 %v553, 0.01
        %v570 = vsel %vm554, %v546, %v562
        %v571 = vsel %vm555, %v547, %v563
        %v572 = vsel %vm556, %v548, %v564
        %v573 = vsel %vm557, %v549, %v565
        %v574 = vsel %vm558, %v550, %v566
        %v575 = vsel %vm559, %v551, %v567
        %v576 = vsel %vm560, %v552, %v568
        %v577 = vsel %vm561, %v553, %v569
        %v578 = vld [vmem:[#allocation2 + $0x78] sm:$0xf]
        %v579 = vld [vmem:[#allocation2 + $0x80] sm:$0xf]
        %v580 = vld [vmem:[#allocation2 + $0x88] sm:$0xf]
        %v581 = vld [vmem:[#allocation2 + $0x90] sm:$0xf]
        %v582 = vld [vmem:[#allocation2 + $0x98] sm:$0xf]
        %v583 = vld [vmem:[#allocation2 + $0xa0] sm:$0xf]
        %v584 = vpack.c.bf16 %v572, %v570
        %v585 = vpack.c.bf16 %v573, %v571
        %v586 = vpack.c.bf16 %v576, %v574
        %v587 = vpack.c.bf16 %v577, %v575
        %v594 = vunpack.c.l.b16 %v578
        %v595 = vunpack.c.l.b16 %v579
        %v596 = vunpack.c.l.b16 %v580
        %v597 = vunpack.c.l.b16 %v581
        %v598 = vunpack.c.l.b16 %v582
        %v599 = vunpack.c.l.b16 %v583
        %v600 = vpack.c.b16 %v595, %v594
        %v601 = vpack.c.b16 %v597, %v596
        %v602 = vpack.c.b16 %v599, %v598
        %vm603 = vcmask 261120
        %v605 = vsel %vm603, %v600, 0
        %v608 = vsel %vm603, %v601, 0
        %v611 = vsel %vm603, %v602, 0
        %613 = vmatprep.subr.bf16.mxu0 %v585
        %614 = vmatpush1.bf16.msra.mxu0 %v584
        %615 = vmatprep.subr.bf16.mxu0 %v587
        %616 = vmatpush1.bf16.msra.mxu0 %v586
        %617 = vmatprep.subr.bf16.mxu0 0
        %618 = vmatpush1.bf16.msra.mxu0 0
        %619 = vmatprep.subr.bf16.mxu0 0
        %620 = vmatpush1.bf16.msra.mxu0 0
        %621 = vmatprep.subr.bf16.mxu0 0
        %622 = vmatpush1.bf16.msra.mxu0 0
        %623 = vmatprep.subr.bf16.mxu0 0
        %624 = vmatpush1.bf16.msra.mxu0 0
        %625 = vmatprep.subr.bf16.mxu0 0
        %626 = vmatpush1.bf16.msra.mxu0 0
        %627 = vmatprep.subr.bf16.mxu0 0
        %628 = vmatpush1.bf16.msra.mxu0 0
        %629 = vmatprep.subr.bf16.mxu0 0
        %630 = vmatpush1.bf16.msra.mxu0 0
        %631 = vmatprep.subr.bf16.mxu0 0
        %632 = vmatpush1.bf16.msra.mxu0 0
        %633 = vmatprep.subr.bf16.mxu0 0
        %634 = vmatpush1.bf16.msra.mxu0 0
        %635 = vmatprep.subr.bf16.mxu0 0
        %636 = vmatpush1.bf16.msra.mxu0 0
        %637 = vmatprep.subr.bf16.mxu0 0
        %638 = vmatpush1.bf16.msra.mxu0 0
        %639 = vmatprep.subr.bf16.mxu0 0
        %640 = vmatpush1.bf16.msra.mxu0 0
        %641 = vmatprep.subr.bf16.mxu0 0
        %642 = vmatpush1.bf16.msra.mxu0 0
        %643 = vmatprep.subr.bf16.mxu0 0
        %644 = vmatpush1.bf16.msra.mxu0 0
        %645 = vmatprep.mubr.bf16.mxu0 0
        %646 = vmatmul.mubr.bf16.gmra.mrb[0].mxu0 %v605
        %v647 = vpop.f32.mrb[0].mxu0
        %v648 = vadd.f32 0.0, %v647
        %v649 = vpop.f32.mrb[0].mxu0
        %v650 = vadd.f32 0.0, %v649
        %v651 = vpop.f32.mrb[0].mxu0
        %v652 = vadd.f32 0.0, %v651
        %v653 = vpop.f32.mrb[0].mxu0
        %v654 = vadd.f32 0.0, %v653
        %655 = vmatprep.mubr.bf16.mxu0 0
        %656 = vmatmul.mubr.bf16.gmra.mrb[0].mxu0 %v608
        %v657 = vpop.f32.mrb[0].mxu0
        %v658 = vadd.f32 0.0, %v657
        %v659 = vpop.f32.mrb[0].mxu0
        %v660 = vadd.f32 0.0, %v659
        %v661 = vpop.f32.mrb[0].mxu0
        %v662 = vadd.f32 0.0, %v661
        %v663 = vpop.f32.mrb[0].mxu0
        %v664 = vadd.f32 0.0, %v663
        %665 = vmatprep.mubr.bf16.mxu0 0
        %666 = vmatmul.mubr.bf16.gmra.mrb[0].mxu0 %v611
        %v667 = vpop.f32.mrb[0].mxu0
        %v668 = vadd.f32 0.0, %v667
        %v669 = vpop.f32.mrb[0].mxu0
        %v670 = vadd.f32 0.0, %v669
        %v671 = vpop.f32.mrb[0].mxu0
        %v672 = vadd.f32 0.0, %v671
        %v673 = vpop.f32.mrb[0].mxu0
        %v674 = vadd.f32 0.0, %v673
        %675 = vdwg.mxu0
        %v676 = vmax.f32 %v648, %v662
        %v677 = vmax.f32 %v650, %v664
        %v678 = vmax.f32 %v652, %v668
        %v679 = vmax.f32 %v654, %v670
        %v680 = vmax.f32 %v658, %v672
        %v681 = vmax.f32 %v660, %v674
        %v682 = vpack.c.bf16 %v678, %v676
        %v683 = vpack.c.bf16 %v679, %v677
        %v684 = vpack.c.bf16 %v680, %v680
        %v685 = vpack.c.bf16 %v681, %v681
        %v686 = vld [vmem:[#allocation2 + $0xa8] sm:$0xff]
        %v687 = vld [vmem:[#allocation2 + $0xb0] sm:$0xff]
        %v688 = vld [vmem:[#allocation2 + $0xb8] sm:$0xff]
        %v689 = vld [vmem:[#allocation2 + $0xc0] sm:$0xff]
        %v690 = vld [vmem:[#allocation2 + $0xc8] sm:$0xff]
        %v691 = vld [vmem:[#allocation2 + $0xd0] sm:$0xff]
        %v692 = vld [vmem:[#allocation2 + $0xd8] sm:$0xff]
        %v693 = vld [vmem:[#allocation2 + $0xe0] sm:$0xff]
        %v694 = vld [vmem:[#allocation2 + $0xe8] sm:$0xff]
        %v695 = vld [vmem:[#allocation2 + $0xf0] sm:$0xff]
        %v696 = vld [vmem:[#allocation2 + $0xf8] sm:$0xff]
        %v697 = vld [vmem:[#allocation2 + $0x100] sm:$0xff]
        %v698 = vld [vmem:[#allocation2 + $0x108] sm:$0xff]
        %v699 = vld [vmem:[#allocation2 + $0x110] sm:$0xff]
        %v700 = vld [vmem:[#allocation2 + $0x118] sm:$0xff]
        %v701 = vld [vmem:[#allocation2 + $0x120] sm:$0xff]
        %v702 = vld [vmem:[#allocation2 + $0x128] sm:$0xff]
        %v703 = vld [vmem:[#allocation2 + $0x130] sm:$0xff]
        %v704 = vld [vmem:[#allocation2 + $0x138] sm:$0xff]
        %v705 = vld [vmem:[#allocation2 + $0x140] sm:$0xff]
        %v706 = vld [vmem:[#allocation2 + $0x148] sm:$0xff]
        %v707 = vld [vmem:[#allocation2 + $0x150] sm:$0xff]
        %v708 = vld [vmem:[#allocation2 + $0x158] sm:$0xff]
        %v709 = vld [vmem:[#allocation2 + $0x160] sm:$0xff]
        %v710 = vld [vmem:[#allocation2 + $0x168] sm:$0xff]
        %v711 = vld [vmem:[#allocation2 + $0x170] sm:$0xff]
        %v712 = vld [vmem:[#allocation2 + $0x178] sm:$0xff]
        %v713 = vld [vmem:[#allocation2 + $0x180] sm:$0xff]
        %v714 = vld [vmem:[#allocation2 + $0x188] sm:$0xff]
        %v715 = vld [vmem:[#allocation2 + $0x190] sm:$0xff]
        %v716 = vld [vmem:[#allocation2 + $0x198] sm:$0xff]
        %v717 = vld [vmem:[#allocation2 + $0x1a0] sm:$0xff]
        %v718 = vld [vmem:[#allocation2 + $0x1a8] sm:$0xff]
        %v719 = vld [vmem:[#allocation2 + $0x1b0] sm:$0xff]
        %v720 = vld [vmem:[#allocation2 + $0x1b8] sm:$0xff]
        %v721 = vld [vmem:[#allocation2 + $0x1c0] sm:$0xff]
        %v722 = vld [vmem:[#allocation2 + $0x1c8] sm:$0xff]
        %v723 = vld [vmem:[#allocation2 + $0x1d0] sm:$0xff]
        %v724 = vld [vmem:[#allocation2 + $0x1d8] sm:$0xff]
        %v725 = vld [vmem:[#allocation2 + $0x1e0] sm:$0xff]
        %v726 = vld [vmem:[#allocation2 + $0x1e8] sm:$0xff]
        %v727 = vld [vmem:[#allocation2 + $0x1f0] sm:$0xff]
        %v728 = vld [vmem:[#allocation2 + $0x1f8] sm:$0xff]
        %v729 = vld [vmem:[#allocation2 + $0x200] sm:$0xff]
        %v730 = vld [vmem:[#allocation2 + $0x208] sm:$0xff]
        %v731 = vld [vmem:[#allocation2 + $0x210] sm:$0xff]
        %v732 = vld [vmem:[#allocation2 + $0x218] sm:$0xff]
        %v733 = vld [vmem:[#allocation2 + $0x220] sm:$0xff]
        %v734 = vld [vmem:[#allocation2 + $0x228] sm:$0xff]
        %v735 = vld [vmem:[#allocation2 + $0x230] sm:$0xff]
        %v736 = vld [vmem:[#allocation2 + $0x238] sm:$0xff]
        %v737 = vld [vmem:[#allocation2 + $0x240] sm:$0xff]
        %v738 = vld [vmem:[#allocation2 + $0x248] sm:$0xff]
        %v739 = vld [vmem:[#allocation2 + $0x250] sm:$0xff]
        %v740 = vld [vmem:[#allocation2 + $0x258] sm:$0xff]
        %v741 = vld [vmem:[#allocation2 + $0x260] sm:$0xff]
        %v742 = vld [vmem:[#allocation2 + $0x268] sm:$0xff]
        %v743 = vld [vmem:[#allocation2 + $0x270] sm:$0xff]
        %v744 = vld [vmem:[#allocation2 + $0x278] sm:$0xff]
        %v745 = vld [vmem:[#allocation2 + $0x280] sm:$0xff]
        %v746 = vld [vmem:[#allocation2 + $0x288] sm:$0xff]
        %v747 = vld [vmem:[#allocation2 + $0x290] sm:$0xff]
        %v748 = vld [vmem:[#allocation2 + $0x298] sm:$0xff]
        %v749 = vld [vmem:[#allocation2 + $0x2a0] sm:$0xff]
        %v814 = vunpack.c.l.b16 %v686
        %v815 = vunpack.c.h.b16 %v686
        %v816 = vunpack.c.l.b16 %v687
        %v817 = vunpack.c.h.b16 %v687
        %v818 = vunpack.c.l.b16 %v688
        %v819 = vunpack.c.h.b16 %v688
        %v820 = vunpack.c.l.b16 %v689
        %v821 = vunpack.c.h.b16 %v689
        %v822 = vunpack.c.l.b16 %v690
        %v823 = vunpack.c.h.b16 %v690
        %v824 = vunpack.c.l.b16 %v691
        %v825 = vunpack.c.h.b16 %v691
        %v826 = vunpack.c.l.b16 %v692
        %v827 = vunpack.c.h.b16 %v692
        %v828 = vunpack.c.l.b16 %v693
        %v829 = vunpack.c.h.b16 %v693
        %v830 = vunpack.c.l.b16 %v694
        %v831 = vunpack.c.h.b16 %v694
        %v832 = vunpack.c.l.b16 %v695
        %v833 = vunpack.c.h.b16 %v695
        %v834 = vunpack.c.l.b16 %v696
        %v835 = vunpack.c.h.b16 %v696
        %v836 = vunpack.c.l.b16 %v697
        %v837 = vunpack.c.h.b16 %v697
        %v838 = vunpack.c.l.b16 %v698
        %v839 = vunpack.c.h.b16 %v698
        %v840 = vunpack.c.l.b16 %v699
        %v841 = vunpack.c.h.b16 %v699
        %v842 = vunpack.c.l.b16 %v700
        %v843 = vunpack.c.h.b16 %v700
        %v844 = vunpack.c.l.b16 %v701
        %v845 = vunpack.c.h.b16 %v701
        %v846 = vunpack.c.l.b16 %v702
        %v847 = vunpack.c.h.b16 %v702
        %v848 = vunpack.c.l.b16 %v703
        %v849 = vunpack.c.h.b16 %v703
        %v850 = vunpack.c.l.b16 %v704
        %v851 = vunpack.c.h.b16 %v704
        %v852 = vunpack.c.l.b16 %v705
        %v853 = vunpack.c.h.b16 %v705
        %v854 = vunpack.c.l.b16 %v706
        %v855 = vunpack.c.h.b16 %v706
        %v856 = vunpack.c.l.b16 %v707
        %v857 = vunpack.c.h.b16 %v707
        %v858 = vunpack.c.l.b16 %v708
        %v859 = vunpack.c.h.b16 %v708
        %v860 = vunpack.c.l.b16 %v709
        %v861 = vunpack.c.h.b16 %v709
        %v862 = vunpack.c.l.b16 %v710
        %v863 = vunpack.c.h.b16 %v710
        %v864 = vunpack.c.l.b16 %v711
        %v865 = vunpack.c.h.b16 %v711
        %v866 = vunpack.c.l.b16 %v712
        %v867 = vunpack.c.h.b16 %v712
        %v868 = vunpack.c.l.b16 %v713
        %v869 = vunpack.c.h.b16 %v713
        %v870 = vunpack.c.l.b16 %v714
        %v871 = vunpack.c.h.b16 %v714
        %v872 = vunpack.c.l.b16 %v715
        %v873 = vunpack.c.h.b16 %v715
        %v874 = vunpack.c.l.b16 %v716
        %v875 = vunpack.c.h.b16 %v716
        %v876 = vunpack.c.l.b16 %v717
        %v877 = vunpack.c.h.b16 %v717
        %v878 = vunpack.c.l.b16 %v718
        %v879 = vunpack.c.h.b16 %v718
        %v880 = vunpack.c.l.b16 %v719
        %v881 = vunpack.c.h.b16 %v719
        %v882 = vunpack.c.l.b16 %v720
        %v883 = vunpack.c.h.b16 %v720
        %v884 = vunpack.c.l.b16 %v721
        %v885 = vunpack.c.h.b16 %v721
        %v886 = vunpack.c.l.b16 %v722
        %v887 = vunpack.c.h.b16 %v722
        %v888 = vunpack.c.l.b16 %v723
        %v889 = vunpack.c.h.b16 %v723
        %v890 = vunpack.c.l.b16 %v724
        %v891 = vunpack.c.h.b16 %v724
        %v892 = vunpack.c.l.b16 %v725
        %v893 = vunpack.c.h.b16 %v725
        %v894 = vunpack.c.l.b16 %v726
        %v895 = vunpack.c.h.b16 %v726
        %v896 = vunpack.c.l.b16 %v727
        %v897 = vunpack.c.h.b16 %v727
        %v898 = vunpack.c.l.b16 %v728
        %v899 = vunpack.c.h.b16 %v728
        %v900 = vunpack.c.l.b16 %v729
        %v901 = vunpack.c.h.b16 %v729
        %v902 = vunpack.c.l.b16 %v730
        %v903 = vunpack.c.h.b16 %v730
        %v904 = vunpack.c.l.b16 %v731
        %v905 = vunpack.c.h.b16 %v731
        %v906 = vunpack.c.l.b16 %v732
        %v907 = vunpack.c.h.b16 %v732
        %v908 = vunpack.c.l.b16 %v733
        %v909 = vunpack.c.h.b16 %v733
        %v910 = vunpack.c.l.b16 %v734
        %v911 = vunpack.c.h.b16 %v734
        %v912 = vunpack.c.l.b16 %v735
        %v913 = vunpack.c.h.b16 %v735
        %v914 = vunpack.c.l.b16 %v736
        %v915 = vunpack.c.h.b16 %v736
        %v916 = vunpack.c.l.b16 %v737
        %v917 = vunpack.c.h.b16 %v737
        %v918 = vunpack.c.l.b16 %v738
        %v919 = vunpack.c.h.b16 %v738
        %v920 = vunpack.c.l.b16 %v739
        %v921 = vunpack.c.h.b16 %v739
        %v922 = vunpack.c.l.b16 %v740
        %v923 = vunpack.c.h.b16 %v740
        %v924 = vunpack.c.l.b16 %v741
        %v925 = vunpack.c.h.b16 %v741
        %v926 = vunpack.c.l.b16 %v742
        %v927 = vunpack.c.h.b16 %v742
        %v928 = vunpack.c.l.b16 %v743
        %v929 = vunpack.c.h.b16 %v743
        %v930 = vunpack.c.l.b16 %v744
        %v931 = vunpack.c.h.b16 %v744
        %v932 = vunpack.c.l.b16 %v745
        %v933 = vunpack.c.h.b16 %v745
        %v934 = vunpack.c.l.b16 %v746
        %v935 = vunpack.c.h.b16 %v746
        %v936 = vunpack.c.l.b16 %v747
        %v937 = vunpack.c.h.b16 %v747
        %v938 = vunpack.c.l.b16 %v748
        %v939 = vunpack.c.h.b16 %v748
        %v940 = vunpack.c.l.b16 %v749
        %v941 = vunpack.c.h.b16 %v749
        %v942 = vpack.c.b16 %v816, %v814
        %v943 = vpack.c.b16 %v817, %v815
        %v944 = vpack.c.b16 %v820, %v818
        %v945 = vpack.c.b16 %v821, %v819
        %v946 = vpack.c.b16 %v824, %v822
        %v947 = vpack.c.b16 %v825, %v823
        %v948 = vpack.c.b16 %v828, %v826
        %v949 = vpack.c.b16 %v829, %v827
        %v950 = vpack.c.b16 %v832, %v830
        %v951 = vpack.c.b16 %v833, %v831
        %v952 = vpack.c.b16 %v836, %v834
        %v953 = vpack.c.b16 %v837, %v835
        %v954 = vpack.c.b16 %v840, %v838
        %v955 = vpack.c.b16 %v841, %v839
        %v956 = vpack.c.b16 %v844, %v842
        %v957 = vpack.c.b16 %v845, %v843
        %v958 = vpack.c.b16 %v848, %v846
        %v959 = vpack.c.b16 %v849, %v847
        %v960 = vpack.c.b16 %v852, %v850
        %v961 = vpack.c.b16 %v853, %v851
        %v962 = vpack.c.b16 %v856, %v854
        %v963 = vpack.c.b16 %v857, %v855
        %v964 = vpack.c.b16 %v860, %v858
        %v965 = vpack.c.b16 %v861, %v859
        %v966 = vpack.c.b16 %v864, %v862
        %v967 = vpack.c.b16 %v865, %v863
        %v968 = vpack.c.b16 %v868, %v866
        %v969 = vpack.c.b16 %v869, %v867
        %v970 = vpack.c.b16 %v872, %v870
        %v971 = vpack.c.b16 %v873, %v871
        %v972 = vpack.c.b16 %v876, %v874
        %v973 = vpack.c.b16 %v877, %v875
        %v974 = vpack.c.b16 %v880, %v878
        %v975 = vpack.c.b16 %v881, %v879
        %v976 = vpack.c.b16 %v884, %v882
        %v977 = vpack.c.b16 %v885, %v883
        %v978 = vpack.c.b16 %v888, %v886
        %v979 = vpack.c.b16 %v889, %v887
        %v980 = vpack.c.b16 %v892, %v890
        %v981 = vpack.c.b16 %v893, %v891
        %v982 = vpack.c.b16 %v896, %v894
        %v983 = vpack.c.b16 %v897, %v895
        %v984 = vpack.c.b16 %v900, %v898
        %v985 = vpack.c.b16 %v901, %v899
        %v986 = vpack.c.b16 %v904, %v902
        %v987 = vpack.c.b16 %v905, %v903
        %v988 = vpack.c.b16 %v908, %v906
        %v989 = vpack.c.b16 %v909, %v907
        %v990 = vpack.c.b16 %v912, %v910
        %v991 = vpack.c.b16 %v913, %v911
        %v992 = vpack.c.b16 %v916, %v914
        %v993 = vpack.c.b16 %v917, %v915
        %v994 = vpack.c.b16 %v920, %v918
        %v995 = vpack.c.b16 %v921, %v919
        %v996 = vpack.c.b16 %v924, %v922
        %v997 = vpack.c.b16 %v925, %v923
        %v998 = vpack.c.b16 %v928, %v926
        %v999 = vpack.c.b16 %v929, %v927
        %v1000 = vpack.c.b16 %v932, %v930
        %v1001 = vpack.c.b16 %v933, %v931
        %v1002 = vpack.c.b16 %v936, %v934
        %v1003 = vpack.c.b16 %v937, %v935
        %v1004 = vpack.c.b16 %v940, %v938
        %v1005 = vpack.c.b16 %v941, %v939
        %1070 = vmatprep.subr.bf16.mxu0 %v943
        %1071 = vmatpush1.bf16.xpose.msra.mxu0 %v942
        %1072 = vmatprep.subr.bf16.mxu0 %v945
        %1073 = vmatpush1.bf16.xpose.msra.mxu0 %v944
        %1074 = vmatprep.subr.bf16.mxu0 %v947
        %1075 = vmatpush1.bf16.xpose.msra.mxu0 %v946
        %1076 = vmatprep.subr.bf16.mxu0 %v949
        %1077 = vmatpush1.bf16.xpose.msra.mxu0 %v948
        %1078 = vmatprep.subr.bf16.mxu0 %v951
        %1079 = vmatpush1.bf16.xpose.msra.mxu0 %v950
        %1080 = vmatprep.subr.bf16.mxu0 %v953
        %1081 = vmatpush1.bf16.xpose.msra.mxu0 %v952
        %1082 = vmatprep.subr.bf16.mxu0 %v955
        %1083 = vmatpush1.bf16.xpose.msra.mxu0 %v954
        %1084 = vmatprep.subr.bf16.mxu0 %v957
        %1085 = vmatpush1.bf16.xpose.msra.mxu0 %v956
        %1086 = vmatprep.subr.bf16.mxu0 %v959
        %1087 = vmatpush1.bf16.xpose.msra.mxu0 %v958
        %1088 = vmatprep.subr.bf16.mxu0 %v961
        %1089 = vmatpush1.bf16.xpose.msra.mxu0 %v960
        %1090 = vmatprep.subr.bf16.mxu0 %v963
        %1091 = vmatpush1.bf16.xpose.msra.mxu0 %v962
        %1092 = vmatprep.subr.bf16.mxu0 %v965
        %1093 = vmatpush1.bf16.xpose.msra.mxu0 %v964
        %1094 = vmatprep.subr.bf16.mxu0 %v967
        %1095 = vmatpush1.bf16.xpose.msra.mxu0 %v966
        %1096 = vmatprep.subr.bf16.mxu0 %v969
        %1097 = vmatpush1.bf16.xpose.msra.mxu0 %v968
        %1098 = vmatprep.subr.bf16.mxu0 %v971
        %1099 = vmatpush1.bf16.xpose.msra.mxu0 %v970
        %1100 = vmatprep.subr.bf16.mxu0 %v973
        %1101 = vmatpush1.bf16.xpose.msra.mxu0 %v972
        %1102 = vmatprep.mubr.bf16.mxu0 %v683
        %1103 = vmatmul.mubr.bf16.gmra.mrb[0].mxu0 %v682
        %v1104 = vpop.f32.mrb[0].mxu0
        %v1105 = vadd.f32 0.0, %v1104
        %v1106 = vpop.f32.mrb[0].mxu0
        %v1107 = vadd.f32 0.0, %v1106
        %v1108 = vpop.f32.mrb[0].mxu0
        %v1109 = vadd.f32 0.0, %v1108
        %v1110 = vpop.f32.mrb[0].mxu0
        %v1111 = vadd.f32 0.0, %v1110
        %1112 = vmatprep.mubr.bf16.mxu0 %v685
        %1113 = vmatmul.mubr.bf16.gmra.mrb[0].mxu0 %v684
        %v1114 = vpop.f32.mrb[0].mxu0
        %v1115 = vadd.f32 0.0, %v1114
        %v1116 = vpop.f32.mrb[0].mxu0
        %v1117 = vadd.f32 0.0, %v1116
        %v1118 = vpop.f32.mrb[0].mxu0
        %v1119 = vpop.f32.mrb[0].mxu0
        %1120 = vdwg.mxu0
        %1121 = vmatprep.subr.bf16.mxu0 %v975
        %1122 = vmatpush1.bf16.xpose.msra.mxu0 %v974
        %1123 = vmatprep.subr.bf16.mxu0 %v977
        %1124 = vmatpush1.bf16.xpose.msra.mxu0 %v976
        %1125 = vmatprep.subr.bf16.mxu0 %v979
        %1126 = vmatpush1.bf16.xpose.msra.mxu0 %v978
        %1127 = vmatprep.subr.bf16.mxu0 %v981
        %1128 = vmatpush1.bf16.xpose.msra.mxu0 %v980
        %1129 = vmatprep.subr.bf16.mxu0 %v983
        %1130 = vmatpush1.bf16.xpose.msra.mxu0 %v982
        %1131 = vmatprep.subr.bf16.mxu0 %v985
        %1132 = vmatpush1.bf16.xpose.msra.mxu0 %v984
        %1133 = vmatprep.subr.bf16.mxu0 %v987
        %1134 = vmatpush1.bf16.xpose.msra.mxu0 %v986
        %1135 = vmatprep.subr.bf16.mxu0 %v989
        %1136 = vmatpush1.bf16.xpose.msra.mxu0 %v988
        %1137 = vmatprep.subr.bf16.mxu0 %v991
        %1138 = vmatpush1.bf16.xpose.msra.mxu0 %v990
        %1139 = vmatprep.subr.bf16.mxu0 %v993
        %1140 = vmatpush1.bf16.xpose.msra.mxu0 %v992
        %1141 = vmatprep.subr.bf16.mxu0 %v995
        %1142 = vmatpush1.bf16.xpose.msra.mxu0 %v994
        %1143 = vmatprep.subr.bf16.mxu0 %v997
        %1144 = vmatpush1.bf16.xpose.msra.mxu0 %v996
        %1145 = vmatprep.subr.bf16.mxu0 %v999
        %1146 = vmatpush1.bf16.xpose.msra.mxu0 %v998
        %1147 = vmatprep.subr.bf16.mxu0 %v1001
        %1148 = vmatpush1.bf16.xpose.msra.mxu0 %v1000
        %1149 = vmatprep.subr.bf16.mxu0 %v1003
        %1150 = vmatpush1.bf16.xpose.msra.mxu0 %v1002
        %1151 = vmatprep.subr.bf16.mxu0 %v1005
        %1152 = vmatpush1.bf16.xpose.msra.mxu0 %v1004
        %1153 = vmatprep.mubr.bf16.mxu0 %v683
        %1154 = vmatmul.mubr.bf16.gmra.mrb[0].mxu0 %v682
        %v1155 = vpop.f32.mrb[0].mxu0
        %v1156 = vadd.f32 0.0, %v1155
        %v1157 = vpop.f32.mrb[0].mxu0
        %v1158 = vadd.f32 0.0, %v1157
        %v1159 = vpop.f32.mrb[0].mxu0
        %v1160 = vadd.f32 0.0, %v1159
        %v1161 = vpop.f32.mrb[0].mxu0
        %v1162 = vadd.f32 0.0, %v1161
        %1163 = vmatprep.mubr.bf16.mxu0 %v685
        %1164 = vmatmul.mubr.bf16.gmra.mrb[0].mxu0 %v684
        %v1165 = vpop.f32.mrb[0].mxu0
        %v1166 = vadd.f32 0.0, %v1165
        %v1167 = vpop.f32.mrb[0].mxu0
        %v1168 = vadd.f32 0.0, %v1167
        %v1169 = vpop.f32.mrb[0].mxu0
        %v1170 = vpop.f32.mrb[0].mxu0
        %1171 = vdwg.mxu0
        %v1172 = vmax.f32 %v1105, %v1156
        %v1173 = vmax.f32 %v1107, %v1158
        %v1174 = vmax.f32 %v1109, %v1160
        %v1175 = vmax.f32 %v1111, %v1162
        %v1176 = vmax.f32 %v1115, %v1166
        %v1177 = vmax.f32 %v1117, %v1168
        %s1178 = scalar_lea.vmem [#allocation5], 64
        %v1179 = vld [vmem:[%s1178] ss:$8 sm:$0x3]
        %v1180 = vpack.c.bf16 %v1174, %v1172
        %v1181 = vpack.c.bf16 %v1175, %v1173
        %v1182 = vld [vmem:[#allocation2 + $0x2a8] sm:$0xff]
        %v1183 = vld [vmem:[#allocation2 + $0x2b0] sm:$0xff]
        %v1184 = vld [vmem:[#allocation2 + $0x2b8] sm:$0xff]
        %v1185 = vld [vmem:[#allocation2 + $0x2c0] sm:$0xff]
        %v1186 = vld [vmem:[#allocation2 + $0x2c8] sm:$0xff]
        %v1187 = vld [vmem:[#allocation2 + $0x2d0] sm:$0xff]
        %v1188 = vld [vmem:[#allocation2 + $0x2d8] sm:$0xff]
        %v1189 = vld [vmem:[#allocation2 + $0x2e0] sm:$0xff]
        %v1190 = vld [vmem:[#allocation2 + $0x2e8] sm:$0xff]
        %v1191 = vld [vmem:[#allocation2 + $0x2f0] sm:$0xff]
        %v1192 = vld [vmem:[#allocation2 + $0x2f8] sm:$0xff]
        %v1193 = vld [vmem:[#allocation2 + $0x300] sm:$0xff]
        %v1194 = vld [vmem:[#allocation2 + $0x308] sm:$0xff]
        %v1195 = vld [vmem:[#allocation2 + $0x310] sm:$0xff]
        %v1196 = vld [vmem:[#allocation2 + $0x318] sm:$0xff]
        %v1197 = vld [vmem:[#allocation2 + $0x320] sm:$0xff]
        %v1198 = vld [vmem:[#allocation2 + $0x328] sm:$0xff]
        %v1199 = vld [vmem:[#allocation2 + $0x330] sm:$0xff]
        %v1218 = vunpack.c.l.b16 %v1182
        %v1219 = vunpack.c.h.b16 %v1182
        %v1220 = vunpack.c.l.b16 %v1183
        %v1221 = vunpack.c.h.b16 %v1183
        %v1222 = vunpack.c.l.b16 %v1184
        %v1223 = vunpack.c.h.b16 %v1184
        %v1224 = vunpack.c.l.b16 %v1185
        %v1225 = vunpack.c.h.b16 %v1185
        %v1226 = vunpack.c.l.b16 %v1186
        %v1227 = vunpack.c.h.b16 %v1186
        %v1228 = vunpack.c.l.b16 %v1187
        %v1229 = vunpack.c.h.b16 %v1187
        %v1230 = vunpack.c.l.b16 %v1188
        %v1231 = vunpack.c.h.b16 %v1188
        %v1232 = vunpack.c.l.b16 %v1189
        %v1233 = vunpack.c.h.b16 %v1189
        %v1234 = vunpack.c.l.b16 %v1190
        %v1235 = vunpack.c.h.b16 %v1190
        %v1236 = vunpack.c.l.b16 %v1191
        %v1237 = vunpack.c.h.b16 %v1191
        %v1238 = vunpack.c.l.b16 %v1192
        %v1239 = vunpack.c.h.b16 %v1192
        %v1240 = vunpack.c.l.b16 %v1193
        %v1241 = vunpack.c.h.b16 %v1193
        %v1242 = vunpack.c.l.b16 %v1194
        %v1243 = vunpack.c.h.b16 %v1194
        %v1244 = vunpack.c.l.b16 %v1195
        %v1245 = vunpack.c.h.b16 %v1195
        %v1246 = vunpack.c.l.b16 %v1196
        %v1247 = vunpack.c.h.b16 %v1196
        %v1248 = vunpack.c.l.b16 %v1197
        %v1249 = vunpack.c.h.b16 %v1197
        %v1250 = vunpack.c.l.b16 %v1198
        %v1251 = vunpack.c.h.b16 %v1198
        %v1252 = vunpack.c.l.b16 %v1199
        %v1253 = vunpack.c.h.b16 %v1199
        %v1254 = vpack.c.b16 %v1220, %v1218
        %v1255 = vpack.c.b16 %v1221, %v1219
        %v1256 = vpack.c.b16 %v1224, %v1222
        %v1257 = vpack.c.b16 %v1225, %v1223
        %v1258 = vpack.c.b16 %v1228, %v1226
        %v1259 = vpack.c.b16 %v1229, %v1227
        %v1260 = vpack.c.b16 %v1232, %v1230
        %v1261 = vpack.c.b16 %v1233, %v1231
        %v1262 = vpack.c.b16 %v1236, %v1234
        %v1263 = vpack.c.b16 %v1237, %v1235
        %v1264 = vpack.c.b16 %v1240, %v1238
        %v1265 = vpack.c.b16 %v1241, %v1239
        %v1266 = vpack.c.b16 %v1244, %v1242
        %v1267 = vpack.c.b16 %v1245, %v1243
        %v1268 = vpack.c.b16 %v1248, %v1246
        %v1269 = vpack.c.b16 %v1249, %v1247
        %v1270 = vpack.c.b16 %v1252, %v1250
        %v1271 = vpack.c.b16 %v1253, %v1251
        %vm1290 = vcmask 130048
        %v1292 = vsel %vm1290, %v1181, 0
        %1294 = vmatprep.subr.bf16.mxu0 %v1255
        %1295 = vmatpush1.bf16.msra.mxu0 %v1254
        %1296 = vmatprep.subr.bf16.mxu0 %v1257
        %1297 = vmatpush1.bf16.msra.mxu0 %v1256
        %1298 = vmatprep.subr.bf16.mxu0 %v1259
        %1299 = vmatpush1.bf16.msra.mxu0 %v1258
        %1300 = vmatprep.subr.bf16.mxu0 %v1261
        %1301 = vmatpush1.bf16.msra.mxu0 %v1260
        %1302 = vmatprep.subr.bf16.mxu0 %v1263
        %1303 = vmatpush1.bf16.msra.mxu0 %v1262
        %1304 = vmatprep.subr.bf16.mxu0 %v1265
        %1305 = vmatpush1.bf16.msra.mxu0 %v1264
        %1306 = vmatprep.subr.bf16.mxu0 %v1267
        %1307 = vmatpush1.bf16.msra.mxu0 %v1266
        %1308 = vmatprep.subr.bf16.mxu0 %v1269
        %1309 = vmatpush1.bf16.msra.mxu0 %v1268
        %1310 = vmatprep.subr.bf16.mxu0 %v1271
        %1311 = vmatpush1.bf16.msra.mxu0 %v1270
        %1312 = vmatprep.subr.bf16.mxu0 0
        %1313 = vmatpush1.bf16.msra.mxu0 0
        %1314 = vmatprep.subr.bf16.mxu0 0
        %1315 = vmatpush1.bf16.msra.mxu0 0
        %1316 = vmatprep.subr.bf16.mxu0 0
        %1317 = vmatpush1.bf16.msra.mxu0 0
        %1318 = vmatprep.subr.bf16.mxu0 0
        %1319 = vmatpush1.bf16.msra.mxu0 0
        %1320 = vmatprep.subr.bf16.mxu0 0
        %1321 = vmatpush1.bf16.msra.mxu0 0
        %1322 = vmatprep.subr.bf16.mxu0 0
        %1323 = vmatpush1.bf16.msra.mxu0 0
        %1324 = vmatprep.subr.bf16.mxu0 0
        %1325 = vmatpush1.bf16.msra.mxu0 0
        %1326 = vmatprep.mubr.bf16.mxu0 %v1292
        %1327 = vmatmul.mubr.bf16.gmra.mrb[0].mxu0 %v1180
        %v1328 = vpop.f32.mrb[0].mxu0
        %v1329 = vadd.f32 0.0, %v1328
        %v1330 = vpop.f32.mrb[0].mxu0
        %v1331 = vadd.f32 0.0, %v1330
        %v1332 = vpop.f32.mrb[0].mxu0
        %v1333 = vadd.f32 0.0, %v1332
        %v1334 = vpop.f32.mrb[0].mxu0
        %v1335 = vadd.f32 0.0, %v1334
        %1336 = vdwg.mxu0
        %v1338 = vlaneseq
        %v1339 = vshrl.u32 %v1338, 7
        %v1340 = vsub.s32 0, %v1339
        %v1341 = vrot.slane %v1179, %v1340
        %v1342 = vlaneseq
        %v1343 = vshrl.u32 %v1342, 7
        %v1344 = vsub.s32 1, %v1343
        %v1345 = vrot.slane %v1179, %v1344
        %v1348 = vadd.f32 %v1341, %v1329
        %v1349 = vadd.f32 %v1345, %v1331
        %v1350 = vadd.f32 %v1341, %v1333
        %v1351 = vadd.f32 %v1345, %v1335
        %v1352 = vpack.c.bf16 %v1176, %v1176
        %v1353 = vpack.c.bf16 %v1177, %v1177
        %v1354 = vld [vmem:[#allocation2 + $0x338] sm:$0xff]
        %v1355 = vld [vmem:[#allocation2 + $0x340] sm:$0xff]
        %v1356 = vld [vmem:[#allocation2 + $0x348] sm:$0xff]
        %v1357 = vld [vmem:[#allocation2 + $0x350] sm:$0xff]
        %v1358 = vld [vmem:[#allocation2 + $0x358] sm:$0xff]
        %v1359 = vld [vmem:[#allocation2 + $0x360] sm:$0xff]
        %v1360 = vld [vmem:[#allocation2 + $0x368] sm:$0xff]
        %v1361 = vld [vmem:[#allocation2 + $0x370] sm:$0xff]
        %v1362 = vld [vmem:[#allocation2 + $0x378] sm:$0xff]
        %v1363 = vld [vmem:[#allocation2 + $0x380] sm:$0xff]
        %v1364 = vld [vmem:[#allocation2 + $0x388] sm:$0xff]
        %v1365 = vld [vmem:[#allocation2 + $0x390] sm:$0xff]
        %v1366 = vld [vmem:[#allocation2 + $0x398] sm:$0xff]
        %v1367 = vld [vmem:[#allocation2 + $0x3a0] sm:$0xff]
        %v1368 = vld [vmem:[#allocation2 + $0x3a8] sm:$0xff]
        %v1369 = vld [vmem:[#allocation2 + $0x3b0] sm:$0xff]
        %v1370 = vld [vmem:[#allocation2 + $0x3b8] sm:$0xff]
        %v1371 = vld [vmem:[#allocation2 + $0x3c0] sm:$0xff]
        %v1373 = vshrl.u32 %v1180, 16
        %v1375 = vshll.u32 %v1180, 16
        %v1377 = vrot.slane %v1375, 1
        %v1378 = vor.u32 %v1373, %v1377
        %v1380 = vshll.u32 %v1352, 16
        %v1382 = vrot.slane %v1380, 1
        %v1383 = vsel %vm325, %v1378, %v1382
        %v1384 = vshrl.u32 %v1181, 16
        %v1386 = vshll.u32 %v1181, 16
        %v1388 = vrot.slane %v1386, 1
        %v1389 = vor.u32 %v1384, %v1388
        %v1391 = vshll.u32 %v1353, 16
        %v1393 = vrot.slane %v1391, 1
        %v1394 = vsel %vm325, %v1389, %v1393
        %v1414 = vunpack.c.l.b16 %v1354
        %v1415 = vunpack.c.h.b16 %v1354
        %v1416 = vunpack.c.l.b16 %v1355
        %v1417 = vunpack.c.h.b16 %v1355
        %v1418 = vunpack.c.l.b16 %v1356
        %v1419 = vunpack.c.h.b16 %v1356
        %v1420 = vunpack.c.l.b16 %v1357
        %v1421 = vunpack.c.h.b16 %v1357
        %v1422 = vunpack.c.l.b16 %v1358
        %v1423 = vunpack.c.h.b16 %v1358
        %v1424 = vunpack.c.l.b16 %v1359
        %v1425 = vunpack.c.h.b16 %v1359
        %v1426 = vunpack.c.l.b16 %v1360
        %v1427 = vunpack.c.h.b16 %v1360
        %v1428 = vunpack.c.l.b16 %v1361
        %v1429 = vunpack.c.h.b16 %v1361
        %v1430 = vunpack.c.l.b16 %v1362
        %v1431 = vunpack.c.h.b16 %v1362
        %v1432 = vunpack.c.l.b16 %v1363
        %v1433 = vunpack.c.h.b16 %v1363
        %v1434 = vunpack.c.l.b16 %v1364
        %v1435 = vunpack.c.h.b16 %v1364
        %v1436 = vunpack.c.l.b16 %v1365
        %v1437 = vunpack.c.h.b16 %v1365
        %v1438 = vunpack.c.l.b16 %v1366
        %v1439 = vunpack.c.h.b16 %v1366
        %v1440 = vunpack.c.l.b16 %v1367
        %v1441 = vunpack.c.h.b16 %v1367
        %v1442 = vunpack.c.l.b16 %v1368
        %v1443 = vunpack.c.h.b16 %v1368
        %v1444 = vunpack.c.l.b16 %v1369
        %v1445 = vunpack.c.h.b16 %v1369
        %v1446 = vunpack.c.l.b16 %v1370
        %v1447 = vunpack.c.h.b16 %v1370
        %v1448 = vunpack.c.l.b16 %v1371
        %v1449 = vunpack.c.h.b16 %v1371
        %v1450 = vpack.c.b16 %v1416, %v1414
        %v1451 = vpack.c.b16 %v1417, %v1415
        %v1452 = vpack.c.b16 %v1420, %v1418
        %v1453 = vpack.c.b16 %v1421, %v1419
        %v1454 = vpack.c.b16 %v1424, %v1422
        %v1455 = vpack.c.b16 %v1425, %v1423
        %v1456 = vpack.c.b16 %v1428, %v1426
        %v1457 = vpack.c.b16 %v1429, %v1427
        %v1458 = vpack.c.b16 %v1432, %v1430
        %v1459 = vpack.c.b16 %v1433, %v1431
        %v1460 = vpack.c.b16 %v1436, %v1434
        %v1461 = vpack.c.b16 %v1437, %v1435
        %v1462 = vpack.c.b16 %v1440, %v1438
        %v1463 = vpack.c.b16 %v1441, %v1439
        %v1464 = vpack.c.b16 %v1444, %v1442
        %v1465 = vpack.c.b16 %v1445, %v1443
        %v1466 = vpack.c.b16 %v1448, %v1446
        %v1467 = vpack.c.b16 %v1449, %v1447
        %v1487 = vsel %vm1290, %v1394, 0
        %1489 = vmatprep.subr.bf16.mxu0 %v1451
        %1490 = vmatpush1.bf16.msra.mxu0 %v1450
        %1491 = vmatprep.subr.bf16.mxu0 %v1453
        %1492 = vmatpush1.bf16.msra.mxu0 %v1452
        %1493 = vmatprep.subr.bf16.mxu0 %v1455
        %1494 = vmatpush1.bf16.msra.mxu0 %v1454
        %1495 = vmatprep.subr.bf16.mxu0 %v1457
        %1496 = vmatpush1.bf16.msra.mxu0 %v1456
        %1497 = vmatprep.subr.bf16.mxu0 %v1459
        %1498 = vmatpush1.bf16.msra.mxu0 %v1458
        %1499 = vmatprep.subr.bf16.mxu0 %v1461
        %1500 = vmatpush1.bf16.msra.mxu0 %v1460
        %1501 = vmatprep.subr.bf16.mxu0 %v1463
        %1502 = vmatpush1.bf16.msra.mxu0 %v1462
        %1503 = vmatprep.subr.bf16.mxu0 %v1465
        %1504 = vmatpush1.bf16.msra.mxu0 %v1464
        %1505 = vmatprep.subr.bf16.mxu0 %v1467
        %1506 = vmatpush1.bf16.msra.mxu0 %v1466
        %1507 = vmatprep.subr.bf16.mxu0 0
        %1508 = vmatpush1.bf16.msra.mxu0 0
        %1509 = vmatprep.subr.bf16.mxu0 0
        %1510 = vmatpush1.bf16.msra.mxu0 0
        %1511 = vmatprep.subr.bf16.mxu0 0
        %1512 = vmatpush1.bf16.msra.mxu0 0
        %1513 = vmatprep.subr.bf16.mxu0 0
        %1514 = vmatpush1.bf16.msra.mxu0 0
        %1515 = vmatprep.subr.bf16.mxu0 0
        %1516 = vmatpush1.bf16.msra.mxu0 0
        %1517 = vmatprep.subr.bf16.mxu0 0
        %1518 = vmatpush1.bf16.msra.mxu0 0
        %1519 = vmatprep.subr.bf16.mxu0 0
        %1520 = vmatpush1.bf16.msra.mxu0 0
        %1521 = vmatprep.mubr.bf16.mxu0 %v1487
        %1522 = vmatmul.mubr.bf16.gmra.mrb[0].mxu0 %v1383
        %v1523 = vpop.f32.mrb[0].mxu0
        %v1524 = vadd.f32 0.0, %v1523
        %v1525 = vpop.f32.mrb[0].mxu0
        %v1526 = vadd.f32 0.0, %v1525
        %v1527 = vpop.f32.mrb[0].mxu0
        %v1528 = vadd.f32 0.0, %v1527
        %v1529 = vpop.f32.mrb[0].mxu0
        %v1530 = vadd.f32 0.0, %v1529
        %1531 = vdwg.mxu0
        %v1532 = vadd.f32 %v1348, %v1524
        %v1533 = vadd.f32 %v1349, %v1526
        %v1534 = vadd.f32 %v1350, %v1528
        %v1535 = vadd.f32 %v1351, %v1530
        %v1536 = vld [vmem:[#allocation2 + $0x3c8] sm:$0xff]
        %v1537 = vld [vmem:[#allocation2 + $0x3d0] sm:$0xff]
        %v1538 = vld [vmem:[#allocation2 + $0x3d8] sm:$0xff]
        %v1539 = vld [vmem:[#allocation2 + $0x3e0] sm:$0xff]
        %v1540 = vld [vmem:[#allocation2 + $0x3e8] sm:$0xff]
        %v1541 = vld [vmem:[#allocation2 + $0x3f0] sm:$0xff]
        %v1542 = vld [vmem:[#allocation2 + $0x3f8] sm:$0xff]
        %v1543 = vld [vmem:[#allocation2 + $0x400] sm:$0xff]
        %v1544 = vld [vmem:[#allocation2 + $0x408] sm:$0xff]
        %v1545 = vld [vmem:[#allocation2 + $0x410] sm:$0xff]
        %v1546 = vld [vmem:[#allocation2 + $0x418] sm:$0xff]
        %v1547 = vld [vmem:[#allocation2 + $0x420] sm:$0xff]
        %v1548 = vld [vmem:[#allocation2 + $0x428] sm:$0xff]
        %v1549 = vld [vmem:[#allocation2 + $0x430] sm:$0xff]
        %v1550 = vld [vmem:[#allocation2 + $0x438] sm:$0xff]
        %v1551 = vld [vmem:[#allocation2 + $0x440] sm:$0xff]
        %v1552 = vld [vmem:[#allocation2 + $0x448] sm:$0xff]
        %v1553 = vld [vmem:[#allocation2 + $0x450] sm:$0xff]
        %v1558 = vrot.slane %v1180, 1
        %v1559 = vrot.slane %v1352, 1
        %v1560 = vsel %vm450, %v1558, %v1559
        %v1561 = vrot.slane %v1181, 1
        %v1562 = vrot.slane %v1353, 1
        %v1563 = vsel %vm450, %v1561, %v1562
        %v1583 = vunpack.c.l.b16 %v1536
        %v1584 = vunpack.c.h.b16 %v1536
        %v1585 = vunpack.c.l.b16 %v1537
        %v1586 = vunpack.c.h.b16 %v1537
        %v1587 = vunpack.c.l.b16 %v1538
        %v1588 = vunpack.c.h.b16 %v1538
        %v1589 = vunpack.c.l.b16 %v1539
        %v1590 = vunpack.c.h.b16 %v1539
        %v1591 = vunpack.c.l.b16 %v1540
        %v1592 = vunpack.c.h.b16 %v1540
        %v1593 = vunpack.c.l.b16 %v1541
        %v1594 = vunpack.c.h.b16 %v1541
        %v1595 = vunpack.c.l.b16 %v1542
        %v1596 = vunpack.c.h.b16 %v1542
        %v1597 = vunpack.c.l.b16 %v1543
        %v1598 = vunpack.c.h.b16 %v1543
        %v1599 = vunpack.c.l.b16 %v1544
        %v1600 = vunpack.c.h.b16 %v1544
        %v1601 = vunpack.c.l.b16 %v1545
        %v1602 = vunpack.c.h.b16 %v1545
        %v1603 = vunpack.c.l.b16 %v1546
        %v1604 = vunpack.c.h.b16 %v1546
        %v1605 = vunpack.c.l.b16 %v1547
        %v1606 = vunpack.c.h.b16 %v1547
        %v1607 = vunpack.c.l.b16 %v1548
        %v1608 = vunpack.c.h.b16 %v1548
        %v1609 = vunpack.c.l.b16 %v1549
        %v1610 = vunpack.c.h.b16 %v1549
        %v1611 = vunpack.c.l.b16 %v1550
        %v1612 = vunpack.c.h.b16 %v1550
        %v1613 = vunpack.c.l.b16 %v1551
        %v1614 = vunpack.c.h.b16 %v1551
        %v1615 = vunpack.c.l.b16 %v1552
        %v1616 = vunpack.c.h.b16 %v1552
        %v1617 = vunpack.c.l.b16 %v1553
        %v1618 = vunpack.c.h.b16 %v1553
        %v1619 = vpack.c.b16 %v1585, %v1583
        %v1620 = vpack.c.b16 %v1586, %v1584
        %v1621 = vpack.c.b16 %v1589, %v1587
        %v1622 = vpack.c.b16 %v1590, %v1588
        %v1623 = vpack.c.b16 %v1593, %v1591
        %v1624 = vpack.c.b16 %v1594, %v1592
        %v1625 = vpack.c.b16 %v1597, %v1595
        %v1626 = vpack.c.b16 %v1598, %v1596
        %v1627 = vpack.c.b16 %v1601, %v1599
        %v1628 = vpack.c.b16 %v1602, %v1600
        %v1629 = vpack.c.b16 %v1605, %v1603
        %v1630 = vpack.c.b16 %v1606, %v1604
        %v1631 = vpack.c.b16 %v1609, %v1607
        %v1632 = vpack.c.b16 %v1610, %v1608
        %v1633 = vpack.c.b16 %v1613, %v1611
        %v1634 = vpack.c.b16 %v1614, %v1612
        %v1635 = vpack.c.b16 %v1617, %v1615
        %v1636 = vpack.c.b16 %v1618, %v1616
        %v1656 = vsel %vm1290, %v1563, 0
        %1658 = vmatprep.subr.bf16.mxu0 %v1620
        %1659 = vmatpush1.bf16.msra.mxu0 %v1619
        %1660 = vmatprep.subr.bf16.mxu0 %v1622
        %1661 = vmatpush1.bf16.msra.mxu0 %v1621
        %1662 = vmatprep.subr.bf16.mxu0 %v1624
        %1663 = vmatpush1.bf16.msra.mxu0 %v1623
        %1664 = vmatprep.subr.bf16.mxu0 %v1626
        %1665 = vmatpush1.bf16.msra.mxu0 %v1625
        %1666 = vmatprep.subr.bf16.mxu0 %v1628
        %1667 = vmatpush1.bf16.msra.mxu0 %v1627
        %1668 = vmatprep.subr.bf16.mxu0 %v1630
        %1669 = vmatpush1.bf16.msra.mxu0 %v1629
        %1670 = vmatprep.subr.bf16.mxu0 %v1632
        %1671 = vmatpush1.bf16.msra.mxu0 %v1631
        %1672 = vmatprep.subr.bf16.mxu0 %v1634
        %1673 = vmatpush1.bf16.msra.mxu0 %v1633
        %1674 = vmatprep.subr.bf16.mxu0 %v1636
        %1675 = vmatpush1.bf16.msra.mxu0 %v1635
        %1676 = vmatprep.subr.bf16.mxu0 0
        %1677 = vmatpush1.bf16.msra.mxu0 0
        %1678 = vmatprep.subr.bf16.mxu0 0
        %1679 = vmatpush1.bf16.msra.mxu0 0
        %1680 = vmatprep.subr.bf16.mxu0 0
        %1681 = vmatpush1.bf16.msra.mxu0 0
        %1682 = vmatprep.subr.bf16.mxu0 0
        %1683 = vmatpush1.bf16.msra.mxu0 0
        %1684 = vmatprep.subr.bf16.mxu0 0
        %1685 = vmatpush1.bf16.msra.mxu0 0
        %1686 = vmatprep.subr.bf16.mxu0 0
        %1687 = vmatpush1.bf16.msra.mxu0 0
        %1688 = vmatprep.subr.bf16.mxu0 0
        %1689 = vmatpush1.bf16.msra.mxu0 0
        %1690 = vmatprep.mubr.bf16.mxu0 %v1656
        %1691 = vmatmul.mubr.bf16.gmra.mrb[0].mxu0 %v1560
        %v1692 = vpop.f32.mrb[0].mxu0
        %v1693 = vadd.f32 0.0, %v1692
        %v1694 = vpop.f32.mrb[0].mxu0
        %v1695 = vadd.f32 0.0, %v1694
        %v1696 = vpop.f32.mrb[0].mxu0
        %v1697 = vadd.f32 0.0, %v1696
        %v1698 = vpop.f32.mrb[0].mxu0
        %v1699 = vadd.f32 0.0, %v1698
        %1700 = vdwg.mxu0
        %v1701 = vadd.f32 %v1532, %v1693
        %v1702 = vadd.f32 %v1533, %v1695
        %v1703 = vadd.f32 %v1534, %v1697
        %v1704 = vadd.f32 %v1535, %v1699
        %vm1705 = vcmp.ge.f32.partialorder %v1701, 0.0
        %vm1706 = vcmp.ge.f32.partialorder %v1702, 0.0
        %vm1707 = vcmp.ge.f32.partialorder %v1703, 0.0
        %vm1708 = vcmp.ge.f32.partialorder %v1704, 0.0
        %v1709 = vmul.f32 %v1701, 0.01
        %v1710 = vmul.f32 %v1702, 0.01
        %v1711 = vmul.f32 %v1703, 0.01
        %v1712 = vmul.f32 %v1704, 0.01
        %v1713 = vsel %vm1705, %v1701, %v1709
        %v1714 = vsel %vm1706, %v1702, %v1710
        %v1715 = vsel %vm1707, %v1703, %v1711
        %v1716 = vsel %vm1708, %v1704, %v1712
        %v1717 = vld [vmem:[#allocation2 + $0x458] sm:$0xf]
        %v1718 = vld [vmem:[#allocation2 + $0x460] sm:$0xf]
        %v1719 = vld [vmem:[#allocation2 + $0x468] sm:$0xf]
        %v1720 = vld [vmem:[#allocation2 + $0x470] sm:$0xf]
        %v1721 = vpack.c.bf16 %v1715, %v1713
        %v1722 = vpack.c.bf16 %v1716, %v1714
        %v1727 = vunpack.c.l.b16 %v1717
        %v1728 = vunpack.c.l.b16 %v1718
        %v1729 = vunpack.c.l.b16 %v1719
        %v1730 = vunpack.c.l.b16 %v1720
        %v1731 = vpack.c.b16 %v1728, %v1727
        %v1732 = vpack.c.b16 %v1730, %v1729
        %v1734 = vsel %vm1290, %v1731, 0
        %v1737 = vsel %vm1290, %v1732, 0
        %1739 = vmatprep.subr.bf16.mxu0 %v1722
        %1740 = vmatpush1.bf16.msra.mxu0 %v1721
        %1741 = vmatprep.subr.bf16.mxu0 0
        %1742 = vmatpush1.bf16.msra.mxu0 0
        %1743 = vmatprep.subr.bf16.mxu0 0
        %1744 = vmatpush1.bf16.msra.mxu0 0
        %1745 = vmatprep.subr.bf16.mxu0 0
        %1746 = vmatpush1.bf16.msra.mxu0 0
        %1747 = vmatprep.subr.bf16.mxu0 0
        %1748 = vmatpush1.bf16.msra.mxu0 0
        %1749 = vmatprep.subr.bf16.mxu0 0
        %1750 = vmatpush1.bf16.msra.mxu0 0
        %1751 = vmatprep.subr.bf16.mxu0 0
        %1752 = vmatpush1.bf16.msra.mxu0 0
        %1753 = vmatprep.subr.bf16.mxu0 0
        %1754 = vmatpush1.bf16.msra.mxu0 0
        %1755 = vmatprep.subr.bf16.mxu0 0
        %1756 = vmatpush1.bf16.msra.mxu0 0
        %1757 = vmatprep.subr.bf16.mxu0 0
        %1758 = vmatpush1.bf16.msra.mxu0 0
        %1759 = vmatprep.subr.bf16.mxu0 0
        %1760 = vmatpush1.bf16.msra.mxu0 0
        %1761 = vmatprep.subr.bf16.mxu0 0
        %1762 = vmatpush1.bf16.msra.mxu0 0
        %1763 = vmatprep.subr.bf16.mxu0 0
        %1764 = vmatpush1.bf16.msra.mxu0 0
        %1765 = vmatprep.subr.bf16.mxu0 0
        %1766 = vmatpush1.bf16.msra.mxu0 0
        %1767 = vmatprep.subr.bf16.mxu0 0
        %1768 = vmatpush1.bf16.msra.mxu0 0
        %1769 = vmatprep.subr.bf16.mxu0 0
        %1770 = vmatpush1.bf16.msra.mxu0 0
        %1771 = vmatprep.mubr.bf16.mxu0 0
        %1772 = vmatmul.mubr.bf16.gmra.mrb[0].mxu0 %v1734
        %v1773 = vpop.f32.mrb[0].mxu0
        %v1774 = vadd.f32 0.0, %v1773
        %v1775 = vpop.f32.mrb[0].mxu0
        %v1776 = vadd.f32 0.0, %v1775
        %v1777 = vpop.f32.mrb[0].mxu0
        %v1778 = vadd.f32 0.0, %v1777
        %v1779 = vpop.f32.mrb[0].mxu0
        %v1780 = vadd.f32 0.0, %v1779
        %1781 = vmatprep.mubr.bf16.mxu0 0
        %1782 = vmatmul.mubr.bf16.gmra.mrb[0].mxu0 %v1737
        %v1783 = vpop.f32.mrb[0].mxu0
        %v1784 = vadd.f32 0.0, %v1783
        %v1785 = vpop.f32.mrb[0].mxu0
        %v1786 = vadd.f32 0.0, %v1785
        %v1787 = vpop.f32.mrb[0].mxu0
        %v1788 = vadd.f32 0.0, %v1787
        %v1789 = vpop.f32.mrb[0].mxu0
        %v1790 = vadd.f32 0.0, %v1789
        %1791 = vdwg.mxu0
        %v1792 = vmax.f32 %v1774, %v1784
        %v1793 = vmax.f32 %v1776, %v1786
        %v1794 = vmax.f32 %v1778, %v1788
        %v1795 = vmax.f32 %v1780, %v1790
        %v1796 = vpack.c.bf16 %v1794, %v1792
        %v1797 = vpack.c.bf16 %v1795, %v1793
        %v1798 = vld [vmem:[#allocation2 + $0x478] sm:$0xff]
        %v1799 = vld [vmem:[#allocation2 + $0x480] sm:$0xff]
        %v1800 = vld [vmem:[#allocation2 + $0x488] sm:$0xff]
        %v1801 = vld [vmem:[#allocation2 + $0x490] sm:$0xff]
        %v1802 = vld [vmem:[#allocation2 + $0x498] sm:$0xff]
        %v1803 = vld [vmem:[#allocation2 + $0x4a0] sm:$0xff]
        %v1804 = vld [vmem:[#allocation2 + $0x4a8] sm:$0xff]
        %v1805 = vld [vmem:[#allocation2 + $0x4b0] sm:$0xff]
        %v1806 = vld [vmem:[#allocation2 + $0x4b8] sm:$0xff]
        %v1807 = vld [vmem:[#allocation2 + $0x4c0] sm:$0xff]
        %v1808 = vld [vmem:[#allocation2 + $0x4c8] sm:$0xff]
        %v1809 = vld [vmem:[#allocation2 + $0x4d0] sm:$0xff]
        %v1810 = vld [vmem:[#allocation2 + $0x4d8] sm:$0xff]
        %v1811 = vld [vmem:[#allocation2 + $0x4e0] sm:$0xff]
        %v1812 = vld [vmem:[#allocation2 + $0x4e8] sm:$0xff]
        %v1813 = vld [vmem:[#allocation2 + $0x4f0] sm:$0xff]
        %v1814 = vld [vmem:[#allocation2 + $0x4f8] sm:$0xff]
        %v1815 = vld [vmem:[#allocation2 + $0x500] sm:$0xff]
        %v1816 = vld [vmem:[#allocation2 + $0x508] sm:$0xff]
        %v1817 = vld [vmem:[#allocation2 + $0x510] sm:$0xff]
        %v1818 = vld [vmem:[#allocation2 + $0x518] sm:$0xff]
        %v1819 = vld [vmem:[#allocation2 + $0x520] sm:$0xff]
        %v1820 = vld [vmem:[#allocation2 + $0x528] sm:$0xff]
        %v1821 = vld [vmem:[#allocation2 + $0x530] sm:$0xff]
        %v1822 = vld [vmem:[#allocation2 + $0x538] sm:$0xff]
        %v1823 = vld [vmem:[#allocation2 + $0x540] sm:$0xff]
        %v1824 = vld [vmem:[#allocation2 + $0x548] sm:$0xff]
        %v1825 = vld [vmem:[#allocation2 + $0x550] sm:$0xff]
        %v1826 = vld [vmem:[#allocation2 + $0x558] sm:$0xff]
        %v1827 = vld [vmem:[#allocation2 + $0x560] sm:$0xff]
        %v1828 = vld [vmem:[#allocation2 + $0x568] sm:$0xff]
        %v1829 = vld [vmem:[#allocation2 + $0x570] sm:$0xff]
        %v1830 = vld [vmem:[#allocation2 + $0x578] sm:$0xff]
        %v1831 = vld [vmem:[#allocation2 + $0x580] sm:$0xff]
        %v1832 = vld [vmem:[#allocation2 + $0x588] sm:$0xff]
        %v1833 = vld [vmem:[#allocation2 + $0x590] sm:$0xff]
        %v1834 = vld [vmem:[#allocation2 + $0x598] sm:$0xff]
        %v1835 = vld [vmem:[#allocation2 + $0x5a0] sm:$0xff]
        %v1836 = vld [vmem:[#allocation2 + $0x5a8] sm:$0xff]
        %v1837 = vld [vmem:[#allocation2 + $0x5b0] sm:$0xff]
        %v1838 = vld [vmem:[#allocation2 + $0x5b8] sm:$0xff]
        %v1839 = vld [vmem:[#allocation2 + $0x5c0] sm:$0xff]
        %v1840 = vld [vmem:[#allocation2 + $0x5c8] sm:$0xff]
        %v1841 = vld [vmem:[#allocation2 + $0x5d0] sm:$0xff]
        %v1842 = vld [vmem:[#allocation2 + $0x5d8] sm:$0xff]
        %v1843 = vld [vmem:[#allocation2 + $0x5e0] sm:$0xff]
        %v1844 = vld [vmem:[#allocation2 + $0x5e8] sm:$0xff]
        %v1845 = vld [vmem:[#allocation2 + $0x5f0] sm:$0xff]
        %v1846 = vld [vmem:[#allocation2 + $0x5f8] sm:$0xff]
        %v1847 = vld [vmem:[#allocation2 + $0x600] sm:$0xff]
        %v1848 = vld [vmem:[#allocation2 + $0x608] sm:$0xff]
        %v1849 = vld [vmem:[#allocation2 + $0x610] sm:$0xff]
        %v1850 = vld [vmem:[#allocation2 + $0x618] sm:$0xff]
        %v1851 = vld [vmem:[#allocation2 + $0x620] sm:$0xff]
        %v1852 = vld [vmem:[#allocation2 + $0x628] sm:$0xff]
        %v1853 = vld [vmem:[#allocation2 + $0x630] sm:$0xff]
        %v1854 = vld [vmem:[#allocation2 + $0x638] sm:$0xff]
        %v1855 = vld [vmem:[#allocation2 + $0x640] sm:$0xff]
        %v1856 = vld [vmem:[#allocation2 + $0x648] sm:$0xff]
        %v1857 = vld [vmem:[#allocation2 + $0x650] sm:$0xff]
        %v1858 = vld [vmem:[#allocation2 + $0x658] sm:$0xff]
        %v1859 = vld [vmem:[#allocation2 + $0x660] sm:$0xff]
        %v1860 = vld [vmem:[#allocation2 + $0x668] sm:$0xff]
        %v1861 = vld [vmem:[#allocation2 + $0x670] sm:$0xff]
        %v1926 = vunpack.c.l.b16 %v1798
        %v1927 = vunpack.c.h.b16 %v1798
        %v1928 = vunpack.c.l.b16 %v1799
        %v1929 = vunpack.c.h.b16 %v1799
        %v1930 = vunpack.c.l.b16 %v1800
        %v1931 = vunpack.c.h.b16 %v1800
        %v1932 = vunpack.c.l.b16 %v1801
        %v1933 = vunpack.c.h.b16 %v1801
        %v1934 = vunpack.c.l.b16 %v1802
        %v1935 = vunpack.c.h.b16 %v1802
        %v1936 = vunpack.c.l.b16 %v1803
        %v1937 = vunpack.c.h.b16 %v1803
        %v1938 = vunpack.c.l.b16 %v1804
        %v1939 = vunpack.c.h.b16 %v1804
        %v1940 = vunpack.c.l.b16 %v1805
        %v1941 = vunpack.c.h.b16 %v1805
        %v1942 = vunpack.c.l.b16 %v1806
        %v1943 = vunpack.c.h.b16 %v1806
        %v1944 = vunpack.c.l.b16 %v1807
        %v1945 = vunpack.c.h.b16 %v1807
        %v1946 = vunpack.c.l.b16 %v1808
        %v1947 = vunpack.c.h.b16 %v1808
        %v1948 = vunpack.c.l.b16 %v1809
        %v1949 = vunpack.c.h.b16 %v1809
        %v1950 = vunpack.c.l.b16 %v1810
        %v1951 = vunpack.c.h.b16 %v1810
        %v1952 = vunpack.c.l.b16 %v1811
        %v1953 = vunpack.c.h.b16 %v1811
        %v1954 = vunpack.c.l.b16 %v1812
        %v1955 = vunpack.c.h.b16 %v1812
        %v1956 = vunpack.c.l.b16 %v1813
        %v1957 = vunpack.c.h.b16 %v1813
        %v1958 = vunpack.c.l.b16 %v1814
        %v1959 = vunpack.c.h.b16 %v1814
        %v1960 = vunpack.c.l.b16 %v1815
        %v1961 = vunpack.c.h.b16 %v1815
        %v1962 = vunpack.c.l.b16 %v1816
        %v1963 = vunpack.c.h.b16 %v1816
        %v1964 = vunpack.c.l.b16 %v1817
        %v1965 = vunpack.c.h.b16 %v1817
        %v1966 = vunpack.c.l.b16 %v1818
        %v1967 = vunpack.c.h.b16 %v1818
        %v1968 = vunpack.c.l.b16 %v1819
        %v1969 = vunpack.c.h.b16 %v1819
        %v1970 = vunpack.c.l.b16 %v1820
        %v1971 = vunpack.c.h.b16 %v1820
        %v1972 = vunpack.c.l.b16 %v1821
        %v1973 = vunpack.c.h.b16 %v1821
        %v1974 = vunpack.c.l.b16 %v1822
        %v1975 = vunpack.c.h.b16 %v1822
        %v1976 = vunpack.c.l.b16 %v1823
        %v1977 = vunpack.c.h.b16 %v1823
        %v1978 = vunpack.c.l.b16 %v1824
        %v1979 = vunpack.c.h.b16 %v1824
        %v1980 = vunpack.c.l.b16 %v1825
        %v1981 = vunpack.c.h.b16 %v1825
        %v1982 = vunpack.c.l.b16 %v1826
        %v1983 = vunpack.c.h.b16 %v1826
        %v1984 = vunpack.c.l.b16 %v1827
        %v1985 = vunpack.c.h.b16 %v1827
        %v1986 = vunpack.c.l.b16 %v1828
        %v1987 = vunpack.c.h.b16 %v1828
        %v1988 = vunpack.c.l.b16 %v1829
        %v1989 = vunpack.c.h.b16 %v1829
        %v1990 = vunpack.c.l.b16 %v1830
        %v1991 = vunpack.c.h.b16 %v1830
        %v1992 = vunpack.c.l.b16 %v1831
        %v1993 = vunpack.c.h.b16 %v1831
        %v1994 = vunpack.c.l.b16 %v1832
        %v1995 = vunpack.c.h.b16 %v1832
        %v1996 = vunpack.c.l.b16 %v1833
        %v1997 = vunpack.c.h.b16 %v1833
        %v1998 = vunpack.c.l.b16 %v1834
        %v1999 = vunpack.c.h.b16 %v1834
        %v2000 = vunpack.c.l.b16 %v1835
        %v2001 = vunpack.c.h.b16 %v1835
        %v2002 = vunpack.c.l.b16 %v1836
        %v2003 = vunpack.c.h.b16 %v1836
        %v2004 = vunpack.c.l.b16 %v1837
        %v2005 = vunpack.c.h.b16 %v1837
        %v2006 = vunpack.c.l.b16 %v1838
        %v2007 = vunpack.c.h.b16 %v1838
        %v2008 = vunpack.c.l.b16 %v1839
        %v2009 = vunpack.c.h.b16 %v1839
        %v2010 = vunpack.c.l.b16 %v1840
        %v2011 = vunpack.c.h.b16 %v1840
        %v2012 = vunpack.c.l.b16 %v1841
        %v2013 = vunpack.c.h.b16 %v1841
        %v2014 = vunpack.c.l.b16 %v1842
        %v2015 = vunpack.c.h.b16 %v1842
        %v2016 = vunpack.c.l.b16 %v1843
        %v2017 = vunpack.c.h.b16 %v1843
        %v2018 = vunpack.c.l.b16 %v1844
        %v2019 = vunpack.c.h.b16 %v1844
        %v2020 = vunpack.c.l.b16 %v1845
        %v2021 = vunpack.c.h.b16 %v1845
        %v2022 = vunpack.c.l.b16 %v1846
        %v2023 = vunpack.c.h.b16 %v1846
        %v2024 = vunpack.c.l.b16 %v1847
        %v2025 = vunpack.c.h.b16 %v1847
        %v2026 = vunpack.c.l.b16 %v1848
        %v2027 = vunpack.c.h.b16 %v1848
        %v2028 = vunpack.c.l.b16 %v1849
        %v2029 = vunpack.c.h.b16 %v1849
        %v2030 = vunpack.c.l.b16 %v1850
        %v2031 = vunpack.c.h.b16 %v1850
        %v2032 = vunpack.c.l.b16 %v1851
        %v2033 = vunpack.c.h.b16 %v1851
        %v2034 = vunpack.c.l.b16 %v1852
        %v2035 = vunpack.c.h.b16 %v1852
        %v2036 = vunpack.c.l.b16 %v1853
        %v2037 = vunpack.c.h.b16 %v1853
        %v2038 = vunpack.c.l.b16 %v1854
        %v2039 = vunpack.c.h.b16 %v1854
        %v2040 = vunpack.c.l.b16 %v1855
        %v2041 = vunpack.c.h.b16 %v1855
        %v2042 = vunpack.c.l.b16 %v1856
        %v2043 = vunpack.c.h.b16 %v1856
        %v2044 = vunpack.c.l.b16 %v1857
        %v2045 = vunpack.c.h.b16 %v1857
        %v2046 = vunpack.c.l.b16 %v1858
        %v2047 = vunpack.c.h.b16 %v1858
        %v2048 = vunpack.c.l.b16 %v1859
        %v2049 = vunpack.c.h.b16 %v1859
        %v2050 = vunpack.c.l.b16 %v1860
        %v2051 = vunpack.c.h.b16 %v1860
        %v2052 = vunpack.c.l.b16 %v1861
        %v2053 = vunpack.c.h.b16 %v1861
        %v2054 = vpack.c.b16 %v1928, %v1926
        %v2055 = vpack.c.b16 %v1929, %v1927
        %v2056 = vpack.c.b16 %v1932, %v1930
        %v2057 = vpack.c.b16 %v1933, %v1931
        %v2058 = vpack.c.b16 %v1936, %v1934
        %v2059 = vpack.c.b16 %v1937, %v1935
        %v2060 = vpack.c.b16 %v1940, %v1938
        %v2061 = vpack.c.b16 %v1941, %v1939
        %v2062 = vpack.c.b16 %v1944, %v1942
        %v2063 = vpack.c.b16 %v1945, %v1943
        %v2064 = vpack.c.b16 %v1948, %v1946
        %v2065 = vpack.c.b16 %v1949, %v1947
        %v2066 = vpack.c.b16 %v1952, %v1950
        %v2067 = vpack.c.b16 %v1953, %v1951
        %v2068 = vpack.c.b16 %v1956, %v1954
        %v2069 = vpack.c.b16 %v1957, %v1955
        %v2070 = vpack.c.b16 %v1960, %v1958
        %v2071 = vpack.c.b16 %v1961, %v1959
        %v2072 = vpack.c.b16 %v1964, %v1962
        %v2073 = vpack.c.b16 %v1965, %v1963
        %v2074 = vpack.c.b16 %v1968, %v1966
        %v2075 = vpack.c.b16 %v1969, %v1967
        %v2076 = vpack.c.b16 %v1972, %v1970
        %v2077 = vpack.c.b16 %v1973, %v1971
        %v2078 = vpack.c.b16 %v1976, %v1974
        %v2079 = vpack.c.b16 %v1977, %v1975
        %v2080 = vpack.c.b16 %v1980, %v1978
        %v2081 = vpack.c.b16 %v1981, %v1979
        %v2082 = vpack.c.b16 %v1984, %v1982
        %v2083 = vpack.c.b16 %v1985, %v1983
        %v2084 = vpack.c.b16 %v1988, %v1986
        %v2085 = vpack.c.b16 %v1989, %v1987
        %v2086 = vpack.c.b16 %v1992, %v1990
        %v2087 = vpack.c.b16 %v1993, %v1991
        %v2088 = vpack.c.b16 %v1996, %v1994
        %v2089 = vpack.c.b16 %v1997, %v1995
        %v2090 = vpack.c.b16 %v2000, %v1998
        %v2091 = vpack.c.b16 %v2001, %v1999
        %v2092 = vpack.c.b16 %v2004, %v2002
        %v2093 = vpack.c.b16 %v2005, %v2003
        %v2094 = vpack.c.b16 %v2008, %v2006
        %v2095 = vpack.c.b16 %v2009, %v2007
        %v2096 = vpack.c.b16 %v2012, %v2010
        %v2097 = vpack.c.b16 %v2013, %v2011
        %v2098 = vpack.c.b16 %v2016, %v2014
        %v2099 = vpack.c.b16 %v2017, %v2015
        %v2100 = vpack.c.b16 %v2020, %v2018
        %v2101 = vpack.c.b16 %v2021, %v2019
        %v2102 = vpack.c.b16 %v2024, %v2022
        %v2103 = vpack.c.b16 %v2025, %v2023
        %v2104 = vpack.c.b16 %v2028, %v2026
        %v2105 = vpack.c.b16 %v2029, %v2027
        %v2106 = vpack.c.b16 %v2032, %v2030
        %v2107 = vpack.c.b16 %v2033, %v2031
        %v2108 = vpack.c.b16 %v2036, %v2034
        %v2109 = vpack.c.b16 %v2037, %v2035
        %v2110 = vpack.c.b16 %v2040, %v2038
        %v2111 = vpack.c.b16 %v2041, %v2039
        %v2112 = vpack.c.b16 %v2044, %v2042
        %v2113 = vpack.c.b16 %v2045, %v2043
        %v2114 = vpack.c.b16 %v2048, %v2046
        %v2115 = vpack.c.b16 %v2049, %v2047
        %v2116 = vpack.c.b16 %v2052, %v2050
        %v2117 = vpack.c.b16 %v2053, %v2051
        %2182 = vmatprep.subr.bf16.mxu0 %v2055
        %2183 = vmatpush1.bf16.xpose.msra.mxu0 %v2054
        %2184 = vmatprep.subr.bf16.mxu0 %v2057
        %2185 = vmatpush1.bf16.xpose.msra.mxu0 %v2056
        %2186 = vmatprep.subr.bf16.mxu0 %v2059
        %2187 = vmatpush1.bf16.xpose.msra.mxu0 %v2058
        %2188 = vmatprep.subr.bf16.mxu0 %v2061
        %2189 = vmatpush1.bf16.xpose.msra.mxu0 %v2060
        %2190 = vmatprep.subr.bf16.mxu0 %v2063
        %2191 = vmatpush1.bf16.xpose.msra.mxu0 %v2062
        %2192 = vmatprep.subr.bf16.mxu0 %v2065
        %2193 = vmatpush1.bf16.xpose.msra.mxu0 %v2064
        %2194 = vmatprep.subr.bf16.mxu0 %v2067
        %2195 = vmatpush1.bf16.xpose.msra.mxu0 %v2066
        %2196 = vmatprep.subr.bf16.mxu0 %v2069
        %2197 = vmatpush1.bf16.xpose.msra.mxu0 %v2068
        %2198 = vmatprep.subr.bf16.mxu0 %v2071
        %2199 = vmatpush1.bf16.xpose.msra.mxu0 %v2070
        %2200 = vmatprep.subr.bf16.mxu0 %v2073
        %2201 = vmatpush1.bf16.xpose.msra.mxu0 %v2072
        %2202 = vmatprep.subr.bf16.mxu0 %v2075
        %2203 = vmatpush1.bf16.xpose.msra.mxu0 %v2074
        %2204 = vmatprep.subr.bf16.mxu0 %v2077
        %2205 = vmatpush1.bf16.xpose.msra.mxu0 %v2076
        %2206 = vmatprep.subr.bf16.mxu0 %v2079
        %2207 = vmatpush1.bf16.xpose.msra.mxu0 %v2078
        %2208 = vmatprep.subr.bf16.mxu0 %v2081
        %2209 = vmatpush1.bf16.xpose.msra.mxu0 %v2080
        %2210 = vmatprep.subr.bf16.mxu0 %v2083
        %2211 = vmatpush1.bf16.xpose.msra.mxu0 %v2082
        %2212 = vmatprep.subr.bf16.mxu0 %v2085
        %2213 = vmatpush1.bf16.xpose.msra.mxu0 %v2084
        %2214 = vmatprep.mubr.bf16.mxu0 %v1797
        %2215 = vmatmul.mubr.bf16.gmra.mrb[0].mxu0 %v1796
        %v2216 = vpop.f32.mrb[0].mxu0
        %v2217 = vadd.f32 0.0, %v2216
        %v2218 = vpop.f32.mrb[0].mxu0
        %v2219 = vadd.f32 0.0, %v2218
        %v2220 = vpop.f32.mrb[0].mxu0
        %v2221 = vadd.f32 0.0, %v2220
        %v2222 = vpop.f32.mrb[0].mxu0
        %v2223 = vadd.f32 0.0, %v2222
        %2224 = vdwg.mxu0
        %2225 = vmatprep.subr.bf16.mxu0 %v2087
        %2226 = vmatpush1.bf16.xpose.msra.mxu0 %v2086
        %2227 = vmatprep.subr.bf16.mxu0 %v2089
        %2228 = vmatpush1.bf16.xpose.msra.mxu0 %v2088
        %2229 = vmatprep.subr.bf16.mxu0 %v2091
        %2230 = vmatpush1.bf16.xpose.msra.mxu0 %v2090
        %2231 = vmatprep.subr.bf16.mxu0 %v2093
        %2232 = vmatpush1.bf16.xpose.msra.mxu0 %v2092
        %2233 = vmatprep.subr.bf16.mxu0 %v2095
        %2234 = vmatpush1.bf16.xpose.msra.mxu0 %v2094
        %2235 = vmatprep.subr.bf16.mxu0 %v2097
        %2236 = vmatpush1.bf16.xpose.msra.mxu0 %v2096
        %2237 = vmatprep.subr.bf16.mxu0 %v2099
        %2238 = vmatpush1.bf16.xpose.msra.mxu0 %v2098
        %2239 = vmatprep.subr.bf16.mxu0 %v2101
        %2240 = vmatpush1.bf16.xpose.msra.mxu0 %v2100
        %2241 = vmatprep.subr.bf16.mxu0 %v2103
        %2242 = vmatpush1.bf16.xpose.msra.mxu0 %v2102
        %2243 = vmatprep.subr.bf16.mxu0 %v2105
        %2244 = vmatpush1.bf16.xpose.msra.mxu0 %v2104
        %2245 = vmatprep.subr.bf16.mxu0 %v2107
        %2246 = vmatpush1.bf16.xpose.msra.mxu0 %v2106
        %2247 = vmatprep.subr.bf16.mxu0 %v2109
        %2248 = vmatpush1.bf16.xpose.msra.mxu0 %v2108
        %2249 = vmatprep.subr.bf16.mxu0 %v2111
        %2250 = vmatpush1.bf16.xpose.msra.mxu0 %v2110
        %2251 = vmatprep.subr.bf16.mxu0 %v2113
        %2252 = vmatpush1.bf16.xpose.msra.mxu0 %v2112
        %2253 = vmatprep.subr.bf16.mxu0 %v2115
        %2254 = vmatpush1.bf16.xpose.msra.mxu0 %v2114
        %2255 = vmatprep.subr.bf16.mxu0 %v2117
        %2256 = vmatpush1.bf16.xpose.msra.mxu0 %v2116
        %2257 = vmatprep.mubr.bf16.mxu0 %v1797
        %2258 = vmatmul.mubr.bf16.gmra.mrb[0].mxu0 %v1796
        %v2259 = vpop.f32.mrb[0].mxu0
        %v2260 = vadd.f32 0.0, %v2259
        %v2261 = vpop.f32.mrb[0].mxu0
        %v2262 = vadd.f32 0.0, %v2261
        %v2263 = vpop.f32.mrb[0].mxu0
        %v2264 = vadd.f32 0.0, %v2263
        %v2265 = vpop.f32.mrb[0].mxu0
        %v2266 = vadd.f32 0.0, %v2265
        %2267 = vdwg.mxu0
        %v2268 = vmax.f32 %v2217, %v2260
        %v2269 = vmax.f32 %v2219, %v2262
        %v2270 = vmax.f32 %v2221, %v2264
        %v2271 = vmax.f32 %v2223, %v2266
        %v2272 = vld [vmem:[#allocation5 + $0x50] ss:$0 sm:$0xff]
        %v2273 = vpack.c.bf16 %v2268, %v2268
        %v2274 = vpack.c.bf16 %v2269, %v2269
        %v2275 = vld [vmem:[#allocation2 + $0x678] sm:$0xf]
        %v2276 = vld [vmem:[#allocation2 + $0x680] sm:$0xf]
        %v2277 = vld [vmem:[#allocation2 + $0x688] sm:$0xf]
        %v2278 = vld [vmem:[#allocation2 + $0x690] sm:$0xf]
        %v2279 = vld [vmem:[#allocation2 + $0x698] sm:$0xf]
        %v2280 = vld [vmem:[#allocation2 + $0x6a0] sm:$0xf]
        %v2281 = vld [vmem:[#allocation2 + $0x6a8] sm:$0xf]
        %v2282 = vld [vmem:[#allocation2 + $0x6b0] sm:$0xf]
        %v2283 = vld [vmem:[#allocation2 + $0x6b8] sm:$0xf]
        %v2284 = vld [vmem:[#allocation2 + $0x6c0] sm:$0xf]
        %v2285 = vld [vmem:[#allocation2 + $0x6c8] sm:$0xf]
        %v2286 = vld [vmem:[#allocation2 + $0x6d0] sm:$0xf]
        %v2287 = vld [vmem:[#allocation2 + $0x6d8] sm:$0xf]
        %v2288 = vld [vmem:[#allocation2 + $0x6e0] sm:$0xf]
        %v2289 = vld [vmem:[#allocation2 + $0x6e8] sm:$0xf]
        %v2290 = vld [vmem:[#allocation2 + $0x6f0] sm:$0xf]
        %v2291 = vld [vmem:[#allocation2 + $0x6f8] sm:$0xf]
        %v2292 = vld [vmem:[#allocation2 + $0x700] sm:$0xf]
        %v2293 = vld [vmem:[#allocation2 + $0x708] sm:$0xf]
        %v2294 = vld [vmem:[#allocation2 + $0x710] sm:$0xf]
        %v2315 = vunpack.c.l.b16 %v2275
        %v2316 = vunpack.c.l.b16 %v2276
        %v2317 = vunpack.c.l.b16 %v2277
        %v2318 = vunpack.c.l.b16 %v2278
        %v2319 = vunpack.c.l.b16 %v2279
        %v2320 = vunpack.c.l.b16 %v2280
        %v2321 = vunpack.c.l.b16 %v2281
        %v2322 = vunpack.c.l.b16 %v2282
        %v2323 = vunpack.c.l.b16 %v2283
        %v2324 = vunpack.c.l.b16 %v2284
        %v2325 = vunpack.c.l.b16 %v2285
        %v2326 = vunpack.c.l.b16 %v2286
        %v2327 = vunpack.c.l.b16 %v2287
        %v2328 = vunpack.c.l.b16 %v2288
        %v2329 = vunpack.c.l.b16 %v2289
        %v2330 = vunpack.c.l.b16 %v2290
        %v2331 = vunpack.c.l.b16 %v2291
        %v2332 = vunpack.c.l.b16 %v2292
        %v2333 = vunpack.c.l.b16 %v2293
        %v2334 = vunpack.c.l.b16 %v2294
        %v2335 = vpack.c.b16 %v2316, %v2315
        %v2336 = vpack.c.b16 %v2318, %v2317
        %v2337 = vpack.c.b16 %v2320, %v2319
        %v2338 = vpack.c.b16 %v2322, %v2321
        %v2339 = vpack.c.b16 %v2324, %v2323
        %v2340 = vpack.c.b16 %v2326, %v2325
        %v2341 = vpack.c.b16 %v2328, %v2327
        %v2342 = vpack.c.b16 %v2330, %v2329
        %v2343 = vpack.c.b16 %v2332, %v2331
        %v2344 = vpack.c.b16 %v2334, %v2333
        %v2356 = vsel %vm603, %v2274, 0
        %2358 = vmatprep.subr.bf16.mxu0 0
        %2359 = vmatpush1.bf16.msra.mxu0 %v2335
        %2360 = vmatprep.subr.bf16.mxu0 0
        %2361 = vmatpush1.bf16.msra.mxu0 %v2336
        %2362 = vmatprep.subr.bf16.mxu0 0
        %2363 = vmatpush1.bf16.msra.mxu0 %v2337
        %2364 = vmatprep.subr.bf16.mxu0 0
        %2365 = vmatpush1.bf16.msra.mxu0 %v2338
        %2366 = vmatprep.subr.bf16.mxu0 0
        %2367 = vmatpush1.bf16.msra.mxu0 %v2339
        %2368 = vmatprep.subr.bf16.mxu0 0
        %2369 = vmatpush1.bf16.msra.mxu0 %v2340
        %2370 = vmatprep.subr.bf16.mxu0 0
        %2371 = vmatpush1.bf16.msra.mxu0 %v2341
        %2372 = vmatprep.subr.bf16.mxu0 0
        %2373 = vmatpush1.bf16.msra.mxu0 %v2342
        %2374 = vmatprep.subr.bf16.mxu0 0
        %2375 = vmatpush1.bf16.msra.mxu0 %v2343
        %2376 = vmatprep.subr.bf16.mxu0 0
        %2377 = vmatpush1.bf16.msra.mxu0 %v2344
        %2378 = vmatprep.subr.bf16.mxu0 0
        %2379 = vmatpush1.bf16.msra.mxu0 0
        %2380 = vmatprep.subr.bf16.mxu0 0
        %2381 = vmatpush1.bf16.msra.mxu0 0
        %2382 = vmatprep.subr.bf16.mxu0 0
        %2383 = vmatpush1.bf16.msra.mxu0 0
        %2384 = vmatprep.subr.bf16.mxu0 0
        %2385 = vmatpush1.bf16.msra.mxu0 0
        %2386 = vmatprep.subr.bf16.mxu0 0
        %2387 = vmatpush1.bf16.msra.mxu0 0
        %2388 = vmatprep.subr.bf16.mxu0 0
        %2389 = vmatpush1.bf16.msra.mxu0 0
        %2390 = vmatprep.mubr.bf16.mxu0 %v2356
        %2391 = vmatmul.mubr.bf16.gmra.mrb[0].mxu0 %v2273
        %v2392 = vpop.f32.mrb[0].mxu0
        %v2393 = vadd.f32 0.0, %v2392
        %v2394 = vpop.f32.mrb[0].mxu0
        %v2395 = vpop.f32.mrb[0].mxu0
        %v2396 = vpop.f32.mrb[0].mxu0
        %2397 = vdwg.mxu0
        %v2398 = vadd.f32 %v2272, %v2393
        %v2399 = vpack.c.bf16 %v2270, %v2268
        %v2400 = vpack.c.bf16 %v2271, %v2269
        %v2401 = vld [vmem:[#allocation2 + $0x718] sm:$0xf]
        %v2402 = vld [vmem:[#allocation2 + $0x720] sm:$0xf]
        %v2403 = vld [vmem:[#allocation2 + $0x728] sm:$0xf]
        %v2404 = vld [vmem:[#allocation2 + $0x730] sm:$0xf]
        %v2405 = vld [vmem:[#allocation2 + $0x738] sm:$0xf]
        %v2406 = vld [vmem:[#allocation2 + $0x740] sm:$0xf]
        %v2407 = vld [vmem:[#allocation2 + $0x748] sm:$0xf]
        %v2408 = vld [vmem:[#allocation2 + $0x750] sm:$0xf]
        %v2409 = vld [vmem:[#allocation2 + $0x758] sm:$0xf]
        %v2410 = vld [vmem:[#allocation2 + $0x760] sm:$0xf]
        %v2411 = vld [vmem:[#allocation2 + $0x768] sm:$0xf]
        %v2412 = vld [vmem:[#allocation2 + $0x770] sm:$0xf]
        %v2413 = vld [vmem:[#allocation2 + $0x778] sm:$0xf]
        %v2414 = vld [vmem:[#allocation2 + $0x780] sm:$0xf]
        %v2415 = vld [vmem:[#allocation2 + $0x788] sm:$0xf]
        %v2416 = vld [vmem:[#allocation2 + $0x790] sm:$0xf]
        %v2417 = vld [vmem:[#allocation2 + $0x798] sm:$0xf]
        %v2418 = vld [vmem:[#allocation2 + $0x7a0] sm:$0xf]
        %v2419 = vld [vmem:[#allocation2 + $0x7a8] sm:$0xf]
        %v2420 = vld [vmem:[#allocation2 + $0x7b0] sm:$0xf]
        %v2422 = vshrl.u32 %v2399, 16
        %v2424 = vshll.u32 %v2399, 16
        %v2426 = vrot.slane %v2424, 1
        %v2427 = vor.u32 %v2422, %v2426
        %v2429 = vshrl.u32 %v2400, 16
        %v2431 = vshll.u32 %v2400, 16
        %v2433 = vrot.slane %v2431, 1
        %v2434 = vor.u32 %v2429, %v2433
        %v2456 = vunpack.c.l.b16 %v2401
        %v2457 = vunpack.c.l.b16 %v2402
        %v2458 = vunpack.c.l.b16 %v2403
        %v2459 = vunpack.c.l.b16 %v2404
        %v2460 = vunpack.c.l.b16 %v2405
        %v2461 = vunpack.c.l.b16 %v2406
        %v2462 = vunpack.c.l.b16 %v2407
        %v2463 = vunpack.c.l.b16 %v2408
        %v2464 = vunpack.c.l.b16 %v2409
        %v2465 = vunpack.c.l.b16 %v2410
        %v2466 = vunpack.c.l.b16 %v2411
        %v2467 = vunpack.c.l.b16 %v2412
        %v2468 = vunpack.c.l.b16 %v2413
        %v2469 = vunpack.c.l.b16 %v2414
        %v2470 = vunpack.c.l.b16 %v2415
        %v2471 = vunpack.c.l.b16 %v2416
        %v2472 = vunpack.c.l.b16 %v2417
        %v2473 = vunpack.c.l.b16 %v2418
        %v2474 = vunpack.c.l.b16 %v2419
        %v2475 = vunpack.c.l.b16 %v2420
        %v2476 = vpack.c.b16 %v2457, %v2456
        %v2477 = vpack.c.b16 %v2459, %v2458
        %v2478 = vpack.c.b16 %v2461, %v2460
        %v2479 = vpack.c.b16 %v2463, %v2462
        %v2480 = vpack.c.b16 %v2465, %v2464
        %v2481 = vpack.c.b16 %v2467, %v2466
        %v2482 = vpack.c.b16 %v2469, %v2468
        %v2483 = vpack.c.b16 %v2471, %v2470
        %v2484 = vpack.c.b16 %v2473, %v2472
        %v2485 = vpack.c.b16 %v2475, %v2474
        %v2497 = vsel %vm603, %v2434, 0
        %2499 = vmatprep.subr.bf16.mxu0 0
        %2500 = vmatpush1.bf16.msra.mxu0 %v2476
        %2501 = vmatprep.subr.bf16.mxu0 0
        %2502 = vmatpush1.bf16.msra.mxu0 %v2477
        %2503 = vmatprep.subr.bf16.mxu0 0
        %2504 = vmatpush1.bf16.msra.mxu0 %v2478
        %2505 = vmatprep.subr.bf16.mxu0 0
        %2506 = vmatpush1.bf16.msra.mxu0 %v2479
        %2507 = vmatprep.subr.bf16.mxu0 0
        %2508 = vmatpush1.bf16.msra.mxu0 %v2480
        %2509 = vmatprep.subr.bf16.mxu0 0
        %2510 = vmatpush1.bf16.msra.mxu0 %v2481
        %2511 = vmatprep.subr.bf16.mxu0 0
        %2512 = vmatpush1.bf16.msra.mxu0 %v2482
        %2513 = vmatprep.subr.bf16.mxu0 0
        %2514 = vmatpush1.bf16.msra.mxu0 %v2483
        %2515 = vmatprep.subr.bf16.mxu0 0
        %2516 = vmatpush1.bf16.msra.mxu0 %v2484
        %2517 = vmatprep.subr.bf16.mxu0 0
        %2518 = vmatpush1.bf16.msra.mxu0 %v2485
        %2519 = vmatprep.subr.bf16.mxu0 0
        %2520 = vmatpush1.bf16.msra.mxu0 0
        %2521 = vmatprep.subr.bf16.mxu0 0
        %2522 = vmatpush1.bf16.msra.mxu0 0
        %2523 = vmatprep.subr.bf16.mxu0 0
        %2524 = vmatpush1.bf16.msra.mxu0 0
        %2525 = vmatprep.subr.bf16.mxu0 0
        %2526 = vmatpush1.bf16.msra.mxu0 0
        %2527 = vmatprep.subr.bf16.mxu0 0
        %2528 = vmatpush1.bf16.msra.mxu0 0
        %2529 = vmatprep.subr.bf16.mxu0 0
        %2530 = vmatpush1.bf16.msra.mxu0 0
        %2531 = vmatprep.mubr.bf16.mxu0 %v2497
        %2532 = vmatmul.mubr.bf16.gmra.mrb[0].mxu0 %v2427
        %v2533 = vpop.f32.mrb[0].mxu0
        %v2534 = vadd.f32 0.0, %v2533
        %v2535 = vpop.f32.mrb[0].mxu0
        %v2536 = vpop.f32.mrb[0].mxu0
        %v2537 = vpop.f32.mrb[0].mxu0
        %2538 = vdwg.mxu0
        %v2539 = vadd.f32 %v2398, %v2534
        %v2540 = vld [vmem:[#allocation2 + $0x7b8] sm:$0xf]
        %v2541 = vld [vmem:[#allocation2 + $0x7c0] sm:$0xf]
        %v2542 = vld [vmem:[#allocation2 + $0x7c8] sm:$0xf]
        %v2543 = vld [vmem:[#allocation2 + $0x7d0] sm:$0xf]
        %v2544 = vld [vmem:[#allocation2 + $0x7d8] sm:$0xf]
        %v2545 = vld [vmem:[#allocation2 + $0x7e0] sm:$0xf]
        %v2546 = vld [vmem:[#allocation2 + $0x7e8] sm:$0xf]
        %v2547 = vld [vmem:[#allocation2 + $0x7f0] sm:$0xf]
        %v2548 = vld [vmem:[#allocation2 + $0x7f8] sm:$0xf]
        %v2549 = vld [vmem:[#allocation2 + $0x800] sm:$0xf]
        %v2550 = vld [vmem:[#allocation2 + $0x808] sm:$0xf]
        %v2551 = vld [vmem:[#allocation2 + $0x810] sm:$0xf]
        %v2552 = vld [vmem:[#allocation2 + $0x818] sm:$0xf]
        %v2553 = vld [vmem:[#allocation2 + $0x820] sm:$0xf]
        %v2554 = vld [vmem:[#allocation2 + $0x828] sm:$0xf]
        %v2555 = vld [vmem:[#allocation2 + $0x830] sm:$0xf]
        %v2556 = vld [vmem:[#allocation2 + $0x838] sm:$0xf]
        %v2557 = vld [vmem:[#allocation2 + $0x840] sm:$0xf]
        %v2558 = vld [vmem:[#allocation2 + $0x848] sm:$0xf]
        %v2559 = vld [vmem:[#allocation2 + $0x850] sm:$0xf]
        %v2562 = vrot.slane %v2399, 1
        %v2563 = vrot.slane %v2400, 1
        %v2585 = vunpack.c.l.b16 %v2540
        %v2586 = vunpack.c.l.b16 %v2541
        %v2587 = vunpack.c.l.b16 %v2542
        %v2588 = vunpack.c.l.b16 %v2543
        %v2589 = vunpack.c.l.b16 %v2544
        %v2590 = vunpack.c.l.b16 %v2545
        %v2591 = vunpack.c.l.b16 %v2546
        %v2592 = vunpack.c.l.b16 %v2547
        %v2593 = vunpack.c.l.b16 %v2548
        %v2594 = vunpack.c.l.b16 %v2549
        %v2595 = vunpack.c.l.b16 %v2550
        %v2596 = vunpack.c.l.b16 %v2551
        %v2597 = vunpack.c.l.b16 %v2552
        %v2598 = vunpack.c.l.b16 %v2553
        %v2599 = vunpack.c.l.b16 %v2554
        %v2600 = vunpack.c.l.b16 %v2555
        %v2601 = vunpack.c.l.b16 %v2556
        %v2602 = vunpack.c.l.b16 %v2557
        %v2603 = vunpack.c.l.b16 %v2558
        %v2604 = vunpack.c.l.b16 %v2559
        %v2605 = vpack.c.b16 %v2586, %v2585
        %v2606 = vpack.c.b16 %v2588, %v2587
        %v2607 = vpack.c.b16 %v2590, %v2589
        %v2608 = vpack.c.b16 %v2592, %v2591
        %v2609 = vpack.c.b16 %v2594, %v2593
        %v2610 = vpack.c.b16 %v2596, %v2595
        %v2611 = vpack.c.b16 %v2598, %v2597
        %v2612 = vpack.c.b16 %v2600, %v2599
        %v2613 = vpack.c.b16 %v2602, %v2601
        %v2614 = vpack.c.b16 %v2604, %v2603
        %v2626 = vsel %vm603, %v2563, 0
        %2628 = vmatprep.subr.bf16.mxu0 0
        %2629 = vmatpush1.bf16.msra.mxu0 %v2605
        %2630 = vmatprep.subr.bf16.mxu0 0
        %2631 = vmatpush1.bf16.msra.mxu0 %v2606
        %2632 = vmatprep.subr.bf16.mxu0 0
        %2633 = vmatpush1.bf16.msra.mxu0 %v2607
        %2634 = vmatprep.subr.bf16.mxu0 0
        %2635 = vmatpush1.bf16.msra.mxu0 %v2608
        %2636 = vmatprep.subr.bf16.mxu0 0
        %2637 = vmatpush1.bf16.msra.mxu0 %v2609
        %2638 = vmatprep.subr.bf16.mxu0 0
        %2639 = vmatpush1.bf16.msra.mxu0 %v2610
        %2640 = vmatprep.subr.bf16.mxu0 0
        %2641 = vmatpush1.bf16.msra.mxu0 %v2611
        %2642 = vmatprep.subr.bf16.mxu0 0
        %2643 = vmatpush1.bf16.msra.mxu0 %v2612
        %2644 = vmatprep.subr.bf16.mxu0 0
        %2645 = vmatpush1.bf16.msra.mxu0 %v2613
        %2646 = vmatprep.subr.bf16.mxu0 0
        %2647 = vmatpush1.bf16.msra.mxu0 %v2614
        %2648 = vmatprep.subr.bf16.mxu0 0
        %2649 = vmatpush1.bf16.msra.mxu0 0
        %2650 = vmatprep.subr.bf16.mxu0 0
        %2651 = vmatpush1.bf16.msra.mxu0 0
        %2652 = vmatprep.subr.bf16.mxu0 0
        %2653 = vmatpush1.bf16.msra.mxu0 0
        %2654 = vmatprep.subr.bf16.mxu0 0
        %2655 = vmatpush1.bf16.msra.mxu0 0
        %2656 = vmatprep.subr.bf16.mxu0 0
        %2657 = vmatpush1.bf16.msra.mxu0 0
        %2658 = vmatprep.subr.bf16.mxu0 0
        %2659 = vmatpush1.bf16.msra.mxu0 0
        %2660 = vmatprep.mubr.bf16.mxu0 %v2626
        %2661 = vmatmul.mubr.bf16.gmra.mrb[0].mxu0 %v2562
        %v2662 = vpop.f32.mrb[0].mxu0
        %v2663 = vadd.f32 0.0, %v2662
        %v2664 = vpop.f32.mrb[0].mxu0
        %v2665 = vpop.f32.mrb[0].mxu0
        %v2666 = vpop.f32.mrb[0].mxu0
        %2667 = vdwg.mxu0
        %v2668 = vadd.f32 %v2539, %v2663
        %vm2669 = vcmp.ge.f32.partialorder %v2668, 0.0
        %v2670 = vmul.f32 %v2668, 0.01
        %v2671 = vsel %vm2669, %v2668, %v2670
        %v2672 = vld [vmem:[#allocation2 + $0x858] sm:$0xf]
        %v2673 = vld [vmem:[#allocation2 + $0x860] sm:$0xf]
        %v2674 = vpack.c.bf16 %v2671, %v2671
        %v2677 = vunpack.c.l.b16 %v2672
        %v2678 = vunpack.c.l.b16 %v2673
        %v2679 = vpack.c.b16 %v2678, %v2677
        %vm2680 = vcmask 64512
        %v2682 = vsel %vm2680, %v2679, 0
        %vm2684 = vcmask 1043456
        %v2686 = vsel %vm2684, %v2674, 0
        %2688 = vmatprep.subr.bf16.mxu0 0
        %2689 = vmatpush1.bf16.msra.mxu0 %v2686
        %2690 = vmatprep.subr.bf16.mxu0 0
        %2691 = vmatpush1.bf16.msra.mxu0 0
        %2692 = vmatprep.subr.bf16.mxu0 0
        %2693 = vmatpush1.bf16.msra.mxu0 0
        %2694 = vmatprep.subr.bf16.mxu0 0
        %2695 = vmatpush1.bf16.msra.mxu0 0
        %2696 = vmatprep.subr.bf16.mxu0 0
        %2697 = vmatpush1.bf16.msra.mxu0 0
        %2698 = vmatprep.subr.bf16.mxu0 0
        %2699 = vmatpush1.bf16.msra.mxu0 0
        %2700 = vmatprep.subr.bf16.mxu0 0
        %2701 = vmatpush1.bf16.msra.mxu0 0
        %2702 = vmatprep.subr.bf16.mxu0 0
        %2703 = vmatpush1.bf16.msra.mxu0 0
        %2704 = vmatprep.subr.bf16.mxu0 0
        %2705 = vmatpush1.bf16.msra.mxu0 0
        %2706 = vmatprep.subr.bf16.mxu0 0
        %2707 = vmatpush1.bf16.msra.mxu0 0
        %2708 = vmatprep.subr.bf16.mxu0 0
        %2709 = vmatpush1.bf16.msra.mxu0 0
        %2710 = vmatprep.subr.bf16.mxu0 0
        %2711 = vmatpush1.bf16.msra.mxu0 0
        %2712 = vmatprep.subr.bf16.mxu0 0
        %2713 = vmatpush1.bf16.msra.mxu0 0
        %2714 = vmatprep.subr.bf16.mxu0 0
        %2715 = vmatpush1.bf16.msra.mxu0 0
        %2716 = vmatprep.subr.bf16.mxu0 0
        %2717 = vmatpush1.bf16.msra.mxu0 0
        %2718 = vmatprep.subr.bf16.mxu0 0
        %2719 = vmatpush1.bf16.msra.mxu0 0
        %2720 = vmatprep.mubr.bf16.mxu0 0
        %2721 = vmatmul.mubr.bf16.gmra.mrb[0].mxu0 %v2682
        %v2722 = vpop.f32.mrb[0].mxu0
        %v2723 = vadd.f32 0.0, %v2722
        %v2724 = vpop.f32.mrb[0].mxu0
        %v2725 = vpop.f32.mrb[0].mxu0
        %v2726 = vadd.f32 0.0, %v2725
        %v2727 = vpop.f32.mrb[0].mxu0
        %2728 = vdwg.mxu0
        %v2729 = vmax.f32 %v2723, %v2726
        %v2730 = vpack.c.bf16 %v2729, %v2729
        %v2731 = vld [vmem:[#allocation2 + $0x868] sm:$0xf]
        %v2732 = vld [vmem:[#allocation2 + $0x870] sm:$0xf]
        %v2733 = vld [vmem:[#allocation2 + $0x878] sm:$0xf]
        %v2734 = vld [vmem:[#allocation2 + $0x880] sm:$0xf]
        %v2735 = vld [vmem:[#allocation2 + $0x888] sm:$0xf]
        %v2736 = vld [vmem:[#allocation2 + $0x890] sm:$0xf]
        %v2737 = vld [vmem:[#allocation2 + $0x898] sm:$0xf]
        %v2738 = vld [vmem:[#allocation2 + $0x8a0] sm:$0xf]
        %v2739 = vld [vmem:[#allocation2 + $0x8a8] sm:$0xf]
        %v2740 = vld [vmem:[#allocation2 + $0x8b0] sm:$0xf]
        %v2741 = vld [vmem:[#allocation2 + $0x8b8] sm:$0xf]
        %v2742 = vld [vmem:[#allocation2 + $0x8c0] sm:$0xf]
        %v2743 = vld [vmem:[#allocation2 + $0x8c8] sm:$0xf]
        %v2744 = vld [vmem:[#allocation2 + $0x8d0] sm:$0xf]
        %v2745 = vld [vmem:[#allocation2 + $0x8d8] sm:$0xf]
        %v2746 = vld [vmem:[#allocation2 + $0x8e0] sm:$0xf]
        %v2747 = vld [vmem:[#allocation2 + $0x8e8] sm:$0xf]
        %v2748 = vld [vmem:[#allocation2 + $0x8f0] sm:$0xf]
        %v2749 = vld [vmem:[#allocation2 + $0x8f8] sm:$0xf]
        %v2750 = vld [vmem:[#allocation2 + $0x900] sm:$0xf]
        %v2751 = vld [vmem:[#allocation2 + $0x908] sm:$0xf]
        %v2752 = vld [vmem:[#allocation2 + $0x910] sm:$0xf]
        %v2753 = vld [vmem:[#allocation2 + $0x918] sm:$0xf]
        %v2754 = vld [vmem:[#allocation2 + $0x920] sm:$0xf]
        %v2755 = vld [vmem:[#allocation2 + $0x928] sm:$0xf]
        %v2756 = vld [vmem:[#allocation2 + $0x930] sm:$0xf]
        %v2757 = vld [vmem:[#allocation2 + $0x938] sm:$0xf]
        %v2758 = vld [vmem:[#allocation2 + $0x940] sm:$0xf]
        %v2759 = vld [vmem:[#allocation2 + $0x948] sm:$0xf]
        %v2760 = vld [vmem:[#allocation2 + $0x950] sm:$0xf]
        %v2761 = vld [vmem:[#allocation2 + $0x958] sm:$0xf]
        %v2762 = vld [vmem:[#allocation2 + $0x960] sm:$0xf]
        %v2795 = vunpack.c.l.b16 %v2731
        %v2796 = vunpack.c.l.b16 %v2732
        %v2797 = vunpack.c.l.b16 %v2733
        %v2798 = vunpack.c.l.b16 %v2734
        %v2799 = vunpack.c.l.b16 %v2735
        %v2800 = vunpack.c.l.b16 %v2736
        %v2801 = vunpack.c.l.b16 %v2737
        %v2802 = vunpack.c.l.b16 %v2738
        %v2803 = vunpack.c.l.b16 %v2739
        %v2804 = vunpack.c.l.b16 %v2740
        %v2805 = vunpack.c.l.b16 %v2741
        %v2806 = vunpack.c.l.b16 %v2742
        %v2807 = vunpack.c.l.b16 %v2743
        %v2808 = vunpack.c.l.b16 %v2744
        %v2809 = vunpack.c.l.b16 %v2745
        %v2810 = vunpack.c.l.b16 %v2746
        %v2811 = vunpack.c.l.b16 %v2747
        %v2812 = vunpack.c.l.b16 %v2748
        %v2813 = vunpack.c.l.b16 %v2749
        %v2814 = vunpack.c.l.b16 %v2750
        %v2815 = vunpack.c.l.b16 %v2751
        %v2816 = vunpack.c.l.b16 %v2752
        %v2817 = vunpack.c.l.b16 %v2753
        %v2818 = vunpack.c.l.b16 %v2754
        %v2819 = vunpack.c.l.b16 %v2755
        %v2820 = vunpack.c.l.b16 %v2756
        %v2821 = vunpack.c.l.b16 %v2757
        %v2822 = vunpack.c.l.b16 %v2758
        %v2823 = vunpack.c.l.b16 %v2759
        %v2824 = vunpack.c.l.b16 %v2760
        %v2825 = vunpack.c.l.b16 %v2761
        %v2826 = vunpack.c.l.b16 %v2762
        %v2827 = vpack.c.b16 %v2796, %v2795
        %v2828 = vpack.c.b16 %v2798, %v2797
        %v2829 = vpack.c.b16 %v2800, %v2799
        %v2830 = vpack.c.b16 %v2802, %v2801
        %v2831 = vpack.c.b16 %v2804, %v2803
        %v2832 = vpack.c.b16 %v2806, %v2805
        %v2833 = vpack.c.b16 %v2808, %v2807
        %v2834 = vpack.c.b16 %v2810, %v2809
        %v2835 = vpack.c.b16 %v2812, %v2811
        %v2836 = vpack.c.b16 %v2814, %v2813
        %v2837 = vpack.c.b16 %v2816, %v2815
        %v2838 = vpack.c.b16 %v2818, %v2817
        %v2839 = vpack.c.b16 %v2820, %v2819
        %v2840 = vpack.c.b16 %v2822, %v2821
        %v2841 = vpack.c.b16 %v2824, %v2823
        %v2842 = vpack.c.b16 %v2826, %v2825
        %2859 = vmatprep.subr.bf16.mxu0 0
        %2860 = vmatpush1.bf16.xpose.msra.mxu0 %v2827
        %2861 = vmatprep.subr.bf16.mxu0 0
        %2862 = vmatpush1.bf16.xpose.msra.mxu0 %v2828
        %2863 = vmatprep.subr.bf16.mxu0 0
        %2864 = vmatpush1.bf16.xpose.msra.mxu0 %v2829
        %2865 = vmatprep.subr.bf16.mxu0 0
        %2866 = vmatpush1.bf16.xpose.msra.mxu0 %v2830
        %2867 = vmatprep.subr.bf16.mxu0 0
        %2868 = vmatpush1.bf16.xpose.msra.mxu0 %v2831
        %2869 = vmatprep.subr.bf16.mxu0 0
        %2870 = vmatpush1.bf16.xpose.msra.mxu0 %v2832
        %2871 = vmatprep.subr.bf16.mxu0 0
        %2872 = vmatpush1.bf16.xpose.msra.mxu0 %v2833
        %2873 = vmatprep.subr.bf16.mxu0 0
        %2874 = vmatpush1.bf16.xpose.msra.mxu0 %v2834
        %2875 = vmatprep.subr.bf16.mxu0 0
        %2876 = vmatpush1.bf16.xpose.msra.mxu0 %v2835
        %2877 = vmatprep.subr.bf16.mxu0 0
        %2878 = vmatpush1.bf16.xpose.msra.mxu0 %v2836
        %2879 = vmatprep.subr.bf16.mxu0 0
        %2880 = vmatpush1.bf16.xpose.msra.mxu0 %v2837
        %2881 = vmatprep.subr.bf16.mxu0 0
        %2882 = vmatpush1.bf16.xpose.msra.mxu0 %v2838
        %2883 = vmatprep.subr.bf16.mxu0 0
        %2884 = vmatpush1.bf16.xpose.msra.mxu0 %v2839
        %2885 = vmatprep.subr.bf16.mxu0 0
        %2886 = vmatpush1.bf16.xpose.msra.mxu0 %v2840
        %2887 = vmatprep.subr.bf16.mxu0 0
        %2888 = vmatpush1.bf16.xpose.msra.mxu0 %v2841
        %2889 = vmatprep.subr.bf16.mxu0 0
        %2890 = vmatpush1.bf16.xpose.msra.mxu0 %v2842
        %2891 = vmatprep.mubr.bf16.mxu0 0
        %2892 = vmatmul.mubr.bf16.gmra.mrb[0].mxu0 %v2730
        %v2893 = vpop.f32.mrb[0].mxu0
        %v2894 = vadd.f32 0.0, %v2893
        %v2895 = vpop.f32.mrb[0].mxu0
        %v2896 = vadd.f32 0.0, %v2895
        %v2897 = vpop.f32.mrb[0].mxu0
        %v2898 = vpop.f32.mrb[0].mxu0
        %2899 = vdwg.mxu0
        %v2900 = vmax.f32 %v2894, %v2896
        %v2901 = vld [vmem:[#allocation5 + $0x60] ss:$0 sm:$0xff]
        %v2902 = vpack.c.bf16 %v2900, %v2900
        %v2903 = vld [vmem:[#allocation2 + $0x968] sm:$0xf]
        %v2904 = vld [vmem:[#allocation2 + $0x970] sm:$0xf]
        %v2905 = vld [vmem:[#allocation2 + $0x978] sm:$0xf]
        %v2906 = vld [vmem:[#allocation2 + $0x980] sm:$0xf]
        %v2907 = vld [vmem:[#allocation2 + $0x988] sm:$0xf]
        %v2908 = vld [vmem:[#allocation2 + $0x990] sm:$0xf]
        %v2909 = vld [vmem:[#allocation2 + $0x998] sm:$0xf]
        %v2910 = vld [vmem:[#allocation2 + $0x9a0] sm:$0xf]
        %v2911 = vld [vmem:[#allocation2 + $0x9a8] sm:$0xf]
        %v2912 = vld [vmem:[#allocation2 + $0x9b0] sm:$0xf]
        %v2913 = vld [vmem:[#allocation2 + $0x9b8] sm:$0xf]
        %v2914 = vld [vmem:[#allocation2 + $0x9c0] sm:$0xf]
        %v2927 = vunpack.c.l.b16 %v2903
        %v2928 = vunpack.c.l.b16 %v2904
        %v2929 = vunpack.c.l.b16 %v2905
        %v2930 = vunpack.c.l.b16 %v2906
        %v2931 = vunpack.c.l.b16 %v2907
        %v2932 = vunpack.c.l.b16 %v2908
        %v2933 = vunpack.c.l.b16 %v2909
        %v2934 = vunpack.c.l.b16 %v2910
        %v2935 = vunpack.c.l.b16 %v2911
        %v2936 = vunpack.c.l.b16 %v2912
        %v2937 = vunpack.c.l.b16 %v2913
        %v2938 = vunpack.c.l.b16 %v2914
        %v2939 = vpack.c.b16 %v2928, %v2927
        %v2940 = vpack.c.b16 %v2930, %v2929
        %v2941 = vpack.c.b16 %v2932, %v2931
        %v2942 = vpack.c.b16 %v2934, %v2933
        %v2943 = vpack.c.b16 %v2936, %v2935
        %v2944 = vpack.c.b16 %v2938, %v2937
        %vm2951 = vcmask 785408
        %v2953 = vsel %vm2951, %v2902, 0
        %2955 = vmatprep.subr.bf16.mxu0 0
        %2956 = vmatpush1.bf16.msra.mxu0 %v2939
        %2957 = vmatprep.subr.bf16.mxu0 0
        %2958 = vmatpush1.bf16.msra.mxu0 %v2940
        %2959 = vmatprep.subr.bf16.mxu0 0
        %2960 = vmatpush1.bf16.msra.mxu0 %v2941
        %2961 = vmatprep.subr.bf16.mxu0 0
        %2962 = vmatpush1.bf16.msra.mxu0 %v2942
        %2963 = vmatprep.subr.bf16.mxu0 0
        %2964 = vmatpush1.bf16.msra.mxu0 %v2943
        %2965 = vmatprep.subr.bf16.mxu0 0
        %2966 = vmatpush1.bf16.msra.mxu0 %v2944
        %2967 = vmatprep.subr.bf16.mxu0 0
        %2968 = vmatpush1.bf16.msra.mxu0 0
        %2969 = vmatprep.subr.bf16.mxu0 0
        %2970 = vmatpush1.bf16.msra.mxu0 0
        %2971 = vmatprep.subr.bf16.mxu0 0
        %2972 = vmatpush1.bf16.msra.mxu0 0
        %2973 = vmatprep.subr.bf16.mxu0 0
        %2974 = vmatpush1.bf16.msra.mxu0 0
        %2975 = vmatprep.subr.bf16.mxu0 0
        %2976 = vmatpush1.bf16.msra.mxu0 0
        %2977 = vmatprep.subr.bf16.mxu0 0
        %2978 = vmatpush1.bf16.msra.mxu0 0
        %2979 = vmatprep.subr.bf16.mxu0 0
        %2980 = vmatpush1.bf16.msra.mxu0 0
        %2981 = vmatprep.subr.bf16.mxu0 0
        %2982 = vmatpush1.bf16.msra.mxu0 0
        %2983 = vmatprep.subr.bf16.mxu0 0
        %2984 = vmatpush1.bf16.msra.mxu0 0
        %2985 = vmatprep.subr.bf16.mxu0 0
        %2986 = vmatpush1.bf16.msra.mxu0 0
        %2987 = vmatprep.mubr.bf16.mxu0 0
        %2988 = vmatmul.mubr.bf16.gmra.mrb[0].mxu0 %v2953
        %v2989 = vpop.f32.mrb[0].mxu0
        %v2990 = vadd.f32 0.0, %v2989
        %v2991 = vpop.f32.mrb[0].mxu0
        %v2992 = vpop.f32.mrb[0].mxu0
        %v2993 = vpop.f32.mrb[0].mxu0
        %2994 = vdwg.mxu0
        %v2995 = vadd.f32 %v2901, %v2990
        %v2996 = vld [vmem:[#allocation2 + $0x9c8] sm:$0xf]
        %v2997 = vld [vmem:[#allocation2 + $0x9d0] sm:$0xf]
        %v2998 = vld [vmem:[#allocation2 + $0x9d8] sm:$0xf]
        %v2999 = vld [vmem:[#allocation2 + $0x9e0] sm:$0xf]
        %v3000 = vld [vmem:[#allocation2 + $0x9e8] sm:$0xf]
        %v3001 = vld [vmem:[#allocation2 + $0x9f0] sm:$0xf]
        %v3002 = vld [vmem:[#allocation2 + $0x9f8] sm:$0xf]
        %v3003 = vld [vmem:[#allocation2 + $0xa00] sm:$0xf]
        %v3004 = vld [vmem:[#allocation2 + $0xa08] sm:$0xf]
        %v3005 = vld [vmem:[#allocation2 + $0xa10] sm:$0xf]
        %v3006 = vld [vmem:[#allocation2 + $0xa18] sm:$0xf]
        %v3007 = vld [vmem:[#allocation2 + $0xa20] sm:$0xf]
        %v3008 = vshrl.u32 %v2902, 16
        %v3010 = vshll.u32 %v2902, 16
        %v3012 = vrot.slane %v3010, 1
        %v3013 = vor.u32 %v3008, %v3012
        %v3026 = vunpack.c.l.b16 %v2996
        %v3027 = vunpack.c.l.b16 %v2997
        %v3028 = vunpack.c.l.b16 %v2998
        %v3029 = vunpack.c.l.b16 %v2999
        %v3030 = vunpack.c.l.b16 %v3000
        %v3031 = vunpack.c.l.b16 %v3001
        %v3032 = vunpack.c.l.b16 %v3002
        %v3033 = vunpack.c.l.b16 %v3003
        %v3034 = vunpack.c.l.b16 %v3004
        %v3035 = vunpack.c.l.b16 %v3005
        %v3036 = vunpack.c.l.b16 %v3006
        %v3037 = vunpack.c.l.b16 %v3007
        %v3038 = vpack.c.b16 %v3027, %v3026
        %v3039 = vpack.c.b16 %v3029, %v3028
        %v3040 = vpack.c.b16 %v3031, %v3030
        %v3041 = vpack.c.b16 %v3033, %v3032
        %v3042 = vpack.c.b16 %v3035, %v3034
        %v3043 = vpack.c.b16 %v3037, %v3036
        %v3051 = vsel %vm2951, %v3013, 0
        %3053 = vmatprep.subr.bf16.mxu0 0
        %3054 = vmatpush1.bf16.msra.mxu0 %v3038
        %3055 = vmatprep.subr.bf16.mxu0 0
        %3056 = vmatpush1.bf16.msra.mxu0 %v3039
        %3057 = vmatprep.subr.bf16.mxu0 0
        %3058 = vmatpush1.bf16.msra.mxu0 %v3040
        %3059 = vmatprep.subr.bf16.mxu0 0
        %3060 = vmatpush1.bf16.msra.mxu0 %v3041
        %3061 = vmatprep.subr.bf16.mxu0 0
        %3062 = vmatpush1.bf16.msra.mxu0 %v3042
        %3063 = vmatprep.subr.bf16.mxu0 0
        %3064 = vmatpush1.bf16.msra.mxu0 %v3043
        %3065 = vmatprep.subr.bf16.mxu0 0
        %3066 = vmatpush1.bf16.msra.mxu0 0
        %3067 = vmatprep.subr.bf16.mxu0 0
        %3068 = vmatpush1.bf16.msra.mxu0 0
        %3069 = vmatprep.subr.bf16.mxu0 0
        %3070 = vmatpush1.bf16.msra.mxu0 0
        %3071 = vmatprep.subr.bf16.mxu0 0
        %3072 = vmatpush1.bf16.msra.mxu0 0
        %3073 = vmatprep.subr.bf16.mxu0 0
        %3074 = vmatpush1.bf16.msra.mxu0 0
        %3075 = vmatprep.subr.bf16.mxu0 0
        %3076 = vmatpush1.bf16.msra.mxu0 0
        %3077 = vmatprep.subr.bf16.mxu0 0
        %3078 = vmatpush1.bf16.msra.mxu0 0
        %3079 = vmatprep.subr.bf16.mxu0 0
        %3080 = vmatpush1.bf16.msra.mxu0 0
        %3081 = vmatprep.subr.bf16.mxu0 0
        %3082 = vmatpush1.bf16.msra.mxu0 0
        %3083 = vmatprep.subr.bf16.mxu0 0
        %3084 = vmatpush1.bf16.msra.mxu0 0
        %3085 = vmatprep.mubr.bf16.mxu0 0
        %3086 = vmatmul.mubr.bf16.gmra.mrb[0].mxu0 %v3051
        %v3087 = vpop.f32.mrb[0].mxu0
        %v3088 = vadd.f32 0.0, %v3087
        %v3089 = vpop.f32.mrb[0].mxu0
        %v3090 = vpop.f32.mrb[0].mxu0
        %v3091 = vpop.f32.mrb[0].mxu0
        %3092 = vdwg.mxu0
        %v3093 = vadd.f32 %v2995, %v3088
        %v3094 = vld [vmem:[#allocation2 + $0xa28] sm:$0xf]
        %v3095 = vld [vmem:[#allocation2 + $0xa30] sm:$0xf]
        %v3096 = vld [vmem:[#allocation2 + $0xa38] sm:$0xf]
        %v3097 = vld [vmem:[#allocation2 + $0xa40] sm:$0xf]
        %v3098 = vld [vmem:[#allocation2 + $0xa48] sm:$0xf]
        %v3099 = vld [vmem:[#allocation2 + $0xa50] sm:$0xf]
        %v3100 = vld [vmem:[#allocation2 + $0xa58] sm:$0xf]
        %v3101 = vld [vmem:[#allocation2 + $0xa60] sm:$0xf]
        %v3102 = vld [vmem:[#allocation2 + $0xa68] sm:$0xf]
        %v3103 = vld [vmem:[#allocation2 + $0xa70] sm:$0xf]
        %v3104 = vld [vmem:[#allocation2 + $0xa78] sm:$0xf]
        %v3105 = vld [vmem:[#allocation2 + $0xa80] sm:$0xf]
        %v3107 = vrot.slane %v2902, 1
        %v3120 = vunpack.c.l.b16 %v3094
        %v3121 = vunpack.c.l.b16 %v3095
        %v3122 = vunpack.c.l.b16 %v3096
        %v3123 = vunpack.c.l.b16 %v3097
        %v3124 = vunpack.c.l.b16 %v3098
        %v3125 = vunpack.c.l.b16 %v3099
        %v3126 = vunpack.c.l.b16 %v3100
        %v3127 = vunpack.c.l.b16 %v3101
        %v3128 = vunpack.c.l.b16 %v3102
        %v3129 = vunpack.c.l.b16 %v3103
        %v3130 = vunpack.c.l.b16 %v3104
        %v3131 = vunpack.c.l.b16 %v3105
        %v3132 = vpack.c.b16 %v3121, %v3120
        %v3133 = vpack.c.b16 %v3123, %v3122
        %v3134 = vpack.c.b16 %v3125, %v3124
        %v3135 = vpack.c.b16 %v3127, %v3126
        %v3136 = vpack.c.b16 %v3129, %v3128
        %v3137 = vpack.c.b16 %v3131, %v3130
        %v3145 = vsel %vm2951, %v3107, 0
        %3147 = vmatprep.subr.bf16.mxu0 0
        %3148 = vmatpush1.bf16.msra.mxu0 %v3132
        %3149 = vmatprep.subr.bf16.mxu0 0
        %3150 = vmatpush1.bf16.msra.mxu0 %v3133
        %3151 = vmatprep.subr.bf16.mxu0 0
        %3152 = vmatpush1.bf16.msra.mxu0 %v3134
        %3153 = vmatprep.subr.bf16.mxu0 0
        %3154 = vmatpush1.bf16.msra.mxu0 %v3135
        %3155 = vmatprep.subr.bf16.mxu0 0
        %3156 = vmatpush1.bf16.msra.mxu0 %v3136
        %3157 = vmatprep.subr.bf16.mxu0 0
        %3158 = vmatpush1.bf16.msra.mxu0 %v3137
        %3159 = vmatprep.subr.bf16.mxu0 0
        %3160 = vmatpush1.bf16.msra.mxu0 0
        %3161 = vmatprep.subr.bf16.mxu0 0
        %3162 = vmatpush1.bf16.msra.mxu0 0
        %3163 = vmatprep.subr.bf16.mxu0 0
        %3164 = vmatpush1.bf16.msra.mxu0 0
        %3165 = vmatprep.subr.bf16.mxu0 0
        %3166 = vmatpush1.bf16.msra.mxu0 0
        %3167 = vmatprep.subr.bf16.mxu0 0
        %3168 = vmatpush1.bf16.msra.mxu0 0
        %3169 = vmatprep.subr.bf16.mxu0 0
        %3170 = vmatpush1.bf16.msra.mxu0 0
        %3171 = vmatprep.subr.bf16.mxu0 0
        %3172 = vmatpush1.bf16.msra.mxu0 0
        %3173 = vmatprep.subr.bf16.mxu0 0
        %3174 = vmatpush1.bf16.msra.mxu0 0
        %3175 = vmatprep.subr.bf16.mxu0 0
        %3176 = vmatpush1.bf16.msra.mxu0 0
        %3177 = vmatprep.subr.bf16.mxu0 0
        %3178 = vmatpush1.bf16.msra.mxu0 0
        %3179 = vmatprep.mubr.bf16.mxu0 0
        %3180 = vmatmul.mubr.bf16.gmra.mrb[0].mxu0 %v3145
        %v3181 = vpop.f32.mrb[0].mxu0
        %v3182 = vadd.f32 0.0, %v3181
        %v3183 = vpop.f32.mrb[0].mxu0
        %v3184 = vpop.f32.mrb[0].mxu0
        %v3185 = vpop.f32.mrb[0].mxu0
        %3186 = vdwg.mxu0
        %v3187 = vadd.f32 %v3093, %v3182
        %vm3188 = vcmp.ge.f32.partialorder %v3187, 0.0
        %v3189 = vmul.f32 %v3187, 0.01
        %v3190 = vsel %vm3188, %v3187, %v3189
        %v3191 = vld [vmem:[#allocation2 + $0xa88] sm:$0xf]
        %v3192 = vld [vmem:[#allocation2 + $0xa90] sm:$0xf]
        %v3193 = vpack.c.bf16 %v3190, %v3190
        %v3196 = vunpack.c.l.b16 %v3191
        %v3197 = vunpack.c.l.b16 %v3192
        %v3198 = vpack.c.b16 %v3197, %v3196
        %vm3199 = vcmask 31744
        %v3201 = vsel %vm3199, %v3198, 0
        %vm3203 = vcmask 1041408
        %v3205 = vsel %vm3203, %v3193, 0
        %3207 = vmatprep.subr.bf16.mxu0 0
        %3208 = vmatpush1.bf16.msra.mxu0 %v3205
        %3209 = vmatprep.subr.bf16.mxu0 0
        %3210 = vmatpush1.bf16.msra.mxu0 0
        %3211 = vmatprep.subr.bf16.mxu0 0
        %3212 = vmatpush1.bf16.msra.mxu0 0
        %3213 = vmatprep.subr.bf16.mxu0 0
        %3214 = vmatpush1.bf16.msra.mxu0 0
        %3215 = vmatprep.subr.bf16.mxu0 0
        %3216 = vmatpush1.bf16.msra.mxu0 0
        %3217 = vmatprep.subr.bf16.mxu0 0
        %3218 = vmatpush1.bf16.msra.mxu0 0
        %3219 = vmatprep.subr.bf16.mxu0 0
        %3220 = vmatpush1.bf16.msra.mxu0 0
        %3221 = vmatprep.subr.bf16.mxu0 0
        %3222 = vmatpush1.bf16.msra.mxu0 0
        %3223 = vmatprep.subr.bf16.mxu0 0
        %3224 = vmatpush1.bf16.msra.mxu0 0
        %3225 = vmatprep.subr.bf16.mxu0 0
        %3226 = vmatpush1.bf16.msra.mxu0 0
        %3227 = vmatprep.subr.bf16.mxu0 0
        %3228 = vmatpush1.bf16.msra.mxu0 0
        %3229 = vmatprep.subr.bf16.mxu0 0
        %3230 = vmatpush1.bf16.msra.mxu0 0
        %3231 = vmatprep.subr.bf16.mxu0 0
        %3232 = vmatpush1.bf16.msra.mxu0 0
        %3233 = vmatprep.subr.bf16.mxu0 0
        %3234 = vmatpush1.bf16.msra.mxu0 0
        %3235 = vmatprep.subr.bf16.mxu0 0
        %3236 = vmatpush1.bf16.msra.mxu0 0
        %3237 = vmatprep.subr.bf16.mxu0 0
        %3238 = vmatpush1.bf16.msra.mxu0 0
        %3239 = vmatprep.mubr.bf16.mxu0 0
        %3240 = vmatmul.mubr.bf16.gmra.mrb[0].mxu0 %v3201
        %v3241 = vpop.f32.mrb[0].mxu0
        %v3242 = vadd.f32 0.0, %v3241
        %v3243 = vpop.f32.mrb[0].mxu0
        %v3244 = vpop.f32.mrb[0].mxu0
        %v3245 = vadd.f32 0.0, %v3244
        %v3246 = vpop.f32.mrb[0].mxu0
        %3247 = vdwg.mxu0
        %v3248 = vmax.f32 %v3242, %v3245
        %v3249 = vpack.c.bf16 %v3248, %v3248
        %v3250 = vld [vmem:[#allocation2 + $0xa98] sm:$0xf]
        %v3251 = vld [vmem:[#allocation2 + $0xaa0] sm:$0xf]
        %v3252 = vld [vmem:[#allocation2 + $0xaa8] sm:$0xf]
        %v3253 = vld [vmem:[#allocation2 + $0xab0] sm:$0xf]
        %v3254 = vld [vmem:[#allocation2 + $0xab8] sm:$0xf]
        %v3255 = vld [vmem:[#allocation2 + $0xac0] sm:$0xf]
        %v3256 = vld [vmem:[#allocation2 + $0xac8] sm:$0xf]
        %v3257 = vld [vmem:[#allocation2 + $0xad0] sm:$0xf]
        %v3258 = vld [vmem:[#allocation2 + $0xad8] sm:$0xf]
        %v3259 = vld [vmem:[#allocation2 + $0xae0] sm:$0xf]
        %v3260 = vld [vmem:[#allocation2 + $0xae8] sm:$0xf]
        %v3261 = vld [vmem:[#allocation2 + $0xaf0] sm:$0xf]
        %v3262 = vld [vmem:[#allocation2 + $0xaf8] sm:$0xf]
        %v3263 = vld [vmem:[#allocation2 + $0xb00] sm:$0xf]
        %v3264 = vld [vmem:[#allocation2 + $0xb08] sm:$0xf]
        %v3265 = vld [vmem:[#allocation2 + $0xb10] sm:$0xf]
        %v3266 = vld [vmem:[#allocation2 + $0xb18] sm:$0xf]
        %v3267 = vld [vmem:[#allocation2 + $0xb20] sm:$0xf]
        %v3268 = vld [vmem:[#allocation2 + $0xb28] sm:$0xf]
        %v3269 = vld [vmem:[#allocation2 + $0xb30] sm:$0xf]
        %v3270 = vld [vmem:[#allocation2 + $0xb38] sm:$0xf]
        %v3271 = vld [vmem:[#allocation2 + $0xb40] sm:$0xf]
        %v3272 = vld [vmem:[#allocation2 + $0xb48] sm:$0xf]
        %v3273 = vld [vmem:[#allocation2 + $0xb50] sm:$0xf]
        %v3274 = vld [vmem:[#allocation2 + $0xb58] sm:$0xf]
        %v3275 = vld [vmem:[#allocation2 + $0xb60] sm:$0xf]
        %v3276 = vld [vmem:[#allocation2 + $0xb68] sm:$0xf]
        %v3277 = vld [vmem:[#allocation2 + $0xb70] sm:$0xf]
        %v3278 = vld [vmem:[#allocation2 + $0xb78] sm:$0xf]
        %v3279 = vld [vmem:[#allocation2 + $0xb80] sm:$0xf]
        %v3280 = vld [vmem:[#allocation2 + $0xb88] sm:$0xf]
        %v3281 = vld [vmem:[#allocation2 + $0xb90] sm:$0xf]
        %v3314 = vunpack.c.l.b16 %v3250
        %v3315 = vunpack.c.l.b16 %v3251
        %v3316 = vunpack.c.l.b16 %v3252
        %v3317 = vunpack.c.l.b16 %v3253
        %v3318 = vunpack.c.l.b16 %v3254
        %v3319 = vunpack.c.l.b16 %v3255
        %v3320 = vunpack.c.l.b16 %v3256
        %v3321 = vunpack.c.l.b16 %v3257
        %v3322 = vunpack.c.l.b16 %v3258
        %v3323 = vunpack.c.l.b16 %v3259
        %v3324 = vunpack.c.l.b16 %v3260
        %v3325 = vunpack.c.l.b16 %v3261
        %v3326 = vunpack.c.l.b16 %v3262
        %v3327 = vunpack.c.l.b16 %v3263
        %v3328 = vunpack.c.l.b16 %v3264
        %v3329 = vunpack.c.l.b16 %v3265
        %v3330 = vunpack.c.l.b16 %v3266
        %v3331 = vunpack.c.l.b16 %v3267
        %v3332 = vunpack.c.l.b16 %v3268
        %v3333 = vunpack.c.l.b16 %v3269
        %v3334 = vunpack.c.l.b16 %v3270
        %v3335 = vunpack.c.l.b16 %v3271
        %v3336 = vunpack.c.l.b16 %v3272
        %v3337 = vunpack.c.l.b16 %v3273
        %v3338 = vunpack.c.l.b16 %v3274
        %v3339 = vunpack.c.l.b16 %v3275
        %v3340 = vunpack.c.l.b16 %v3276
        %v3341 = vunpack.c.l.b16 %v3277
        %v3342 = vunpack.c.l.b16 %v3278
        %v3343 = vunpack.c.l.b16 %v3279
        %v3344 = vunpack.c.l.b16 %v3280
        %v3345 = vunpack.c.l.b16 %v3281
        %v3346 = vpack.c.b16 %v3315, %v3314
        %v3347 = vpack.c.b16 %v3317, %v3316
        %v3348 = vpack.c.b16 %v3319, %v3318
        %v3349 = vpack.c.b16 %v3321, %v3320
        %v3350 = vpack.c.b16 %v3323, %v3322
        %v3351 = vpack.c.b16 %v3325, %v3324
        %v3352 = vpack.c.b16 %v3327, %v3326
        %v3353 = vpack.c.b16 %v3329, %v3328
        %v3354 = vpack.c.b16 %v3331, %v3330
        %v3355 = vpack.c.b16 %v3333, %v3332
        %v3356 = vpack.c.b16 %v3335, %v3334
        %v3357 = vpack.c.b16 %v3337, %v3336
        %v3358 = vpack.c.b16 %v3339, %v3338
        %v3359 = vpack.c.b16 %v3341, %v3340
        %v3360 = vpack.c.b16 %v3343, %v3342
        %v3361 = vpack.c.b16 %v3345, %v3344
        %vm3362 = vcmask 523264
        %v3364 = vsel %vm3362, %v3249, 0
        %v3367 = vsel %vm3362, %v3346, 0
        %v3370 = vsel %vm3362, %v3347, 0
        %v3373 = vsel %vm3362, %v3348, 0
        %v3376 = vsel %vm3362, %v3349, 0
        %v3379 = vsel %vm3362, %v3350, 0
        %v3382 = vsel %vm3362, %v3351, 0
        %v3385 = vsel %vm3362, %v3352, 0
        %v3388 = vsel %vm3362, %v3353, 0
        %v3391 = vsel %vm3362, %v3354, 0
        %v3394 = vsel %vm3362, %v3355, 0
        %v3397 = vsel %vm3362, %v3356, 0
        %v3400 = vsel %vm3362, %v3357, 0
        %v3403 = vsel %vm3362, %v3358, 0
        %v3406 = vsel %vm3362, %v3359, 0
        %v3409 = vsel %vm3362, %v3360, 0
        %v3412 = vsel %vm3362, %v3361, 0
        %3414 = vmatprep.subr.bf16.mxu0 0
        %3415 = vmatpush1.bf16.xpose.msra.mxu0 %v3367
        %3416 = vmatprep.subr.bf16.mxu0 0
        %3417 = vmatpush1.bf16.xpose.msra.mxu0 %v3370
        %3418 = vmatprep.subr.bf16.mxu0 0
        %3419 = vmatpush1.bf16.xpose.msra.mxu0 %v3373
        %3420 = vmatprep.subr.bf16.mxu0 0
        %3421 = vmatpush1.bf16.xpose.msra.mxu0 %v3376
        %3422 = vmatprep.subr.bf16.mxu0 0
        %3423 = vmatpush1.bf16.xpose.msra.mxu0 %v3379
        %3424 = vmatprep.subr.bf16.mxu0 0
        %3425 = vmatpush1.bf16.xpose.msra.mxu0 %v3382
        %3426 = vmatprep.subr.bf16.mxu0 0
        %3427 = vmatpush1.bf16.xpose.msra.mxu0 %v3385
        %3428 = vmatprep.subr.bf16.mxu0 0
        %3429 = vmatpush1.bf16.xpose.msra.mxu0 %v3388
        %3430 = vmatprep.subr.bf16.mxu0 0
        %3431 = vmatpush1.bf16.xpose.msra.mxu0 %v3391
        %3432 = vmatprep.subr.bf16.mxu0 0
        %3433 = vmatpush1.bf16.xpose.msra.mxu0 %v3394
        %3434 = vmatprep.subr.bf16.mxu0 0
        %3435 = vmatpush1.bf16.xpose.msra.mxu0 %v3397
        %3436 = vmatprep.subr.bf16.mxu0 0
        %3437 = vmatpush1.bf16.xpose.msra.mxu0 %v3400
        %3438 = vmatprep.subr.bf16.mxu0 0
        %3439 = vmatpush1.bf16.xpose.msra.mxu0 %v3403
        %3440 = vmatprep.subr.bf16.mxu0 0
        %3441 = vmatpush1.bf16.xpose.msra.mxu0 %v3406
        %3442 = vmatprep.subr.bf16.mxu0 0
        %3443 = vmatpush1.bf16.xpose.msra.mxu0 %v3409
        %3444 = vmatprep.subr.bf16.mxu0 0
        %3445 = vmatpush1.bf16.xpose.msra.mxu0 %v3412
        %3446 = vmatprep.mubr.bf16.mxu0 0
        %3447 = vmatmul.mubr.bf16.gmra.mrb[0].mxu0 %v3364
        %v3448 = vpop.f32.mrb[0].mxu0
        %v3449 = vadd.f32 0.0, %v3448
        %v3450 = vpop.f32.mrb[0].mxu0
        %v3451 = vadd.f32 0.0, %v3450
        %v3452 = vpop.f32.mrb[0].mxu0
        %v3453 = vpop.f32.mrb[0].mxu0
        %3454 = vdwg.mxu0
        %v3455 = vmax.f32 %v3449, %v3451
        %v3456 = vld [vmem:[#allocation5 + $0x70] ss:$0 sm:$0xff]
        %v3457 = vpack.c.bf16 %v3455, %v3455
        %v3458 = vld [vmem:[#allocation2 + $0xb98] sm:$0xf]
        %v3459 = vld [vmem:[#allocation2 + $0xba0] sm:$0xf]
        %v3460 = vld [vmem:[#allocation2 + $0xba8] sm:$0xf]
        %v3461 = vld [vmem:[#allocation2 + $0xbb0] sm:$0xf]
        %v3462 = vld [vmem:[#allocation2 + $0xbb8] sm:$0xf]
        %v3463 = vld [vmem:[#allocation2 + $0xbc0] sm:$0xf]
        %v3464 = vld [vmem:[#allocation2 + $0xbc8] sm:$0xf]
        %v3465 = vld [vmem:[#allocation2 + $0xbd0] sm:$0xf]
        %v3474 = vunpack.c.l.b16 %v3458
        %v3475 = vunpack.c.l.b16 %v3459
        %v3476 = vunpack.c.l.b16 %v3460
        %v3477 = vunpack.c.l.b16 %v3461
        %v3478 = vunpack.c.l.b16 %v3462
        %v3479 = vunpack.c.l.b16 %v3463
        %v3480 = vunpack.c.l.b16 %v3464
        %v3481 = vunpack.c.l.b16 %v3465
        %v3482 = vpack.c.b16 %v3475, %v3474
        %v3483 = vpack.c.b16 %v3477, %v3476
        %v3484 = vpack.c.b16 %v3479, %v3478
        %v3485 = vpack.c.b16 %v3481, %v3480
        %v3491 = vsel %vm3362, %v3457, 0
        %3493 = vmatprep.subr.bf16.mxu0 0
        %3494 = vmatpush1.bf16.msra.mxu0 %v3482
        %3495 = vmatprep.subr.bf16.mxu0 0
        %3496 = vmatpush1.bf16.msra.mxu0 %v3483
        %3497 = vmatprep.subr.bf16.mxu0 0
        %3498 = vmatpush1.bf16.msra.mxu0 %v3484
        %3499 = vmatprep.subr.bf16.mxu0 0
        %3500 = vmatpush1.bf16.msra.mxu0 %v3485
        %3501 = vmatprep.subr.bf16.mxu0 0
        %3502 = vmatpush1.bf16.msra.mxu0 0
        %3503 = vmatprep.subr.bf16.mxu0 0
        %3504 = vmatpush1.bf16.msra.mxu0 0
        %3505 = vmatprep.subr.bf16.mxu0 0
        %3506 = vmatpush1.bf16.msra.mxu0 0
        %3507 = vmatprep.subr.bf16.mxu0 0
        %3508 = vmatpush1.bf16.msra.mxu0 0
        %3509 = vmatprep.subr.bf16.mxu0 0
        %3510 = vmatpush1.bf16.msra.mxu0 0
        %3511 = vmatprep.subr.bf16.mxu0 0
        %3512 = vmatpush1.bf16.msra.mxu0 0
        %3513 = vmatprep.subr.bf16.mxu0 0
        %3514 = vmatpush1.bf16.msra.mxu0 0
        %3515 = vmatprep.subr.bf16.mxu0 0
        %3516 = vmatpush1.bf16.msra.mxu0 0
        %3517 = vmatprep.subr.bf16.mxu0 0
        %3518 = vmatpush1.bf16.msra.mxu0 0
        %3519 = vmatprep.subr.bf16.mxu0 0
        %3520 = vmatpush1.bf16.msra.mxu0 0
        %3521 = vmatprep.subr.bf16.mxu0 0
        %3522 = vmatpush1.bf16.msra.mxu0 0
        %3523 = vmatprep.subr.bf16.mxu0 0
        %3524 = vmatpush1.bf16.msra.mxu0 0
        %3525 = vmatprep.mubr.bf16.mxu0 0
        %3526 = vmatmul.mubr.bf16.gmra.mrb[0].mxu0 %v3491
        %v3527 = vpop.f32.mrb[0].mxu0
        %v3528 = vadd.f32 0.0, %v3527
        %v3529 = vpop.f32.mrb[0].mxu0
        %v3530 = vpop.f32.mrb[0].mxu0
        %v3531 = vpop.f32.mrb[0].mxu0
        %3532 = vdwg.mxu0
        %v3533 = vadd.f32 %v3456, %v3528
        %v3534 = vld [vmem:[#allocation2 + $0xbd8] sm:$0xf]
        %v3535 = vld [vmem:[#allocation2 + $0xbe0] sm:$0xf]
        %v3536 = vld [vmem:[#allocation2 + $0xbe8] sm:$0xf]
        %v3537 = vld [vmem:[#allocation2 + $0xbf0] sm:$0xf]
        %v3538 = vld [vmem:[#allocation2 + $0xbf8] sm:$0xf]
        %v3539 = vld [vmem:[#allocation2 + $0xc00] sm:$0xf]
        %v3540 = vld [vmem:[#allocation2 + $0xc08] sm:$0xf]
        %v3541 = vld [vmem:[#allocation2 + $0xc10] sm:$0xf]
        %v3542 = vshrl.u32 %v3457, 16
        %v3544 = vshll.u32 %v3457, 16
        %v3546 = vrot.slane %v3544, 1
        %v3547 = vor.u32 %v3542, %v3546
        %v3556 = vunpack.c.l.b16 %v3534
        %v3557 = vunpack.c.l.b16 %v3535
        %v3558 = vunpack.c.l.b16 %v3536
        %v3559 = vunpack.c.l.b16 %v3537
        %v3560 = vunpack.c.l.b16 %v3538
        %v3561 = vunpack.c.l.b16 %v3539
        %v3562 = vunpack.c.l.b16 %v3540
        %v3563 = vunpack.c.l.b16 %v3541
        %v3564 = vpack.c.b16 %v3557, %v3556
        %v3565 = vpack.c.b16 %v3559, %v3558
        %v3566 = vpack.c.b16 %v3561, %v3560
        %v3567 = vpack.c.b16 %v3563, %v3562
        %v3573 = vsel %vm3362, %v3547, 0
        %3575 = vmatprep.subr.bf16.mxu0 0
        %3576 = vmatpush1.bf16.msra.mxu0 %v3564
        %3577 = vmatprep.subr.bf16.mxu0 0
        %3578 = vmatpush1.bf16.msra.mxu0 %v3565
        %3579 = vmatprep.subr.bf16.mxu0 0
        %3580 = vmatpush1.bf16.msra.mxu0 %v3566
        %3581 = vmatprep.subr.bf16.mxu0 0
        %3582 = vmatpush1.bf16.msra.mxu0 %v3567
        %3583 = vmatprep.subr.bf16.mxu0 0
        %3584 = vmatpush1.bf16.msra.mxu0 0
        %3585 = vmatprep.subr.bf16.mxu0 0
        %3586 = vmatpush1.bf16.msra.mxu0 0
        %3587 = vmatprep.subr.bf16.mxu0 0
        %3588 = vmatpush1.bf16.msra.mxu0 0
        %3589 = vmatprep.subr.bf16.mxu0 0
        %3590 = vmatpush1.bf16.msra.mxu0 0
        %3591 = vmatprep.subr.bf16.mxu0 0
        %3592 = vmatpush1.bf16.msra.mxu0 0
        %3593 = vmatprep.subr.bf16.mxu0 0
        %3594 = vmatpush1.bf16.msra.mxu0 0
        %3595 = vmatprep.subr.bf16.mxu0 0
        %3596 = vmatpush1.bf16.msra.mxu0 0
        %3597 = vmatprep.subr.bf16.mxu0 0
        %3598 = vmatpush1.bf16.msra.mxu0 0
        %3599 = vmatprep.subr.bf16.mxu0 0
        %3600 = vmatpush1.bf16.msra.mxu0 0
        %3601 = vmatprep.subr.bf16.mxu0 0
        %3602 = vmatpush1.bf16.msra.mxu0 0
        %3603 = vmatprep.subr.bf16.mxu0 0
        %3604 = vmatpush1.bf16.msra.mxu0 0
        %3605 = vmatprep.subr.bf16.mxu0 0
        %3606 = vmatpush1.bf16.msra.mxu0 0
        %3607 = vmatprep.mubr.bf16.mxu0 0
        %3608 = vmatmul.mubr.bf16.gmra.mrb[0].mxu0 %v3573
        %v3609 = vpop.f32.mrb[0].mxu0
        %v3610 = vadd.f32 0.0, %v3609
        %v3611 = vpop.f32.mrb[0].mxu0
        %v3612 = vpop.f32.mrb[0].mxu0
        %v3613 = vpop.f32.mrb[0].mxu0
        %3614 = vdwg.mxu0
        %v3615 = vadd.f32 %v3533, %v3610
        %v3616 = vld [vmem:[#allocation2 + $0xc18] sm:$0xf]
        %v3617 = vld [vmem:[#allocation2 + $0xc20] sm:$0xf]
        %v3618 = vld [vmem:[#allocation2 + $0xc28] sm:$0xf]
        %v3619 = vld [vmem:[#allocation2 + $0xc30] sm:$0xf]
        %v3620 = vld [vmem:[#allocation2 + $0xc38] sm:$0xf]
        %v3621 = vld [vmem:[#allocation2 + $0xc40] sm:$0xf]
        %v3622 = vld [vmem:[#allocation2 + $0xc48] sm:$0xf]
        %v3623 = vld [vmem:[#allocation2 + $0xc50] sm:$0xf]
        %v3625 = vrot.slane %v3457, 1
        %v3634 = vunpack.c.l.b16 %v3616
        %v3635 = vunpack.c.l.b16 %v3617
        %v3636 = vunpack.c.l.b16 %v3618
        %v3637 = vunpack.c.l.b16 %v3619
        %v3638 = vunpack.c.l.b16 %v3620
        %v3639 = vunpack.c.l.b16 %v3621
        %v3640 = vunpack.c.l.b16 %v3622
        %v3641 = vunpack.c.l.b16 %v3623
        %v3642 = vpack.c.b16 %v3635, %v3634
        %v3643 = vpack.c.b16 %v3637, %v3636
        %v3644 = vpack.c.b16 %v3639, %v3638
        %v3645 = vpack.c.b16 %v3641, %v3640
        %v3651 = vsel %vm3362, %v3625, 0
        %3653 = vmatprep.subr.bf16.mxu0 0
        %3654 = vmatpush1.bf16.msra.mxu0 %v3642
        %3655 = vmatprep.subr.bf16.mxu0 0
        %3656 = vmatpush1.bf16.msra.mxu0 %v3643
        %3657 = vmatprep.subr.bf16.mxu0 0
        %3658 = vmatpush1.bf16.msra.mxu0 %v3644
        %3659 = vmatprep.subr.bf16.mxu0 0
        %3660 = vmatpush1.bf16.msra.mxu0 %v3645
        %3661 = vmatprep.subr.bf16.mxu0 0
        %3662 = vmatpush1.bf16.msra.mxu0 0
        %3663 = vmatprep.subr.bf16.mxu0 0
        %3664 = vmatpush1.bf16.msra.mxu0 0
        %3665 = vmatprep.subr.bf16.mxu0 0
        %3666 = vmatpush1.bf16.msra.mxu0 0
        %3667 = vmatprep.subr.bf16.mxu0 0
        %3668 = vmatpush1.bf16.msra.mxu0 0
        %3669 = vmatprep.subr.bf16.mxu0 0
        %3670 = vmatpush1.bf16.msra.mxu0 0
        %3671 = vmatprep.subr.bf16.mxu0 0
        %3672 = vmatpush1.bf16.msra.mxu0 0
        %3673 = vmatprep.subr.bf16.mxu0 0
        %3674 = vmatpush1.bf16.msra.mxu0 0
        %3675 = vmatprep.subr.bf16.mxu0 0
        %3676 = vmatpush1.bf16.msra.mxu0 0
        %3677 = vmatprep.subr.bf16.mxu0 0
        %3678 = vmatpush1.bf16.msra.mxu0 0
        %3679 = vmatprep.subr.bf16.mxu0 0
        %3680 = vmatpush1.bf16.msra.mxu0 0
        %3681 = vmatprep.subr.bf16.mxu0 0
        %3682 = vmatpush1.bf16.msra.mxu0 0
        %3683 = vmatprep.subr.bf16.mxu0 0
        %3684 = vmatpush1.bf16.msra.mxu0 0
        %3685 = vmatprep.mubr.bf16.mxu0 0
        %3686 = vmatmul.mubr.bf16.gmra.mrb[0].mxu0 %v3651
        %v3687 = vpop.f32.mrb[0].mxu0
        %v3688 = vadd.f32 0.0, %v3687
        %v3689 = vpop.f32.mrb[0].mxu0
        %v3690 = vpop.f32.mrb[0].mxu0
        %v3691 = vpop.f32.mrb[0].mxu0
        %3692 = vdwg.mxu0
        %v3693 = vadd.f32 %v3615, %v3688
        %vm3694 = vcmp.ge.f32.partialorder %v3693, 0.0
        %v3695 = vmul.f32 %v3693, 0.01
        %v3696 = vsel %vm3694, %v3693, %v3695
        %v3697 = vld [vmem:[#allocation2 + $0xc58] sm:$0xf]
        %v3698 = vld [vmem:[#allocation2 + $0xc60] sm:$0xf]
        %v3699 = vpack.c.bf16 %v3696, %v3696
        %v3702 = vunpack.c.l.b16 %v3697
        %v3703 = vunpack.c.l.b16 %v3698
        %v3704 = vpack.c.b16 %v3703, %v3702
        %vm3705 = vcmask 15360
        %v3707 = vsel %vm3705, %v3704, 0
        %v3710 = vsel %vm251, %v3699, 0
        %3712 = vmatprep.subr.bf16.mxu0 0
        %3713 = vmatpush1.bf16.msra.mxu0 %v3710
        %3714 = vmatprep.subr.bf16.mxu0 0
        %3715 = vmatpush1.bf16.msra.mxu0 0
        %3716 = vmatprep.subr.bf16.mxu0 0
        %3717 = vmatpush1.bf16.msra.mxu0 0
        %3718 = vmatprep.subr.bf16.mxu0 0
        %3719 = vmatpush1.bf16.msra.mxu0 0
        %3720 = vmatprep.subr.bf16.mxu0 0
        %3721 = vmatpush1.bf16.msra.mxu0 0
        %3722 = vmatprep.subr.bf16.mxu0 0
        %3723 = vmatpush1.bf16.msra.mxu0 0
        %3724 = vmatprep.subr.bf16.mxu0 0
        %3725 = vmatpush1.bf16.msra.mxu0 0
        %3726 = vmatprep.subr.bf16.mxu0 0
        %3727 = vmatpush1.bf16.msra.mxu0 0
        %3728 = vmatprep.subr.bf16.mxu0 0
        %3729 = vmatpush1.bf16.msra.mxu0 0
        %3730 = vmatprep.subr.bf16.mxu0 0
        %3731 = vmatpush1.bf16.msra.mxu0 0
        %3732 = vmatprep.subr.bf16.mxu0 0
        %3733 = vmatpush1.bf16.msra.mxu0 0
        %3734 = vmatprep.subr.bf16.mxu0 0
        %3735 = vmatpush1.bf16.msra.mxu0 0
        %3736 = vmatprep.subr.bf16.mxu0 0
        %3737 = vmatpush1.bf16.msra.mxu0 0
        %3738 = vmatprep.subr.bf16.mxu0 0
        %3739 = vmatpush1.bf16.msra.mxu0 0
        %3740 = vmatprep.subr.bf16.mxu0 0
        %3741 = vmatpush1.bf16.msra.mxu0 0
        %3742 = vmatprep.subr.bf16.mxu0 0
        %3743 = vmatpush1.bf16.msra.mxu0 0
        %3744 = vmatprep.mubr.bf16.mxu0 0
        %3745 = vmatmul.mubr.bf16.gmra.mrb[0].mxu0 %v3707
        %v3746 = vpop.f32.mrb[0].mxu0
        %v3747 = vadd.f32 0.0, %v3746
        %v3748 = vpop.f32.mrb[0].mxu0
        %v3749 = vpop.f32.mrb[0].mxu0
        %v3750 = vadd.f32 0.0, %v3749
        %v3751 = vpop.f32.mrb[0].mxu0
        %3752 = vdwg.mxu0
        %v3753 = vmax.f32 %v3747, %v3750
        %v3754 = vpack.c.bf16 %v3753, %v3753
        %v3755 = vld [vmem:[#allocation2 + $0xc68] sm:$0xf]
        %v3756 = vld [vmem:[#allocation2 + $0xc70] sm:$0xf]
        %v3757 = vld [vmem:[#allocation2 + $0xc78] sm:$0xf]
        %v3758 = vld [vmem:[#allocation2 + $0xc80] sm:$0xf]
        %v3759 = vld [vmem:[#allocation2 + $0xc88] sm:$0xf]
        %v3760 = vld [vmem:[#allocation2 + $0xc90] sm:$0xf]
        %v3761 = vld [vmem:[#allocation2 + $0xc98] sm:$0xf]
        %v3762 = vld [vmem:[#allocation2 + $0xca0] sm:$0xf]
        %v3763 = vld [vmem:[#allocation2 + $0xca8] sm:$0xf]
        %v3764 = vld [vmem:[#allocation2 + $0xcb0] sm:$0xf]
        %v3765 = vld [vmem:[#allocation2 + $0xcb8] sm:$0xf]
        %v3766 = vld [vmem:[#allocation2 + $0xcc0] sm:$0xf]
        %v3767 = vld [vmem:[#allocation2 + $0xcc8] sm:$0xf]
        %v3768 = vld [vmem:[#allocation2 + $0xcd0] sm:$0xf]
        %v3769 = vld [vmem:[#allocation2 + $0xcd8] sm:$0xf]
        %v3770 = vld [vmem:[#allocation2 + $0xce0] sm:$0xf]
        %v3771 = vld [vmem:[#allocation2 + $0xce8] sm:$0xf]
        %v3772 = vld [vmem:[#allocation2 + $0xcf0] sm:$0xf]
        %v3773 = vld [vmem:[#allocation2 + $0xcf8] sm:$0xf]
        %v3774 = vld [vmem:[#allocation2 + $0xd00] sm:$0xf]
        %v3775 = vld [vmem:[#allocation2 + $0xd08] sm:$0xf]
        %v3776 = vld [vmem:[#allocation2 + $0xd10] sm:$0xf]
        %v3777 = vld [vmem:[#allocation2 + $0xd18] sm:$0xf]
        %v3778 = vld [vmem:[#allocation2 + $0xd20] sm:$0xf]
        %v3779 = vld [vmem:[#allocation2 + $0xd28] sm:$0xf]
        %v3780 = vld [vmem:[#allocation2 + $0xd30] sm:$0xf]
        %v3781 = vld [vmem:[#allocation2 + $0xd38] sm:$0xf]
        %v3782 = vld [vmem:[#allocation2 + $0xd40] sm:$0xf]
        %v3783 = vld [vmem:[#allocation2 + $0xd48] sm:$0xf]
        %v3784 = vld [vmem:[#allocation2 + $0xd50] sm:$0xf]
        %v3785 = vld [vmem:[#allocation2 + $0xd58] sm:$0xf]
        %v3786 = vld [vmem:[#allocation2 + $0xd60] sm:$0xf]
        %v3819 = vunpack.c.l.b16 %v3755
        %v3820 = vunpack.c.l.b16 %v3756
        %v3821 = vunpack.c.l.b16 %v3757
        %v3822 = vunpack.c.l.b16 %v3758
        %v3823 = vunpack.c.l.b16 %v3759
        %v3824 = vunpack.c.l.b16 %v3760
        %v3825 = vunpack.c.l.b16 %v3761
        %v3826 = vunpack.c.l.b16 %v3762
        %v3827 = vunpack.c.l.b16 %v3763
        %v3828 = vunpack.c.l.b16 %v3764
        %v3829 = vunpack.c.l.b16 %v3765
        %v3830 = vunpack.c.l.b16 %v3766
        %v3831 = vunpack.c.l.b16 %v3767
        %v3832 = vunpack.c.l.b16 %v3768
        %v3833 = vunpack.c.l.b16 %v3769
        %v3834 = vunpack.c.l.b16 %v3770
        %v3835 = vunpack.c.l.b16 %v3771
        %v3836 = vunpack.c.l.b16 %v3772
        %v3837 = vunpack.c.l.b16 %v3773
        %v3838 = vunpack.c.l.b16 %v3774
        %v3839 = vunpack.c.l.b16 %v3775
        %v3840 = vunpack.c.l.b16 %v3776
        %v3841 = vunpack.c.l.b16 %v3777
        %v3842 = vunpack.c.l.b16 %v3778
        %v3843 = vunpack.c.l.b16 %v3779
        %v3844 = vunpack.c.l.b16 %v3780
        %v3845 = vunpack.c.l.b16 %v3781
        %v3846 = vunpack.c.l.b16 %v3782
        %v3847 = vunpack.c.l.b16 %v3783
        %v3848 = vunpack.c.l.b16 %v3784
        %v3849 = vunpack.c.l.b16 %v3785
        %v3850 = vunpack.c.l.b16 %v3786
        %v3851 = vpack.c.b16 %v3820, %v3819
        %v3852 = vpack.c.b16 %v3822, %v3821
        %v3853 = vpack.c.b16 %v3824, %v3823
        %v3854 = vpack.c.b16 %v3826, %v3825
        %v3855 = vpack.c.b16 %v3828, %v3827
        %v3856 = vpack.c.b16 %v3830, %v3829
        %v3857 = vpack.c.b16 %v3832, %v3831
        %v3858 = vpack.c.b16 %v3834, %v3833
        %v3859 = vpack.c.b16 %v3836, %v3835
        %v3860 = vpack.c.b16 %v3838, %v3837
        %v3861 = vpack.c.b16 %v3840, %v3839
        %v3862 = vpack.c.b16 %v3842, %v3841
        %v3863 = vpack.c.b16 %v3844, %v3843
        %v3864 = vpack.c.b16 %v3846, %v3845
        %v3865 = vpack.c.b16 %v3848, %v3847
        %v3866 = vpack.c.b16 %v3850, %v3849
        %v3868 = vsel %vm1290, %v3754, 0
        %v3871 = vsel %vm1290, %v3851, 0
        %v3874 = vsel %vm1290, %v3852, 0
        %v3877 = vsel %vm1290, %v3853, 0
        %v3880 = vsel %vm1290, %v3854, 0
        %v3883 = vsel %vm1290, %v3855, 0
        %v3886 = vsel %vm1290, %v3856, 0
        %v3889 = vsel %vm1290, %v3857, 0
        %v3892 = vsel %vm1290, %v3858, 0
        %v3895 = vsel %vm1290, %v3859, 0
        %v3898 = vsel %vm1290, %v3860, 0
        %v3901 = vsel %vm1290, %v3861, 0
        %v3904 = vsel %vm1290, %v3862, 0
        %v3907 = vsel %vm1290, %v3863, 0
        %v3910 = vsel %vm1290, %v3864, 0
        %v3913 = vsel %vm1290, %v3865, 0
        %v3916 = vsel %vm1290, %v3866, 0
        %3918 = vmatprep.subr.bf16.mxu0 0
        %3919 = vmatpush1.bf16.xpose.msra.mxu0 %v3871
        %3920 = vmatprep.subr.bf16.mxu0 0
        %3921 = vmatpush1.bf16.xpose.msra.mxu0 %v3874
        %3922 = vmatprep.subr.bf16.mxu0 0
        %3923 = vmatpush1.bf16.xpose.msra.mxu0 %v3877
        %3924 = vmatprep.subr.bf16.mxu0 0
        %3925 = vmatpush1.bf16.xpose.msra.mxu0 %v3880
        %3926 = vmatprep.subr.bf16.mxu0 0
        %3927 = vmatpush1.bf16.xpose.msra.mxu0 %v3883
        %3928 = vmatprep.subr.bf16.mxu0 0
        %3929 = vmatpush1.bf16.xpose.msra.mxu0 %v3886
        %3930 = vmatprep.subr.bf16.mxu0 0
        %3931 = vmatpush1.bf16.xpose.msra.mxu0 %v3889
        %3932 = vmatprep.subr.bf16.mxu0 0
        %3933 = vmatpush1.bf16.xpose.msra.mxu0 %v3892
        %3934 = vmatprep.subr.bf16.mxu0 0
        %3935 = vmatpush1.bf16.xpose.msra.mxu0 %v3895
        %3936 = vmatprep.subr.bf16.mxu0 0
        %3937 = vmatpush1.bf16.xpose.msra.mxu0 %v3898
        %3938 = vmatprep.subr.bf16.mxu0 0
        %3939 = vmatpush1.bf16.xpose.msra.mxu0 %v3901
        %3940 = vmatprep.subr.bf16.mxu0 0
        %3941 = vmatpush1.bf16.xpose.msra.mxu0 %v3904
        %3942 = vmatprep.subr.bf16.mxu0 0
        %3943 = vmatpush1.bf16.xpose.msra.mxu0 %v3907
        %3944 = vmatprep.subr.bf16.mxu0 0
        %3945 = vmatpush1.bf16.xpose.msra.mxu0 %v3910
        %3946 = vmatprep.subr.bf16.mxu0 0
        %3947 = vmatpush1.bf16.xpose.msra.mxu0 %v3913
        %3948 = vmatprep.subr.bf16.mxu0 0
        %3949 = vmatpush1.bf16.xpose.msra.mxu0 %v3916
        %3950 = vmatprep.mubr.bf16.mxu0 0
        %3951 = vmatmul.mubr.bf16.gmra.mrb[0].mxu0 %v3868
        %v3952 = vpop.f32.mrb[0].mxu0
        %v3953 = vadd.f32 0.0, %v3952
        %v3954 = vpop.f32.mrb[0].mxu0
        %v3955 = vadd.f32 0.0, %v3954
        %v3956 = vpop.f32.mrb[0].mxu0
        %v3957 = vpop.f32.mrb[0].mxu0
        %3958 = vdwg.mxu0
        %v3959 = vmax.f32 %v3953, %v3955
        %v3960 = vld [vmem:[#allocation5 + $0x80] ss:$0 sm:$0xff]
        %v3961 = vpack.c.bf16 %v3959, %v3959
        %v3962 = vld [vmem:[#allocation2 + $0xd68] sm:$0xf]
        %v3963 = vld [vmem:[#allocation2 + $0xd70] sm:$0xf]
        %v3964 = vld [vmem:[#allocation2 + $0xd78] sm:$0xf]
        %v3965 = vld [vmem:[#allocation2 + $0xd80] sm:$0xf]
        %v3966 = vld [vmem:[#allocation2 + $0xd88] sm:$0xf]
        %v3967 = vld [vmem:[#allocation2 + $0xd90] sm:$0xf]
        %v3968 = vld [vmem:[#allocation2 + $0xd98] sm:$0xf]
        %v3969 = vld [vmem:[#allocation2 + $0xda0] sm:$0xf]
        %v3970 = vld [vmem:[#allocation2 + $0xda8] sm:$0xf]
        %v3971 = vld [vmem:[#allocation2 + $0xdb0] sm:$0xf]
        %v3972 = vld [vmem:[#allocation2 + $0xdb8] sm:$0xf]
        %v3973 = vld [vmem:[#allocation2 + $0xdc0] sm:$0xf]
        %v3974 = vld [vmem:[#allocation2 + $0xdc8] sm:$0xf]
        %v3975 = vld [vmem:[#allocation2 + $0xdd0] sm:$0xf]
        %v3976 = vld [vmem:[#allocation2 + $0xdd8] sm:$0xf]
        %v3977 = vld [vmem:[#allocation2 + $0xde0] sm:$0xf]
        %v3994 = vunpack.c.l.b16 %v3962
        %v3995 = vunpack.c.l.b16 %v3963
        %v3996 = vunpack.c.l.b16 %v3964
        %v3997 = vunpack.c.l.b16 %v3965
        %v3998 = vunpack.c.l.b16 %v3966
        %v3999 = vunpack.c.l.b16 %v3967
        %v4000 = vunpack.c.l.b16 %v3968
        %v4001 = vunpack.c.l.b16 %v3969
        %v4002 = vunpack.c.l.b16 %v3970
        %v4003 = vunpack.c.l.b16 %v3971
        %v4004 = vunpack.c.l.b16 %v3972
        %v4005 = vunpack.c.l.b16 %v3973
        %v4006 = vunpack.c.l.b16 %v3974
        %v4007 = vunpack.c.l.b16 %v3975
        %v4008 = vunpack.c.l.b16 %v3976
        %v4009 = vunpack.c.l.b16 %v3977
        %v4010 = vpack.c.b16 %v3995, %v3994
        %v4011 = vpack.c.b16 %v3997, %v3996
        %v4012 = vpack.c.b16 %v3999, %v3998
        %v4013 = vpack.c.b16 %v4001, %v4000
        %v4014 = vpack.c.b16 %v4003, %v4002
        %v4015 = vpack.c.b16 %v4005, %v4004
        %v4016 = vpack.c.b16 %v4007, %v4006
        %v4017 = vpack.c.b16 %v4009, %v4008
        %4026 = vmatprep.subr.bf16.mxu0 0
        %4027 = vmatpush1.bf16.msra.mxu0 %v4010
        %4028 = vmatprep.subr.bf16.mxu0 0
        %4029 = vmatpush1.bf16.msra.mxu0 %v4011
        %4030 = vmatprep.subr.bf16.mxu0 0
        %4031 = vmatpush1.bf16.msra.mxu0 %v4012
        %4032 = vmatprep.subr.bf16.mxu0 0
        %4033 = vmatpush1.bf16.msra.mxu0 %v4013
        %4034 = vmatprep.subr.bf16.mxu0 0
        %4035 = vmatpush1.bf16.msra.mxu0 %v4014
        %4036 = vmatprep.subr.bf16.mxu0 0
        %4037 = vmatpush1.bf16.msra.mxu0 %v4015
        %4038 = vmatprep.subr.bf16.mxu0 0
        %4039 = vmatpush1.bf16.msra.mxu0 %v4016
        %4040 = vmatprep.subr.bf16.mxu0 0
        %4041 = vmatpush1.bf16.msra.mxu0 %v4017
        %4042 = vmatprep.subr.bf16.mxu0 0
        %4043 = vmatpush1.bf16.msra.mxu0 0
        %4044 = vmatprep.subr.bf16.mxu0 0
        %4045 = vmatpush1.bf16.msra.mxu0 0
        %4046 = vmatprep.subr.bf16.mxu0 0
        %4047 = vmatpush1.bf16.msra.mxu0 0
        %4048 = vmatprep.subr.bf16.mxu0 0
        %4049 = vmatpush1.bf16.msra.mxu0 0
        %4050 = vmatprep.subr.bf16.mxu0 0
        %4051 = vmatpush1.bf16.msra.mxu0 0
        %4052 = vmatprep.subr.bf16.mxu0 0
        %4053 = vmatpush1.bf16.msra.mxu0 0
        %4054 = vmatprep.subr.bf16.mxu0 0
        %4055 = vmatpush1.bf16.msra.mxu0 0
        %4056 = vmatprep.subr.bf16.mxu0 0
        %4057 = vmatpush1.bf16.msra.mxu0 0
        %4058 = vmatprep.mubr.bf16.mxu0 0
        %4059 = vmatmul.mubr.bf16.gmra.mrb[0].mxu0 %v3961
        %v4060 = vpop.f32.mrb[0].mxu0
        %v4061 = vadd.f32 0.0, %v4060
        %v4062 = vpop.f32.mrb[0].mxu0
        %v4063 = vpop.f32.mrb[0].mxu0
        %v4064 = vpop.f32.mrb[0].mxu0
        %4065 = vdwg.mxu0
        %v4066 = vadd.f32 %v3960, %v4061
        %vm4067 = vcmp.ge.f32.partialorder %v4066, 0.0
        %v4068 = vmul.f32 %v4066, 0.01
        %v4069 = vsel %vm4067, %v4066, %v4068
        %v4070 = vpack.c.bf16 %v4069, %v4069
        %v4071 = vld [vmem:[#allocation2 + $0xde8] sm:$0xf]
        %v4072 = vld [vmem:[#allocation2 + $0xdf0] sm:$0xf]
        %v4073 = vld [vmem:[#allocation2 + $0xdf8] sm:$0xf]
        %v4074 = vld [vmem:[#allocation2 + $0xe00] sm:$0xf]
        %v4075 = vld [vmem:[#allocation2 + $0xe08] sm:$0xf]
        %v4076 = vld [vmem:[#allocation2 + $0xe10] sm:$0xf]
        %v4077 = vld [vmem:[#allocation2 + $0xe18] sm:$0xf]
        %v4078 = vld [vmem:[#allocation2 + $0xe20] sm:$0xf]
        %v4079 = vld [vmem:[#allocation5 + $0x90] ss:$0 sm:$0xff]
        %v4088 = vunpack.c.l.b16 %v4071
        %v4089 = vunpack.c.l.b16 %v4072
        %v4090 = vunpack.c.l.b16 %v4073
        %v4091 = vunpack.c.l.b16 %v4074
        %v4092 = vunpack.c.l.b16 %v4075
        %v4093 = vunpack.c.l.b16 %v4076
        %v4094 = vunpack.c.l.b16 %v4077
        %v4095 = vunpack.c.l.b16 %v4078
        %v4096 = vpack.c.b16 %v4089, %v4088
        %v4097 = vpack.c.b16 %v4091, %v4090
        %v4098 = vpack.c.b16 %v4093, %v4092
        %v4099 = vpack.c.b16 %v4095, %v4094
        %v4105 = vsel %vm3362, %v4070, 0
        %4107 = vmatprep.subr.bf16.mxu0 0
        %4108 = vmatpush1.bf16.msra.mxu0 %v4096
        %4109 = vmatprep.subr.bf16.mxu0 0
        %4110 = vmatpush1.bf16.msra.mxu0 %v4097
        %4111 = vmatprep.subr.bf16.mxu0 0
        %4112 = vmatpush1.bf16.msra.mxu0 %v4098
        %4113 = vmatprep.subr.bf16.mxu0 0
        %4114 = vmatpush1.bf16.msra.mxu0 %v4099
        %4115 = vmatprep.subr.bf16.mxu0 0
        %4116 = vmatpush1.bf16.msra.mxu0 0
        %4117 = vmatprep.subr.bf16.mxu0 0
        %4118 = vmatpush1.bf16.msra.mxu0 0
        %4119 = vmatprep.subr.bf16.mxu0 0
        %4120 = vmatpush1.bf16.msra.mxu0 0
        %4121 = vmatprep.subr.bf16.mxu0 0
        %4122 = vmatpush1.bf16.msra.mxu0 0
        %4123 = vmatprep.subr.bf16.mxu0 0
        %4124 = vmatpush1.bf16.msra.mxu0 0
        %4125 = vmatprep.subr.bf16.mxu0 0
        %4126 = vmatpush1.bf16.msra.mxu0 0
        %4127 = vmatprep.subr.bf16.mxu0 0
        %4128 = vmatpush1.bf16.msra.mxu0 0
        %4129 = vmatprep.subr.bf16.mxu0 0
        %4130 = vmatpush1.bf16.msra.mxu0 0
        %4131 = vmatprep.subr.bf16.mxu0 0
        %4132 = vmatpush1.bf16.msra.mxu0 0
        %4133 = vmatprep.subr.bf16.mxu0 0
        %4134 = vmatpush1.bf16.msra.mxu0 0
        %4135 = vmatprep.subr.bf16.mxu0 0
        %4136 = vmatpush1.bf16.msra.mxu0 0
        %4137 = vmatprep.subr.bf16.mxu0 0
        %4138 = vmatpush1.bf16.msra.mxu0 0
        %4139 = vmatprep.mubr.bf16.mxu0 0
        %4140 = vmatmul.mubr.bf16.gmra.mrb[0].mxu0 %v4105
        %v4141 = vpop.f32.mrb[0].mxu0
        %v4142 = vadd.f32 %v4079, %v4141
        %v4143 = vpop.f32.mrb[0].mxu0
        %v4144 = vpop.f32.mrb[0].mxu0
        %v4145 = vpop.f32.mrb[0].mxu0
        %4146 = vdwg.mxu0
        %vm4147 = vcmp.ge.f32.partialorder %v4142, 0.0
        %v4148 = vmul.f32 %v4142, 0.01
        %v4149 = vsel %vm4147, %v4142, %v4148
        %v4150 = vpack.c.bf16 %v4149, %v4149
        %v4151 = vld [vmem:[#allocation2 + $0xe28] sm:$0xf]
        %v4152 = vld [vmem:[#allocation2 + $0xe30] sm:$0xf]
        %v4153 = vld [vmem:[#allocation2 + $0xe38] sm:$0xf]
        %v4154 = vld [vmem:[#allocation2 + $0xe40] sm:$0xf]
        %v4155 = vld [vmem:[#allocation2 + $0xe48] sm:$0xf]
        %v4156 = vld [vmem:[#allocation2 + $0xe50] sm:$0xf]
        %v4157 = vld [vmem:[#allocation2 + $0xe58] sm:$0xf]
        %v4158 = vld [vmem:[#allocation2 + $0xe60] sm:$0xf]
        %v4159 = vld [vmem:[#allocation5 + $0xa0] ss:$0 sm:$0xff]
        %v4168 = vunpack.c.l.b16 %v4151
        %v4169 = vunpack.c.l.b16 %v4152
        %v4170 = vunpack.c.l.b16 %v4153
        %v4171 = vunpack.c.l.b16 %v4154
        %v4172 = vunpack.c.l.b16 %v4155
        %v4173 = vunpack.c.l.b16 %v4156
        %v4174 = vunpack.c.l.b16 %v4157
        %v4175 = vunpack.c.l.b16 %v4158
        %v4176 = vpack.c.b16 %v4169, %v4168
        %v4177 = vpack.c.b16 %v4171, %v4170
        %v4178 = vpack.c.b16 %v4173, %v4172
        %v4179 = vpack.c.b16 %v4175, %v4174
        %v4185 = vsel %vm3362, %v4150, 0
        %4187 = vmatprep.subr.bf16.mxu0 0
        %4188 = vmatpush1.bf16.msra.mxu0 %v4176
        %4189 = vmatprep.subr.bf16.mxu0 0
        %4190 = vmatpush1.bf16.msra.mxu0 %v4177
        %4191 = vmatprep.subr.bf16.mxu0 0
        %4192 = vmatpush1.bf16.msra.mxu0 %v4178
        %4193 = vmatprep.subr.bf16.mxu0 0
        %4194 = vmatpush1.bf16.msra.mxu0 %v4179
        %4195 = vmatprep.subr.bf16.mxu0 0
        %4196 = vmatpush1.bf16.msra.mxu0 0
        %4197 = vmatprep.subr.bf16.mxu0 0
        %4198 = vmatpush1.bf16.msra.mxu0 0
        %4199 = vmatprep.subr.bf16.mxu0 0
        %4200 = vmatpush1.bf16.msra.mxu0 0
        %4201 = vmatprep.subr.bf16.mxu0 0
        %4202 = vmatpush1.bf16.msra.mxu0 0
        %4203 = vmatprep.subr.bf16.mxu0 0
        %4204 = vmatpush1.bf16.msra.mxu0 0
        %4205 = vmatprep.subr.bf16.mxu0 0
        %4206 = vmatpush1.bf16.msra.mxu0 0
        %4207 = vmatprep.subr.bf16.mxu0 0
        %4208 = vmatpush1.bf16.msra.mxu0 0
        %4209 = vmatprep.subr.bf16.mxu0 0
        %4210 = vmatpush1.bf16.msra.mxu0 0
        %4211 = vmatprep.subr.bf16.mxu0 0
        %4212 = vmatpush1.bf16.msra.mxu0 0
        %4213 = vmatprep.subr.bf16.mxu0 0
        %4214 = vmatpush1.bf16.msra.mxu0 0
        %4215 = vmatprep.subr.bf16.mxu0 0
        %4216 = vmatpush1.bf16.msra.mxu0 0
        %4217 = vmatprep.subr.bf16.mxu0 0
        %4218 = vmatpush1.bf16.msra.mxu0 0
        %4219 = vmatprep.mubr.bf16.mxu0 0
        %4220 = vmatmul.mubr.bf16.gmra.mrb[0].mxu0 %v4185
        %v4221 = vpop.f32.mrb[0].mxu0
        %v4222 = vadd.f32 %v4159, %v4221
        %v4223 = vpop.f32.mrb[0].mxu0
        %v4224 = vpop.f32.mrb[0].mxu0
        %v4225 = vpop.f32.mrb[0].mxu0
        %4226 = vdwg.mxu0
        %vm4227 = vcmask 8192
        %4228 = vst.msk [vmem:[%s192] sm:$0x1] %vm4227, %v4222
        %s4229 = sand.u32 %s95, 1
        %s4230 = scalar_lea.sflag [#allocation4], %s4229
        %s4231 = sand.u32 %s95, 1
        %s4232 = scalar_lea.vmem [#allocation7], %s4231
        // Predicated region
        $region41: #{forward.1} parent=31 // pred_check
          %p4233 = pneg %p105
        $region42: #{forward.1} parent=31 // pred_check_branch
          %4235 = sbr.rel (%p4233) target = $region44
        $region43: #{forward.1} parent=31 // pred_region
          %s4237 = ssub.s32 16, 16
          %4238 = vsyncadd %s4230, %s4237
          %s4239 = smul.addr %s19, 16
          %s4240 = scalar_lea.hbm %s3, %s4239
          %s4242 = sshll.u32 %s4232, 4
          %s4243 = int_to_ptr.vmem [resolvable:$true] %s4242
          %4245 = dma.vmem_to_hbm [thread:$0]  %s4243, 16, %s4240, %s4230
        $region44: #{forward.1} parent=31 // pred_fallthru
          _
      $region32: #{forward.1} parent=5 // pred_fallthru
        _
      %p4246 = scmp.le.s32.totalorder 2, %s14
      // Predicated region
      $region45: #{forward.1} parent=5 // pred_check
        %p4247 = pneg %p4246
      $region46: #{forward.1} parent=5 // pred_check_branch
        %4249 = sbr.rel (%p4247) target = $region48
      $region47: #{forward.1} parent=5 // pred_region
        %s4250 = ssub.s32 %s14, 2
        // Predicated region
        $region49: #{forward.1} parent=47 // pred_check
          %p4251 = pneg %p111
        $region50: #{forward.1} parent=47 // pred_check_branch
          %4253 = sbr.rel (%p4251) target = $region52
        $region51: #{forward.1} parent=47 // pred_region
          %s4254 = sand.u32 %s96, 1
          %s4255 = scalar_lea.sflag [#allocation4], %s4254
          %s4256 = sand.u32 %s96, 1
          %s4257 = scalar_lea.vmem [#allocation7], %s4256
          %4258 = dma.done %s4255, 16
        $region52: #{forward.1} parent=47 // pred_fallthru
          _
      $region48: #{forward.1} parent=5 // pred_fallthru
        _
    $region6: #{forward.1} parent=1 // loop_footer
      %s18 = sadd.s32 1, %s14
    $region7: #{forward.1} parent=1 // loop_footer_branch
      %13 = sbr.rel target = $region3
    $region8: #{forward.1} parent=1 // loop_exit
      _
    %4259 = vsyncpa [#allocation3], 1
    %s4260 = scalar_lea.sflag [#allocation3], 1
    %4261 = vsyncpa %s4260, 1
    %4262 = vsyncpa [#allocation6], 1
    %4263 = vsyncpa [#allocation4], 1
    %s4264 = scalar_lea.sflag [#allocation4], 1
    %4265 = vsyncpa %s4264, 1

</llo_original>
